<compile_context>
chip_gen: v6e
topology: v6e:2x2x1
jax: 0.10.0
libtpu: 0.0.40
codegen_flags: <defaults>
</compile_context>

<pallas_src>
import math
import numpy as np
import jax
import jax.numpy as jnp
from jax.experimental import pallas as pl
from jax.experimental.pallas import tpu as pltpu

# ---- config (small, consistent with the module) ----
B, S = 2, 8                 # batch, sequence length
BS = B * S                  # flattened rows
H = 32                      # hidden_size
NH = 4                      # num_attention_heads
DH = H // NH                # attention_head_size
RATIO = 2                   # channel_shrink_ratio
HL = H // RATIO             # layout hidden size
DHL = DH // RATIO           # layout head size
I = 64                      # intermediate_size
IL = I // RATIO             # layout intermediate size
LN_EPS = 1e-12              # Roberta layer_norm_eps
LANE = 128                  # lane width used for parameter slab padding

_SCALE_T = 1.0 / math.sqrt(DH)
_SCALE_L = 1.0 / math.sqrt(DHL)

# ---- weight-slab row offsets (each block padded to 128 lanes) ----
W_QKV_T = 0                 # (H, 3H)   = (32, 96)
W_QKV_L = W_QKV_T + H       # (HL, 3HL) = (16, 48)
W_SO    = W_QKV_L + HL      # (H, H)    = (32, 32)
W_LSO   = W_SO + H          # (HL, HL)  = (16, 16)
W_I     = W_LSO + HL        # (H, I)    = (32, 64)
W_O2    = W_I + H           # (I, H)    = (64, 32)
W_LI    = W_O2 + I          # (HL, IL)  = (16, 32)
W_LO2   = W_LI + HL         # (IL, HL)  = (32, 16)
W_ROWS  = W_LO2 + IL        # 240 total rows

# ---- bias/LN-slab row indices ----
(B_QKV_T, B_QKV_L, B_SO, G1, BE1, B_LSO, LG1, LBE1,
 B_I, B_O2, G2, BE2, B_LI, B_LO2, LG2, LBE2) = range(16)
B_ROWS = 16


def _layernorm(x, g, b):
    mu = jnp.mean(x, axis=-1, keepdims=True)
    var = jnp.mean(jnp.square(x - mu), axis=-1, keepdims=True)
    return (x - mu) * jax.lax.rsqrt(var + LN_EPS) * g + b


def _gelu_exact(x):
    # HF Roberta "gelu" == exact erf GELU
    return x * 0.5 * (1.0 + jax.lax.erf(x * (1.0 / math.sqrt(2.0))))


def lilt_layer_kernel(x_ref, l_ref, mask_ref, w_ref, b_ref, out_ref):
    x = x_ref[...]        # (BS, H)
    lay = l_ref[...]      # (BS, HL)
    mask = mask_ref[...]  # (BS, BS) additive, block-diagonal over batch

    def w_blk(r0, rows, cols):
        return w_ref[r0:r0 + rows, :cols]

    def b_row(i, cols):
        return b_ref[i:i + 1, :cols]    # (1, cols)

    # --- fused Q/K/V projections (one matmul per stream) ---
    qkv = jnp.dot(x, w_blk(W_QKV_T, H, 3 * H),
                  preferred_element_type=jnp.float32) + b_row(B_QKV_T, 3 * H)
    qkv_l = jnp.dot(lay, w_blk(W_QKV_L, HL, 3 * HL),
                    preferred_element_type=jnp.float32) + b_row(B_QKV_L, 3 * HL)

    q, k, v = qkv[:, 0:H], qkv[:, H:2 * H], qkv[:, 2 * H:3 * H]
    ql, kl, vl = qkv_l[:, 0:HL], qkv_l[:, HL:2 * HL], qkv_l[:, 2 * HL:3 * HL]

    # self-output dense weights (folded into the head loop: no ctx concat)
    wso = w_blk(W_SO, H, H)        # (H, H)
    wlso = w_blk(W_LSO, HL, HL)    # (HL, HL)

    so_acc = jnp.zeros((BS, H), jnp.float32)
    so_l_acc = jnp.zeros((BS, HL), jnp.float32)

    dim_nums = (((1,), (1,)), ((), ()))  # contract last dim of both (== Q @ K^T)
    for h in range(NH):
        qh = q[:, h * DH:(h + 1) * DH]
        kh = k[:, h * DH:(h + 1) * DH]
        vh = v[:, h * DH:(h + 1) * DH]
        qlh = ql[:, h * DHL:(h + 1) * DHL]
        klh = kl[:, h * DHL:(h + 1) * DHL]
        vlh = vl[:, h * DHL:(h + 1) * DHL]

        s_text = jax.lax.dot_general(qh, kh, dim_nums,
                                     preferred_element_type=jnp.float32) * _SCALE_T
        s_lay = jax.lax.dot_general(qlh, klh, dim_nums,
                                    preferred_element_type=jnp.float32) * _SCALE_L
        s = s_text + s_lay + mask     # (BS, BS)

        # shared softmax (text & layout scores identical in forward; .detach()
        # only changes gradients)
        s = s - jnp.max(s, axis=-1, keepdims=True)
        p = jnp.exp(s)
        p = p * pl.reciprocal(jnp.sum(p, axis=-1, keepdims=True), approx=True)

        ctx_h = jnp.dot(p, vh, preferred_element_type=jnp.float32)    # (BS, DH)
        ctxl_h = jnp.dot(p, vlh, preferred_element_type=jnp.float32)  # (BS, DHL)

        # fold the self-output dense projection into the head loop
        so_acc = so_acc + jnp.dot(ctx_h, wso[h * DH:(h + 1) * DH, :],
                                  preferred_element_type=jnp.float32)
        so_l_acc = so_l_acc + jnp.dot(ctxl_h, wlso[h * DHL:(h + 1) * DHL, :],
                                      preferred_element_type=jnp.float32)

    # --- RobertaSelfOutput (both streams) ---
    attn_out = _layernorm(so_acc + b_row(B_SO, H) + x,
                          b_row(G1, H), b_row(BE1, H))
    attn_out_l = _layernorm(so_l_acc + b_row(B_LSO, HL) + lay,
                            b_row(LG1, HL), b_row(LBE1, HL))

    # --- feed-forward: RobertaIntermediate + RobertaOutput (both streams) ---
    inter = _gelu_exact(jnp.dot(attn_out, w_blk(W_I, H, I),
                                preferred_element_type=jnp.float32) + b_row(B_I, I))
    out_t = _layernorm(jnp.dot(inter, w_blk(W_O2, I, H),
                               preferred_element_type=jnp.float32)
                       + b_row(B_O2, H) + attn_out,
                       b_row(G2, H), b_row(BE2, H))

    inter_l = _gelu_exact(jnp.dot(attn_out_l, w_blk(W_LI, HL, IL),
                                  preferred_element_type=jnp.float32) + b_row(B_LI, IL))
    out_l = _layernorm(jnp.dot(inter_l, w_blk(W_LO2, IL, HL),
                               preferred_element_type=jnp.float32)
                       + b_row(B_LO2, HL) + attn_out_l,
                       b_row(LG2, HL), b_row(LBE2, HL))

    # single lane-dense output slab: [text | layout]
    out_ref[:, 0:H] = out_t.astype(out_ref.dtype)
    out_ref[:, H:H + HL] = out_l.astype(out_ref.dtype)


def pack_params(params):
    """Pack the 32 individual parameters into one weight slab and one bias slab."""
    (wq, bq, wk, bk, wv, bv,
     wlq, blq, wlk, blk, wlv, blv,
     wso, bso, g1, be1,
     wlso, blso, lg1, lbe1,
     wi, bi, wo2, bo2, g2, be2,
     wli, bli, wlo2, blo2, lg2, lbe2) = params

    def pad_cols(a):
        return jnp.pad(a, ((0, 0), (0, LANE - a.shape[1])))

    w_qkv_t = jnp.concatenate([wq, wk, wv], axis=1)       # (H, 3H)
    w_qkv_l = jnp.concatenate([wlq, wlk, wlv], axis=1)    # (HL, 3HL)
    weight_blocks = [w_qkv_t, w_qkv_l, wso, wlso, wi, wo2, wli, wlo2]
    w_slab = jnp.concatenate([pad_cols(w) for w in weight_blocks], axis=0)
    assert w_slab.shape == (W_ROWS, LANE)

    b_qkv_t = jnp.concatenate([bq, bk, bv], axis=1)       # (1, 3H)
    b_qkv_l = jnp.concatenate([blq, blk, blv], axis=1)    # (1, 3HL)
    bias_rows = [b_qkv_t, b_qkv_l, bso, g1, be1, blso, lg1, lbe1,
                 bi, bo2, g2, be2, bli, blo2, lg2, lbe2]
    b_slab = jnp.concatenate([pad_cols(r) for r in bias_rows], axis=0)
    assert b_slab.shape == (B_ROWS, LANE)
    return w_slab, b_slab


def lilt_layer_pallas(hidden, layout, mask, w_slab, b_slab):
    # flatten batch into rows; block-diagonal additive mask prevents
    # cross-batch attention (exp underflows to exactly 0 for blocked entries).
    x2 = hidden.reshape(BS, H)
    l2 = layout.reshape(BS, HL)
    batch_ids = jnp.repeat(jnp.arange(B), S)
    same = batch_ids[:, None] == batch_ids[None, :]
    full_mask = jnp.where(same, mask.reshape(BS)[None, :],
                          jnp.float32(-1e9)).astype(jnp.float32)

    out = pl.pallas_call(
        lilt_layer_kernel,
        out_shape=jax.ShapeDtypeStruct((BS, H + HL), jnp.float32),
        grid_spec=pltpu.PrefetchScalarGridSpec(
            num_scalar_prefetch=0,
            grid=(1,),                      # whole problem in one step
            in_specs=[
                pl.BlockSpec((BS, H), lambda i: (0, 0)),
                pl.BlockSpec((BS, HL), lambda i: (0, 0)),
                pl.BlockSpec((BS, BS), lambda i: (0, 0)),
                pl.BlockSpec((W_ROWS, LANE), lambda i: (0, 0)),
                pl.BlockSpec((B_ROWS, LANE), lambda i: (0, 0)),
            ],
            out_specs=pl.BlockSpec((BS, H + HL), lambda i: (0, 0)),
        ),
        compiler_params=pltpu.CompilerParams(
            dimension_semantics=("arbitrary",)),
    )(x2, l2, full_mask, w_slab, b_slab)

    out_t = out[:, :H].reshape(B, S, H)
    out_l = out[:, H:].reshape(B, S, HL)
    return out_t, out_l


# ---------- pure-JAX reference (for verification) ----------
def lilt_layer_reference(hidden, layout, mask, params):
    (wq, bq, wk, bk, wv, bv,
     wlq, blq, wlk, blk, wlv, blv,
     wso, bso, g1, be1,
     wlso, blso, lg1, lbe1,
     wi, bi, wo2, bo2, g2, be2,
     wli, bli, wlo2, blo2, lg2, lbe2) = params

    def lin(x, w, b):
        return x @ w + b

    def ln(x, g, b):
        mu = x.mean(-1, keepdims=True)
        var = ((x - mu) ** 2).mean(-1, keepdims=True)
        return (x - mu) / jnp.sqrt(var + LN_EPS) * g + b

    def gelu(x):
        return x * 0.5 * (1.0 + jax.lax.erf(x / math.sqrt(2.0)))

    q = lin(hidden, wq, bq).reshape(B, S, NH, DH)
    k = lin(hidden, wk, bk).reshape(B, S, NH, DH)
    v = lin(hidden, wv, bv).reshape(B, S, NH, DH)
    ql = lin(layout, wlq, blq).reshape(B, S, NH, DHL)
    kl = lin(layout, wlk, blk).reshape(B, S, NH, DHL)
    vl = lin(layout, wlv, blv).reshape(B, S, NH, DHL)

    st = jnp.einsum('bqhd,bkhd->bhqk', q, k) / math.sqrt(DH)
    sl = jnp.einsum('bqhd,bkhd->bhqk', ql, kl) / math.sqrt(DHL)
    s = st + sl + mask[:, None, None, :]
    p = jax.nn.softmax(s, axis=-1)

    ctx = jnp.einsum('bhqk,bkhd->bqhd', p, v).reshape(B, S, H)
    ctxl = jnp.einsum('bhqk,bkhd->bqhd', p, vl).reshape(B, S, HL)

    ao = ln(lin(ctx, wso, bso) + hidden, g1, be1)
    aol = ln(lin(ctxl, wlso, blso) + layout, lg1, lbe1)

    out = ln(lin(gelu(lin(ao, wi, bi)), wo2, bo2) + ao, g2, be2)
    outl = ln(lin(gelu(lin(aol, wli, bli)), wlo2, blo2) + aol, lg2, lbe2)
    return out, outl


def init_params(key):
    # order matches the reference / pack_params unpacking
    shapes = [
        (H, H), (1, H), (H, H), (1, H), (H, H), (1, H),            # q,k,v (text)
        (HL, HL), (1, HL), (HL, HL), (1, HL), (HL, HL), (1, HL),   # q,k,v (layout)
        (H, H), (1, H), (1, H), (1, H),                            # self-output text (W, b, LN g, LN b)
        (HL, HL), (1, HL), (1, HL), (1, HL),                       # self-output layout
        (H, I), (1, I),                                            # intermediate text
        (I, H), (1, H), (1, H), (1, H),                            # output text (W, b, LN g, LN b)
        (HL, IL), (1, IL),                                         # intermediate layout
        (IL, HL), (1, HL), (1, HL), (1, HL),                       # output layout
    ]
    ln_gamma_idx = {14, 18, 24, 30}
    ln_beta_idx = {15, 19, 25, 31}
    keys = jax.random.split(key, len(shapes))
    params = []
    for i, (shp, k) in enumerate(zip(shapes, keys)):
        if i in ln_gamma_idx:
            params.append(jnp.ones(shp, jnp.float32))
        elif i in ln_beta_idx:
            params.append(jnp.zeros(shp, jnp.float32))
        else:
            params.append(0.02 * jax.random.normal(k, shp, jnp.float32))
    return params


if __name__ == "__main__":
    root = jax.random.PRNGKey(0)
    k_h, k_l, k_p = jax.random.split(root, 3)

    hidden = jax.random.normal(k_h, (B, S, H), jnp.float32)
    layout = jax.random.normal(k_l, (B, S, HL), jnp.float32)
    # additive attention mask (HF extended-mask style): last key position masked out
    mask = jnp.concatenate(
        [jnp.zeros((B, S - 1), jnp.float32),
         jnp.full((B, 1), -10000.0, jnp.float32)], axis=1)

    params = init_params(k_p)
    w_slab, b_slab = pack_params(params)

    out, out_layout = lilt_layer_pallas(hidden, layout, mask, w_slab, b_slab)
    jax.block_until_ready((out, out_layout))

    ref_out, ref_out_layout = lilt_layer_reference(hidden, layout, mask, params)
    np.testing.assert_allclose(np.asarray(out), np.asarray(ref_out),
                               rtol=5e-3, atol=5e-3)
    np.testing.assert_allclose(np.asarray(out_layout), np.asarray(ref_out_layout),
                               rtol=5e-3, atol=5e-3)

    print("KERNEL_OK")
</pallas_src>

<mosaic_0001>
module attributes {stable_mosaic.version = 11 : i64} {
  func.func @lilt_layer_kernel(%arg0: i32, %arg1: memref<16x32xf32, #tpu.memory_space<vmem>>, %arg2: memref<16x16xf32, #tpu.memory_space<vmem>>, %arg3: memref<16x16xf32, #tpu.memory_space<vmem>>, %arg4: memref<240x128xf32, #tpu.memory_space<vmem>>, %arg5: memref<16x128xf32, #tpu.memory_space<vmem>>, %arg6: memref<16x48xf32, #tpu.memory_space<vmem>>) attributes {dimension_semantics = [#tpu.dimension_semantics<arbitrary>], iteration_bounds = array<i64: 1>, scalar_prefetch = 0 : i64, scratch_operands = 0 : i64, tpu.core_type = #tpu.core_type<tc>, window_params = [{pipeline_mode = #tpu.pipeline_mode<synchronous>, transform_indices = @transform_0, window_bounds = array<i64: 16, 32>}, {pipeline_mode = #tpu.pipeline_mode<synchronous>, transform_indices = @transform_1, window_bounds = array<i64: 16, 16>}, {pipeline_mode = #tpu.pipeline_mode<synchronous>, transform_indices = @transform_2, window_bounds = array<i64: 16, 16>}, {pipeline_mode = #tpu.pipeline_mode<synchronous>, transform_indices = @transform_3, window_bounds = array<i64: 240, 128>}, {pipeline_mode = #tpu.pipeline_mode<synchronous>, transform_indices = @transform_4, window_bounds = array<i64: 16, 128>}, {pipeline_mode = #tpu.pipeline_mode<synchronous>, transform_indices = @transform_5, window_bounds = array<i64: 16, 48>}]} {
    %c0 = arith.constant 0 : index
    %c0_0 = arith.constant 0 : index
    %0 = vector.load %arg1[%c0, %c0_0] : memref<16x32xf32, #tpu.memory_space<vmem>>, vector<16x32xf32>
    %c0_1 = arith.constant 0 : index
    %c0_2 = arith.constant 0 : index
    %1 = vector.load %arg2[%c0_1, %c0_2] : memref<16x16xf32, #tpu.memory_space<vmem>>, vector<16x16xf32>
    %c0_3 = arith.constant 0 : index
    %c0_4 = arith.constant 0 : index
    %2 = vector.load %arg3[%c0_3, %c0_4] : memref<16x16xf32, #tpu.memory_space<vmem>>, vector<16x16xf32>
    %c0_5 = arith.constant 0 : index
    %c0_6 = arith.constant 0 : index
    %3 = vector.load %arg4[%c0_5, %c0_6] : memref<240x128xf32, #tpu.memory_space<vmem>>, vector<32x96xf32>
    %cst = arith.constant dense<0.000000e+00> : vector<16x96xf32>
    %4 = tpu.matmul %0, %3, %cst {dimension_numbers = #tpu.dot_dimension_numbers<[1], [0], [0], [1], [0, 0, 1, 1], [], []>} : vector<16x32xf32>, vector<32x96xf32>, vector<16x96xf32> -> vector<16x96xf32>
    %c0_7 = arith.constant 0 : index
    %c0_8 = arith.constant 0 : index
    %5 = vector.load %arg5[%c0_7, %c0_8] : memref<16x128xf32, #tpu.memory_space<vmem>>, vector<1x96xf32>
    %6 = vector.broadcast %5 : vector<1x96xf32> to vector<16x96xf32>
    %7 = arith.addf %4, %6 : vector<16x96xf32>
    %c32 = arith.constant 32 : index
    %c0_9 = arith.constant 0 : index
    %8 = vector.load %arg4[%c32, %c0_9] : memref<240x128xf32, #tpu.memory_space<vmem>>, vector<16x48xf32>
    %cst_10 = arith.constant dense<0.000000e+00> : vector<16x48xf32>
    %9 = tpu.matmul %1, %8, %cst_10 {dimension_numbers = #tpu.dot_dimension_numbers<[1], [0], [0], [1], [0, 0, 1, 1], [], []>} : vector<16x16xf32>, vector<16x48xf32>, vector<16x48xf32> -> vector<16x48xf32>
    %c1 = arith.constant 1 : index
    %c0_11 = arith.constant 0 : index
    %10 = vector.load %arg5[%c1, %c0_11] : memref<16x128xf32, #tpu.memory_space<vmem>>, vector<1x48xf32>
    %11 = vector.broadcast %10 : vector<1x48xf32> to vector<16x48xf32>
    %12 = arith.addf %9, %11 : vector<16x48xf32>
    %13 = vector.extract_strided_slice %7 {offsets = [0, 0], sizes = [16, 32], strides = [1, 1]} : vector<16x96xf32> to vector<16x32xf32>
    %14 = vector.extract_strided_slice %7 {offsets = [0, 32], sizes = [16, 32], strides = [1, 1]} : vector<16x96xf32> to vector<16x32xf32>
    %15 = vector.extract_strided_slice %7 {offsets = [0, 64], sizes = [16, 32], strides = [1, 1]} : vector<16x96xf32> to vector<16x32xf32>
    %16 = vector.extract_strided_slice %12 {offsets = [0, 0], sizes = [16, 16], strides = [1, 1]} : vector<16x48xf32> to vector<16x16xf32>
    %17 = vector.extract_strided_slice %12 {offsets = [0, 16], sizes = [16, 16], strides = [1, 1]} : vector<16x48xf32> to vector<16x16xf32>
    %18 = vector.extract_strided_slice %12 {offsets = [0, 32], sizes = [16, 16], strides = [1, 1]} : vector<16x48xf32> to vector<16x16xf32>
    %c48 = arith.constant 48 : index
    %c0_12 = arith.constant 0 : index
    %19 = vector.load %arg4[%c48, %c0_12] : memref<240x128xf32, #tpu.memory_space<vmem>>, vector<32x32xf32>
    %c80 = arith.constant 80 : index
    %c0_13 = arith.constant 0 : index
    %20 = vector.load %arg4[%c80, %c0_13] : memref<240x128xf32, #tpu.memory_space<vmem>>, vector<16x16xf32>
    %cst_14 = arith.constant 0.000000e+00 : f32
    %21 = vector.broadcast %cst_14 : f32 to vector<16x32xf32>
    %cst_15 = arith.constant 0.000000e+00 : f32
    %22 = vector.broadcast %cst_15 : f32 to vector<16x16xf32>
    %23 = vector.extract_strided_slice %13 {offsets = [0, 0], sizes = [16, 8], strides = [1, 1]} : vector<16x32xf32> to vector<16x8xf32>
    %24 = vector.extract_strided_slice %14 {offsets = [0, 0], sizes = [16, 8], strides = [1, 1]} : vector<16x32xf32> to vector<16x8xf32>
    %25 = vector.extract_strided_slice %15 {offsets = [0, 0], sizes = [16, 8], strides = [1, 1]} : vector<16x32xf32> to vector<16x8xf32>
    %26 = vector.extract_strided_slice %16 {offsets = [0, 0], sizes = [16, 4], strides = [1, 1]} : vector<16x16xf32> to vector<16x4xf32>
    %27 = vector.extract_strided_slice %17 {offsets = [0, 0], sizes = [16, 4], strides = [1, 1]} : vector<16x16xf32> to vector<16x4xf32>
    %28 = vector.extract_strided_slice %18 {offsets = [0, 0], sizes = [16, 4], strides = [1, 1]} : vector<16x16xf32> to vector<16x4xf32>
    %cst_16 = arith.constant dense<0.000000e+00> : vector<16x16xf32>
    %29 = tpu.matmul %23, %24, %cst_16 {dimension_numbers = #tpu.dot_dimension_numbers<[1], [1], [0], [0], [0, 0, 1, 0], [], []>} : vector<16x8xf32>, vector<16x8xf32>, vector<16x16xf32> -> vector<16x16xf32>
    %cst_17 = arith.constant 0.353553385 : f32
    %30 = vector.broadcast %cst_17 : f32 to vector<16x16xf32>
    %31 = arith.mulf %29, %30 : vector<16x16xf32>
    %cst_18 = arith.constant dense<0.000000e+00> : vector<16x16xf32>
    %32 = tpu.matmul %26, %27, %cst_18 {dimension_numbers = #tpu.dot_dimension_numbers<[1], [1], [0], [0], [0, 0, 1, 0], [], []>} : vector<16x4xf32>, vector<16x4xf32>, vector<16x16xf32> -> vector<16x16xf32>
    %cst_19 = arith.constant 5.000000e-01 : f32
    %33 = vector.broadcast %cst_19 : f32 to vector<16x16xf32>
    %34 = arith.mulf %32, %33 : vector<16x16xf32>
    %35 = arith.addf %31, %34 : vector<16x16xf32>
    %36 = arith.addf %35, %2 : vector<16x16xf32>
    %cst_20 = arith.constant dense<0xFF800000> : vector<16xf32>
    %37 = vector.multi_reduction <maximumf>, %36, %cst_20 [1] : vector<16x16xf32> to vector<16xf32>
    %38 = vector.shape_cast %37 : vector<16xf32> to vector<16x1xf32>
    %39 = vector.broadcast %38 : vector<16x1xf32> to vector<16x16xf32>
    %40 = arith.subf %36, %39 : vector<16x16xf32>
    %41 = math.exp %40 : vector<16x16xf32>
    %cst_21 = arith.constant dense<0.000000e+00> : vector<16xf32>
    %42 = vector.multi_reduction <add>, %41, %cst_21 [1] : vector<16x16xf32> to vector<16xf32>
    %43 = vector.shape_cast %42 : vector<16xf32> to vector<16x1xf32>
    %44 = tpu.reciprocal %43 {approx = true} : vector<16x1xf32> -> vector<16x1xf32>
    %45 = vector.broadcast %44 : vector<16x1xf32> to vector<16x16xf32>
    %46 = arith.mulf %41, %45 : vector<16x16xf32>
    %cst_22 = arith.constant dense<0.000000e+00> : vector<16x8xf32>
    %47 = tpu.matmul %46, %25, %cst_22 {dimension_numbers = #tpu.dot_dimension_numbers<[1], [0], [0], [1], [0, 0, 1, 1], [], []>} : vector<16x16xf32>, vector<16x8xf32>, vector<16x8xf32> -> vector<16x8xf32>
    %cst_23 = arith.constant dense<0.000000e+00> : vector<16x4xf32>
    %48 = tpu.matmul %46, %28, %cst_23 {dimension_numbers = #tpu.dot_dimension_numbers<[1], [0], [0], [1], [0, 0, 1, 1], [], []>} : vector<16x16xf32>, vector<16x4xf32>, vector<16x4xf32> -> vector<16x4xf32>
    %49 = vector.extract_strided_slice %19 {offsets = [0, 0], sizes = [8, 32], strides = [1, 1]} : vector<32x32xf32> to vector<8x32xf32>
    %cst_24 = arith.constant dense<0.000000e+00> : vector<16x32xf32>
    %50 = tpu.matmul %47, %49, %cst_24 {dimension_numbers = #tpu.dot_dimension_numbers<[1], [0], [0], [1], [0, 0, 1, 1], [], []>} : vector<16x8xf32>, vector<8x32xf32>, vector<16x32xf32> -> vector<16x32xf32>
    %51 = arith.addf %21, %50 : vector<16x32xf32>
    %52 = vector.extract_strided_slice %20 {offsets = [0, 0], sizes = [4, 16], strides = [1, 1]} : vector<16x16xf32> to vector<4x16xf32>
    %cst_25 = arith.constant dense<0.000000e+00> : vector<16x16xf32>
    %53 = tpu.matmul %48, %52, %cst_25 {dimension_numbers = #tpu.dot_dimension_numbers<[1], [0], [0], [1], [0, 0, 1, 1], [], []>} : vector<16x4xf32>, vector<4x16xf32>, vector<16x16xf32> -> vector<16x16xf32>
    %54 = arith.addf %22, %53 : vector<16x16xf32>
    %55 = vector.extract_strided_slice %13 {offsets = [0, 8], sizes = [16, 8], strides = [1, 1]} : vector<16x32xf32> to vector<16x8xf32>
    %56 = vector.extract_strided_slice %14 {offsets = [0, 8], sizes = [16, 8], strides = [1, 1]} : vector<16x32xf32> to vector<16x8xf32>
    %57 = vector.extract_strided_slice %15 {offsets = [0, 8], sizes = [16, 8], strides = [1, 1]} : vector<16x32xf32> to vector<16x8xf32>
    %58 = vector.extract_strided_slice %16 {offsets = [0, 4], sizes = [16, 4], strides = [1, 1]} : vector<16x16xf32> to vector<16x4xf32>
    %59 = vector.extract_strided_slice %17 {offsets = [0, 4], sizes = [16, 4], strides = [1, 1]} : vector<16x16xf32> to vector<16x4xf32>
    %60 = vector.extract_strided_slice %18 {offsets = [0, 4], sizes = [16, 4], strides = [1, 1]} : vector<16x16xf32> to vector<16x4xf32>
    %cst_26 = arith.constant dense<0.000000e+00> : vector<16x16xf32>
    %61 = tpu.matmul %55, %56, %cst_26 {dimension_numbers = #tpu.dot_dimension_numbers<[1], [1], [0], [0], [0, 0, 1, 0], [], []>} : vector<16x8xf32>, vector<16x8xf32>, vector<16x16xf32> -> vector<16x16xf32>
    %cst_27 = arith.constant 0.353553385 : f32
    %62 = vector.broadcast %cst_27 : f32 to vector<16x16xf32>
    %63 = arith.mulf %61, %62 : vector<16x16xf32>
    %cst_28 = arith.constant dense<0.000000e+00> : vector<16x16xf32>
    %64 = tpu.matmul %58, %59, %cst_28 {dimension_numbers = #tpu.dot_dimension_numbers<[1], [1], [0], [0], [0, 0, 1, 0], [], []>} : vector<16x4xf32>, vector<16x4xf32>, vector<16x16xf32> -> vector<16x16xf32>
    %cst_29 = arith.constant 5.000000e-01 : f32
    %65 = vector.broadcast %cst_29 : f32 to vector<16x16xf32>
    %66 = arith.mulf %64, %65 : vector<16x16xf32>
    %67 = arith.addf %63, %66 : vector<16x16xf32>
    %68 = arith.addf %67, %2 : vector<16x16xf32>
    %cst_30 = arith.constant dense<0xFF800000> : vector<16xf32>
    %69 = vector.multi_reduction <maximumf>, %68, %cst_30 [1] : vector<16x16xf32> to vector<16xf32>
    %70 = vector.shape_cast %69 : vector<16xf32> to vector<16x1xf32>
    %71 = vector.broadcast %70 : vector<16x1xf32> to vector<16x16xf32>
    %72 = arith.subf %68, %71 : vector<16x16xf32>
    %73 = math.exp %72 : vector<16x16xf32>
    %cst_31 = arith.constant dense<0.000000e+00> : vector<16xf32>
    %74 = vector.multi_reduction <add>, %73, %cst_31 [1] : vector<16x16xf32> to vector<16xf32>
    %75 = vector.shape_cast %74 : vector<16xf32> to vector<16x1xf32>
    %76 = tpu.reciprocal %75 {approx = true} : vector<16x1xf32> -> vector<16x1xf32>
    %77 = vector.broadcast %76 : vector<16x1xf32> to vector<16x16xf32>
    %78 = arith.mulf %73, %77 : vector<16x16xf32>
    %cst_32 = arith.constant dense<0.000000e+00> : vector<16x8xf32>
    %79 = tpu.matmul %78, %57, %cst_32 {dimension_numbers = #tpu.dot_dimension_numbers<[1], [0], [0], [1], [0, 0, 1, 1], [], []>} : vector<16x16xf32>, vector<16x8xf32>, vector<16x8xf32> -> vector<16x8xf32>
    %cst_33 = arith.constant dense<0.000000e+00> : vector<16x4xf32>
    %80 = tpu.matmul %78, %60, %cst_33 {dimension_numbers = #tpu.dot_dimension_numbers<[1], [0], [0], [1], [0, 0, 1, 1], [], []>} : vector<16x16xf32>, vector<16x4xf32>, vector<16x4xf32> -> vector<16x4xf32>
    %81 = vector.extract_strided_slice %19 {offsets = [8, 0], sizes = [8, 32], strides = [1, 1]} : vector<32x32xf32> to vector<8x32xf32>
    %cst_34 = arith.constant dense<0.000000e+00> : vector<16x32xf32>
    %82 = tpu.matmul %79, %81, %cst_34 {dimension_numbers = #tpu.dot_dimension_numbers<[1], [0], [0], [1], [0, 0, 1, 1], [], []>} : vector<16x8xf32>, vector<8x32xf32>, vector<16x32xf32> -> vector<16x32xf32>
    %83 = arith.addf %51, %82 : vector<16x32xf32>
    %84 = vector.extract_strided_slice %20 {offsets = [4, 0], sizes = [4, 16], strides = [1, 1]} : vector<16x16xf32> to vector<4x16xf32>
    %cst_35 = arith.constant dense<0.000000e+00> : vector<16x16xf32>
    %85 = tpu.matmul %80, %84, %cst_35 {dimension_numbers = #tpu.dot_dimension_numbers<[1], [0], [0], [1], [0, 0, 1, 1], [], []>} : vector<16x4xf32>, vector<4x16xf32>, vector<16x16xf32> -> vector<16x16xf32>
    %86 = arith.addf %54, %85 : vector<16x16xf32>
    %87 = vector.extract_strided_slice %13 {offsets = [0, 16], sizes = [16, 8], strides = [1, 1]} : vector<16x32xf32> to vector<16x8xf32>
    %88 = vector.extract_strided_slice %14 {offsets = [0, 16], sizes = [16, 8], strides = [1, 1]} : vector<16x32xf32> to vector<16x8xf32>
    %89 = vector.extract_strided_slice %15 {offsets = [0, 16], sizes = [16, 8], strides = [1, 1]} : vector<16x32xf32> to vector<16x8xf32>
    %90 = vector.extract_strided_slice %16 {offsets = [0, 8], sizes = [16, 4], strides = [1, 1]} : vector<16x16xf32> to vector<16x4xf32>
    %91 = vector.extract_strided_slice %17 {offsets = [0, 8], sizes = [16, 4], strides = [1, 1]} : vector<16x16xf32> to vector<16x4xf32>
    %92 = vector.extract_strided_slice %18 {offsets = [0, 8], sizes = [16, 4], strides = [1, 1]} : vector<16x16xf32> to vector<16x4xf32>
    %cst_36 = arith.constant dense<0.000000e+00> : vector<16x16xf32>
    %93 = tpu.matmul %87, %88, %cst_36 {dimension_numbers = #tpu.dot_dimension_numbers<[1], [1], [0], [0], [0, 0, 1, 0], [], []>} : vector<16x8xf32>, vector<16x8xf32>, vector<16x16xf32> -> vector<16x16xf32>
    %cst_37 = arith.constant 0.353553385 : f32
    %94 = vector.broadcast %cst_37 : f32 to vector<16x16xf32>
    %95 = arith.mulf %93, %94 : vector<16x16xf32>
    %cst_38 = arith.constant dense<0.000000e+00> : vector<16x16xf32>
    %96 = tpu.matmul %90, %91, %cst_38 {dimension_numbers = #tpu.dot_dimension_numbers<[1], [1], [0], [0], [0, 0, 1, 0], [], []>} : vector<16x4xf32>, vector<16x4xf32>, vector<16x16xf32> -> vector<16x16xf32>
    %cst_39 = arith.constant 5.000000e-01 : f32
    %97 = vector.broadcast %cst_39 : f32 to vector<16x16xf32>
    %98 = arith.mulf %96, %97 : vector<16x16xf32>
    %99 = arith.addf %95, %98 : vector<16x16xf32>
    %100 = arith.addf %99, %2 : vector<16x16xf32>
    %cst_40 = arith.constant dense<0xFF800000> : vector<16xf32>
    %101 = vector.multi_reduction <maximumf>, %100, %cst_40 [1] : vector<16x16xf32> to vector<16xf32>
    %102 = vector.shape_cast %101 : vector<16xf32> to vector<16x1xf32>
    %103 = vector.broadcast %102 : vector<16x1xf32> to vector<16x16xf32>
    %104 = arith.subf %100, %103 : vector<16x16xf32>
    %105 = math.exp %104 : vector<16x16xf32>
    %cst_41 = arith.constant dense<0.000000e+00> : vector<16xf32>
    %106 = vector.multi_reduction <add>, %105, %cst_41 [1] : vector<16x16xf32> to vector<16xf32>
    %107 = vector.shape_cast %106 : vector<16xf32> to vector<16x1xf32>
    %108 = tpu.reciprocal %107 {approx = true} : vector<16x1xf32> -> vector<16x1xf32>
    %109 = vector.broadcast %108 : vector<16x1xf32> to vector<16x16xf32>
    %110 = arith.mulf %105, %109 : vector<16x16xf32>
    %cst_42 = arith.constant dense<0.000000e+00> : vector<16x8xf32>
    %111 = tpu.matmul %110, %89, %cst_42 {dimension_numbers = #tpu.dot_dimension_numbers<[1], [0], [0], [1], [0, 0, 1, 1], [], []>} : vector<16x16xf32>, vector<16x8xf32>, vector<16x8xf32> -> vector<16x8xf32>
    %cst_43 = arith.constant dense<0.000000e+00> : vector<16x4xf32>
    %112 = tpu.matmul %110, %92, %cst_43 {dimension_numbers = #tpu.dot_dimension_numbers<[1], [0], [0], [1], [0, 0, 1, 1], [], []>} : vector<16x16xf32>, vector<16x4xf32>, vector<16x4xf32> -> vector<16x4xf32>
    %113 = vector.extract_strided_slice %19 {offsets = [16, 0], sizes = [8, 32], strides = [1, 1]} : vector<32x32xf32> to vector<8x32xf32>
    %cst_44 = arith.constant dense<0.000000e+00> : vector<16x32xf32>
    %114 = tpu.matmul %111, %113, %cst_44 {dimension_numbers = #tpu.dot_dimension_numbers<[1], [0], [0], [1], [0, 0, 1, 1], [], []>} : vector<16x8xf32>, vector<8x32xf32>, vector<16x32xf32> -> vector<16x32xf32>
    %115 = arith.addf %83, %114 : vector<16x32xf32>
    %116 = vector.extract_strided_slice %20 {offsets = [8, 0], sizes = [4, 16], strides = [1, 1]} : vector<16x16xf32> to vector<4x16xf32>
    %cst_45 = arith.constant dense<0.000000e+00> : vector<16x16xf32>
    %117 = tpu.matmul %112, %116, %cst_45 {dimension_numbers = #tpu.dot_dimension_numbers<[1], [0], [0], [1], [0, 0, 1, 1], [], []>} : vector<16x4xf32>, vector<4x16xf32>, vector<16x16xf32> -> vector<16x16xf32>
    %118 = arith.addf %86, %117 : vector<16x16xf32>
    %119 = vector.extract_strided_slice %13 {offsets = [0, 24], sizes = [16, 8], strides = [1, 1]} : vector<16x32xf32> to vector<16x8xf32>
    %120 = vector.extract_strided_slice %14 {offsets = [0, 24], sizes = [16, 8], strides = [1, 1]} : vector<16x32xf32> to vector<16x8xf32>
    %121 = vector.extract_strided_slice %15 {offsets = [0, 24], sizes = [16, 8], strides = [1, 1]} : vector<16x32xf32> to vector<16x8xf32>
    %122 = vector.extract_strided_slice %16 {offsets = [0, 12], sizes = [16, 4], strides = [1, 1]} : vector<16x16xf32> to vector<16x4xf32>
    %123 = vector.extract_strided_slice %17 {offsets = [0, 12], sizes = [16, 4], strides = [1, 1]} : vector<16x16xf32> to vector<16x4xf32>
    %124 = vector.extract_strided_slice %18 {offsets = [0, 12], sizes = [16, 4], strides = [1, 1]} : vector<16x16xf32> to vector<16x4xf32>
    %cst_46 = arith.constant dense<0.000000e+00> : vector<16x16xf32>
    %125 = tpu.matmul %119, %120, %cst_46 {dimension_numbers = #tpu.dot_dimension_numbers<[1], [1], [0], [0], [0, 0, 1, 0], [], []>} : vector<16x8xf32>, vector<16x8xf32>, vector<16x16xf32> -> vector<16x16xf32>
    %cst_47 = arith.constant 0.353553385 : f32
    %126 = vector.broadcast %cst_47 : f32 to vector<16x16xf32>
    %127 = arith.mulf %125, %126 : vector<16x16xf32>
    %cst_48 = arith.constant dense<0.000000e+00> : vector<16x16xf32>
    %128 = tpu.matmul %122, %123, %cst_48 {dimension_numbers = #tpu.dot_dimension_numbers<[1], [1], [0], [0], [0, 0, 1, 0], [], []>} : vector<16x4xf32>, vector<16x4xf32>, vector<16x16xf32> -> vector<16x16xf32>
    %cst_49 = arith.constant 5.000000e-01 : f32
    %129 = vector.broadcast %cst_49 : f32 to vector<16x16xf32>
    %130 = arith.mulf %128, %129 : vector<16x16xf32>
    %131 = arith.addf %127, %130 : vector<16x16xf32>
    %132 = arith.addf %131, %2 : vector<16x16xf32>
    %cst_50 = arith.constant dense<0xFF800000> : vector<16xf32>
    %133 = vector.multi_reduction <maximumf>, %132, %cst_50 [1] : vector<16x16xf32> to vector<16xf32>
    %134 = vector.shape_cast %133 : vector<16xf32> to vector<16x1xf32>
    %135 = vector.broadcast %134 : vector<16x1xf32> to vector<16x16xf32>
    %136 = arith.subf %132, %135 : vector<16x16xf32>
    %137 = math.exp %136 : vector<16x16xf32>
    %cst_51 = arith.constant dense<0.000000e+00> : vector<16xf32>
    %138 = vector.multi_reduction <add>, %137, %cst_51 [1] : vector<16x16xf32> to vector<16xf32>
    %139 = vector.shape_cast %138 : vector<16xf32> to vector<16x1xf32>
    %140 = tpu.reciprocal %139 {approx = true} : vector<16x1xf32> -> vector<16x1xf32>
    %141 = vector.broadcast %140 : vector<16x1xf32> to vector<16x16xf32>
    %142 = arith.mulf %137, %141 : vector<16x16xf32>
    %cst_52 = arith.constant dense<0.000000e+00> : vector<16x8xf32>
    %143 = tpu.matmul %142, %121, %cst_52 {dimension_numbers = #tpu.dot_dimension_numbers<[1], [0], [0], [1], [0, 0, 1, 1], [], []>} : vector<16x16xf32>, vector<16x8xf32>, vector<16x8xf32> -> vector<16x8xf32>
    %cst_53 = arith.constant dense<0.000000e+00> : vector<16x4xf32>
    %144 = tpu.matmul %142, %124, %cst_53 {dimension_numbers = #tpu.dot_dimension_numbers<[1], [0], [0], [1], [0, 0, 1, 1], [], []>} : vector<16x16xf32>, vector<16x4xf32>, vector<16x4xf32> -> vector<16x4xf32>
    %145 = vector.extract_strided_slice %19 {offsets = [24, 0], sizes = [8, 32], strides = [1, 1]} : vector<32x32xf32> to vector<8x32xf32>
    %cst_54 = arith.constant dense<0.000000e+00> : vector<16x32xf32>
    %146 = tpu.matmul %143, %145, %cst_54 {dimension_numbers = #tpu.dot_dimension_numbers<[1], [0], [0], [1], [0, 0, 1, 1], [], []>} : vector<16x8xf32>, vector<8x32xf32>, vector<16x32xf32> -> vector<16x32xf32>
    %147 = arith.addf %115, %146 : vector<16x32xf32>
    %148 = vector.extract_strided_slice %20 {offsets = [12, 0], sizes = [4, 16], strides = [1, 1]} : vector<16x16xf32> to vector<4x16xf32>
    %cst_55 = arith.constant dense<0.000000e+00> : vector<16x16xf32>
    %149 = tpu.matmul %144, %148, %cst_55 {dimension_numbers = #tpu.dot_dimension_numbers<[1], [0], [0], [1], [0, 0, 1, 1], [], []>} : vector<16x4xf32>, vector<4x16xf32>, vector<16x16xf32> -> vector<16x16xf32>
    %150 = arith.addf %118, %149 : vector<16x16xf32>
    %c2 = arith.constant 2 : index
    %c0_56 = arith.constant 0 : index
    %151 = vector.load %arg5[%c2, %c0_56] : memref<16x128xf32, #tpu.memory_space<vmem>>, vector<1x32xf32>
    %152 = vector.broadcast %151 : vector<1x32xf32> to vector<16x32xf32>
    %153 = arith.addf %147, %152 : vector<16x32xf32>
    %154 = arith.addf %153, %0 : vector<16x32xf32>
    %c3 = arith.constant 3 : index
    %c0_57 = arith.constant 0 : index
    %155 = vector.load %arg5[%c3, %c0_57] : memref<16x128xf32, #tpu.memory_space<vmem>>, vector<1x32xf32>
    %c4 = arith.constant 4 : index
    %c0_58 = arith.constant 0 : index
    %156 = vector.load %arg5[%c4, %c0_58] : memref<16x128xf32, #tpu.memory_space<vmem>>, vector<1x32xf32>
    %cst_59 = arith.constant dense<0.000000e+00> : vector<16xf32>
    %157 = vector.multi_reduction <add>, %154, %cst_59 [1] : vector<16x32xf32> to vector<16xf32>
    %158 = vector.shape_cast %157 : vector<16xf32> to vector<16x1xf32>
    %cst_60 = arith.constant 3.200000e+01 : f32
    %159 = vector.broadcast %cst_60 : f32 to vector<16x1xf32>
    %160 = arith.divf %158, %159 : vector<16x1xf32>
    %161 = vector.broadcast %160 : vector<16x1xf32> to vector<16x32xf32>
    %162 = arith.subf %154, %161 : vector<16x32xf32>
    %163 = arith.mulf %162, %162 : vector<16x32xf32>
    %cst_61 = arith.constant dense<0.000000e+00> : vector<16xf32>
    %164 = vector.multi_reduction <add>, %163, %cst_61 [1] : vector<16x32xf32> to vector<16xf32>
    %165 = vector.shape_cast %164 : vector<16xf32> to vector<16x1xf32>
    %cst_62 = arith.constant 3.200000e+01 : f32
    %166 = vector.broadcast %cst_62 : f32 to vector<16x1xf32>
    %167 = arith.divf %165, %166 : vector<16x1xf32>
    %168 = vector.broadcast %160 : vector<16x1xf32> to vector<16x32xf32>
    %169 = arith.subf %154, %168 : vector<16x32xf32>
    %cst_63 = arith.constant 9.99999996E-13 : f32
    %170 = vector.broadcast %cst_63 : f32 to vector<16x1xf32>
    %171 = arith.addf %167, %170 : vector<16x1xf32>
    %172 = math.rsqrt %171 : vector<16x1xf32>
    %173 = vector.broadcast %172 : vector<16x1xf32> to vector<16x32xf32>
    %174 = arith.mulf %169, %173 : vector<16x32xf32>
    %175 = vector.broadcast %155 : vector<1x32xf32> to vector<16x32xf32>
    %176 = arith.mulf %174, %175 : vector<16x32xf32>
    %177 = vector.broadcast %156 : vector<1x32xf32> to vector<16x32xf32>
    %178 = arith.addf %176, %177 : vector<16x32xf32>
    %c5 = arith.constant 5 : index
    %c0_64 = arith.constant 0 : index
    %179 = vector.load %arg5[%c5, %c0_64] : memref<16x128xf32, #tpu.memory_space<vmem>>, vector<1x16xf32>
    %180 = vector.broadcast %179 : vector<1x16xf32> to vector<16x16xf32>
    %181 = arith.addf %150, %180 : vector<16x16xf32>
    %182 = arith.addf %181, %1 : vector<16x16xf32>
    %c6 = arith.constant 6 : index
    %c0_65 = arith.constant 0 : index
    %183 = vector.load %arg5[%c6, %c0_65] : memref<16x128xf32, #tpu.memory_space<vmem>>, vector<1x16xf32>
    %c7 = arith.constant 7 : index
    %c0_66 = arith.constant 0 : index
    %184 = vector.load %arg5[%c7, %c0_66] : memref<16x128xf32, #tpu.memory_space<vmem>>, vector<1x16xf32>
    %cst_67 = arith.constant dense<0.000000e+00> : vector<16xf32>
    %185 = vector.multi_reduction <add>, %182, %cst_67 [1] : vector<16x16xf32> to vector<16xf32>
    %186 = vector.shape_cast %185 : vector<16xf32> to vector<16x1xf32>
    %cst_68 = arith.constant 1.600000e+01 : f32
    %187 = vector.broadcast %cst_68 : f32 to vector<16x1xf32>
    %188 = arith.divf %186, %187 : vector<16x1xf32>
    %189 = vector.broadcast %188 : vector<16x1xf32> to vector<16x16xf32>
    %190 = arith.subf %182, %189 : vector<16x16xf32>
    %191 = arith.mulf %190, %190 : vector<16x16xf32>
    %cst_69 = arith.constant dense<0.000000e+00> : vector<16xf32>
    %192 = vector.multi_reduction <add>, %191, %cst_69 [1] : vector<16x16xf32> to vector<16xf32>
    %193 = vector.shape_cast %192 : vector<16xf32> to vector<16x1xf32>
    %cst_70 = arith.constant 1.600000e+01 : f32
    %194 = vector.broadcast %cst_70 : f32 to vector<16x1xf32>
    %195 = arith.divf %193, %194 : vector<16x1xf32>
    %196 = vector.broadcast %188 : vector<16x1xf32> to vector<16x16xf32>
    %197 = arith.subf %182, %196 : vector<16x16xf32>
    %cst_71 = arith.constant 9.99999996E-13 : f32
    %198 = vector.broadcast %cst_71 : f32 to vector<16x1xf32>
    %199 = arith.addf %195, %198 : vector<16x1xf32>
    %200 = math.rsqrt %199 : vector<16x1xf32>
    %201 = vector.broadcast %200 : vector<16x1xf32> to vector<16x16xf32>
    %202 = arith.mulf %197, %201 : vector<16x16xf32>
    %203 = vector.broadcast %183 : vector<1x16xf32> to vector<16x16xf32>
    %204 = arith.mulf %202, %203 : vector<16x16xf32>
    %205 = vector.broadcast %184 : vector<1x16xf32> to vector<16x16xf32>
    %206 = arith.addf %204, %205 : vector<16x16xf32>
    %c96 = arith.constant 96 : index
    %c0_72 = arith.constant 0 : index
    %207 = vector.load %arg4[%c96, %c0_72] : memref<240x128xf32, #tpu.memory_space<vmem>>, vector<32x64xf32>
    %cst_73 = arith.constant dense<0.000000e+00> : vector<16x64xf32>
    %208 = tpu.matmul %178, %207, %cst_73 {dimension_numbers = #tpu.dot_dimension_numbers<[1], [0], [0], [1], [0, 0, 1, 1], [], []>} : vector<16x32xf32>, vector<32x64xf32>, vector<16x64xf32> -> vector<16x64xf32>
    %c8 = arith.constant 8 : index
    %c0_74 = arith.constant 0 : index
    %209 = vector.load %arg5[%c8, %c0_74] : memref<16x128xf32, #tpu.memory_space<vmem>>, vector<1x64xf32>
    %210 = vector.broadcast %209 : vector<1x64xf32> to vector<16x64xf32>
    %211 = arith.addf %208, %210 : vector<16x64xf32>
    %cst_75 = arith.constant 5.000000e-01 : f32
    %212 = vector.broadcast %cst_75 : f32 to vector<16x64xf32>
    %213 = arith.mulf %211, %212 : vector<16x64xf32>
    %cst_76 = arith.constant 0.707106769 : f32
    %214 = vector.broadcast %cst_76 : f32 to vector<16x64xf32>
    %215 = arith.mulf %211, %214 : vector<16x64xf32>
    %216 = math.erf %215 : vector<16x64xf32>
    %cst_77 = arith.constant 1.000000e+00 : f32
    %217 = vector.broadcast %cst_77 : f32 to vector<16x64xf32>
    %218 = arith.addf %217, %216 : vector<16x64xf32>
    %219 = arith.mulf %213, %218 : vector<16x64xf32>
    %c128 = arith.constant 128 : index
    %c0_78 = arith.constant 0 : index
    %220 = vector.load %arg4[%c128, %c0_78] : memref<240x128xf32, #tpu.memory_space<vmem>>, vector<64x32xf32>
    %cst_79 = arith.constant dense<0.000000e+00> : vector<16x32xf32>
    %221 = tpu.matmul %219, %220, %cst_79 {dimension_numbers = #tpu.dot_dimension_numbers<[1], [0], [0], [1], [0, 0, 1, 1], [], []>} : vector<16x64xf32>, vector<64x32xf32>, vector<16x32xf32> -> vector<16x32xf32>
    %c9 = arith.constant 9 : index
    %c0_80 = arith.constant 0 : index
    %222 = vector.load %arg5[%c9, %c0_80] : memref<16x128xf32, #tpu.memory_space<vmem>>, vector<1x32xf32>
    %223 = vector.broadcast %222 : vector<1x32xf32> to vector<16x32xf32>
    %224 = arith.addf %221, %223 : vector<16x32xf32>
    %225 = arith.addf %224, %178 : vector<16x32xf32>
    %c10 = arith.constant 10 : index
    %c0_81 = arith.constant 0 : index
    %226 = vector.load %arg5[%c10, %c0_81] : memref<16x128xf32, #tpu.memory_space<vmem>>, vector<1x32xf32>
    %c11 = arith.constant 11 : index
    %c0_82 = arith.constant 0 : index
    %227 = vector.load %arg5[%c11, %c0_82] : memref<16x128xf32, #tpu.memory_space<vmem>>, vector<1x32xf32>
    %cst_83 = arith.constant dense<0.000000e+00> : vector<16xf32>
    %228 = vector.multi_reduction <add>, %225, %cst_83 [1] : vector<16x32xf32> to vector<16xf32>
    %229 = vector.shape_cast %228 : vector<16xf32> to vector<16x1xf32>
    %cst_84 = arith.constant 3.200000e+01 : f32
    %230 = vector.broadcast %cst_84 : f32 to vector<16x1xf32>
    %231 = arith.divf %229, %230 : vector<16x1xf32>
    %232 = vector.broadcast %231 : vector<16x1xf32> to vector<16x32xf32>
    %233 = arith.subf %225, %232 : vector<16x32xf32>
    %234 = arith.mulf %233, %233 : vector<16x32xf32>
    %cst_85 = arith.constant dense<0.000000e+00> : vector<16xf32>
    %235 = vector.multi_reduction <add>, %234, %cst_85 [1] : vector<16x32xf32> to vector<16xf32>
    %236 = vector.shape_cast %235 : vector<16xf32> to vector<16x1xf32>
    %cst_86 = arith.constant 3.200000e+01 : f32
    %237 = vector.broadcast %cst_86 : f32 to vector<16x1xf32>
    %238 = arith.divf %236, %237 : vector<16x1xf32>
    %239 = vector.broadcast %231 : vector<16x1xf32> to vector<16x32xf32>
    %240 = arith.subf %225, %239 : vector<16x32xf32>
    %cst_87 = arith.constant 9.99999996E-13 : f32
    %241 = vector.broadcast %cst_87 : f32 to vector<16x1xf32>
    %242 = arith.addf %238, %241 : vector<16x1xf32>
    %243 = math.rsqrt %242 : vector<16x1xf32>
    %244 = vector.broadcast %243 : vector<16x1xf32> to vector<16x32xf32>
    %245 = arith.mulf %240, %244 : vector<16x32xf32>
    %246 = vector.broadcast %226 : vector<1x32xf32> to vector<16x32xf32>
    %247 = arith.mulf %245, %246 : vector<16x32xf32>
    %248 = vector.broadcast %227 : vector<1x32xf32> to vector<16x32xf32>
    %249 = arith.addf %247, %248 : vector<16x32xf32>
    %c192 = arith.constant 192 : index
    %c0_88 = arith.constant 0 : index
    %250 = vector.load %arg4[%c192, %c0_88] : memref<240x128xf32, #tpu.memory_space<vmem>>, vector<16x32xf32>
    %cst_89 = arith.constant dense<0.000000e+00> : vector<16x32xf32>
    %251 = tpu.matmul %206, %250, %cst_89 {dimension_numbers = #tpu.dot_dimension_numbers<[1], [0], [0], [1], [0, 0, 1, 1], [], []>} : vector<16x16xf32>, vector<16x32xf32>, vector<16x32xf32> -> vector<16x32xf32>
    %c12 = arith.constant 12 : index
    %c0_90 = arith.constant 0 : index
    %252 = vector.load %arg5[%c12, %c0_90] : memref<16x128xf32, #tpu.memory_space<vmem>>, vector<1x32xf32>
    %253 = vector.broadcast %252 : vector<1x32xf32> to vector<16x32xf32>
    %254 = arith.addf %251, %253 : vector<16x32xf32>
    %cst_91 = arith.constant 5.000000e-01 : f32
    %255 = vector.broadcast %cst_91 : f32 to vector<16x32xf32>
    %256 = arith.mulf %254, %255 : vector<16x32xf32>
    %cst_92 = arith.constant 0.707106769 : f32
    %257 = vector.broadcast %cst_92 : f32 to vector<16x32xf32>
    %258 = arith.mulf %254, %257 : vector<16x32xf32>
    %259 = math.erf %258 : vector<16x32xf32>
    %cst_93 = arith.constant 1.000000e+00 : f32
    %260 = vector.broadcast %cst_93 : f32 to vector<16x32xf32>
    %261 = arith.addf %260, %259 : vector<16x32xf32>
    %262 = arith.mulf %256, %261 : vector<16x32xf32>
    %c208 = arith.constant 208 : index
    %c0_94 = arith.constant 0 : index
    %263 = vector.load %arg4[%c208, %c0_94] : memref<240x128xf32, #tpu.memory_space<vmem>>, vector<32x16xf32>
    %cst_95 = arith.constant dense<0.000000e+00> : vector<16x16xf32>
    %264 = tpu.matmul %262, %263, %cst_95 {dimension_numbers = #tpu.dot_dimension_numbers<[1], [0], [0], [1], [0, 0, 1, 1], [], []>} : vector<16x32xf32>, vector<32x16xf32>, vector<16x16xf32> -> vector<16x16xf32>
    %c13 = arith.constant 13 : index
    %c0_96 = arith.constant 0 : index
    %265 = vector.load %arg5[%c13, %c0_96] : memref<16x128xf32, #tpu.memory_space<vmem>>, vector<1x16xf32>
    %266 = vector.broadcast %265 : vector<1x16xf32> to vector<16x16xf32>
    %267 = arith.addf %264, %266 : vector<16x16xf32>
    %268 = arith.addf %267, %206 : vector<16x16xf32>
    %c14 = arith.constant 14 : index
    %c0_97 = arith.constant 0 : index
    %269 = vector.load %arg5[%c14, %c0_97] : memref<16x128xf32, #tpu.memory_space<vmem>>, vector<1x16xf32>
    %c15 = arith.constant 15 : index
    %c0_98 = arith.constant 0 : index
    %270 = vector.load %arg5[%c15, %c0_98] : memref<16x128xf32, #tpu.memory_space<vmem>>, vector<1x16xf32>
    %cst_99 = arith.constant dense<0.000000e+00> : vector<16xf32>
    %271 = vector.multi_reduction <add>, %268, %cst_99 [1] : vector<16x16xf32> to vector<16xf32>
    %272 = vector.shape_cast %271 : vector<16xf32> to vector<16x1xf32>
    %cst_100 = arith.constant 1.600000e+01 : f32
    %273 = vector.broadcast %cst_100 : f32 to vector<16x1xf32>
    %274 = arith.divf %272, %273 : vector<16x1xf32>
    %275 = vector.broadcast %274 : vector<16x1xf32> to vector<16x16xf32>
    %276 = arith.subf %268, %275 : vector<16x16xf32>
    %277 = arith.mulf %276, %276 : vector<16x16xf32>
    %cst_101 = arith.constant dense<0.000000e+00> : vector<16xf32>
    %278 = vector.multi_reduction <add>, %277, %cst_101 [1] : vector<16x16xf32> to vector<16xf32>
    %279 = vector.shape_cast %278 : vector<16xf32> to vector<16x1xf32>
    %cst_102 = arith.constant 1.600000e+01 : f32
    %280 = vector.broadcast %cst_102 : f32 to vector<16x1xf32>
    %281 = arith.divf %279, %280 : vector<16x1xf32>
    %282 = vector.broadcast %274 : vector<16x1xf32> to vector<16x16xf32>
    %283 = arith.subf %268, %282 : vector<16x16xf32>
    %cst_103 = arith.constant 9.99999996E-13 : f32
    %284 = vector.broadcast %cst_103 : f32 to vector<16x1xf32>
    %285 = arith.addf %281, %284 : vector<16x1xf32>
    %286 = math.rsqrt %285 : vector<16x1xf32>
    %287 = vector.broadcast %286 : vector<16x1xf32> to vector<16x16xf32>
    %288 = arith.mulf %283, %287 : vector<16x16xf32>
    %289 = vector.broadcast %269 : vector<1x16xf32> to vector<16x16xf32>
    %290 = arith.mulf %288, %289 : vector<16x16xf32>
    %291 = vector.broadcast %270 : vector<1x16xf32> to vector<16x16xf32>
    %292 = arith.addf %290, %291 : vector<16x16xf32>
    %c0_104 = arith.constant 0 : index
    %c0_105 = arith.constant 0 : index
    %293 = vector.load %arg6[%c0_104, %c0_105] : memref<16x48xf32, #tpu.memory_space<vmem>>, vector<16x32xf32>
    tpu.vector_store %arg6[%c0_104, %c0_105], %249 {strides = array<i32>} : memref<16x48xf32, #tpu.memory_space<vmem>>, vector<16x32xf32>,
    %c0_106 = arith.constant 0 : index
    %c32_107 = arith.constant 32 : index
    %294 = vector.load %arg6[%c0_106, %c32_107] : memref<16x48xf32, #tpu.memory_space<vmem>>, vector<16x16xf32>
    tpu.vector_store %arg6[%c0_106, %c32_107], %292 {strides = array<i32>} : memref<16x48xf32, #tpu.memory_space<vmem>>, vector<16x16xf32>,
    return
  }
  func.func @transform_0(%arg0: i32) -> (i32, i32) {
    %c0_i32 = arith.constant 0 : i32
    %c0_i32_0 = arith.constant 0 : i32
    %c0_i32_1 = arith.constant 0 : i32
    return %c0_i32, %c0_i32_0 : i32, i32
  }
  func.func @transform_1(%arg0: i32) -> (i32, i32) {
    %c0_i32 = arith.constant 0 : i32
    %c0_i32_0 = arith.constant 0 : i32
    %c0_i32_1 = arith.constant 0 : i32
    return %c0_i32, %c0_i32_0 : i32, i32
  }
  func.func @transform_2(%arg0: i32) -> (i32, i32) {
    %c0_i32 = arith.constant 0 : i32
    %c0_i32_0 = arith.constant 0 : i32
    %c0_i32_1 = arith.constant 0 : i32
    return %c0_i32, %c0_i32_0 : i32, i32
  }
  func.func @transform_3(%arg0: i32) -> (i32, i32) {
    %c0_i32 = arith.constant 0 : i32
    %c0_i32_0 = arith.constant 0 : i32
    %c0_i32_1 = arith.constant 0 : i32
    return %c0_i32, %c0_i32_0 : i32, i32
  }
  func.func @transform_4(%arg0: i32) -> (i32, i32) {
    %c0_i32 = arith.constant 0 : i32
    %c0_i32_0 = arith.constant 0 : i32
    %c0_i32_1 = arith.constant 0 : i32
    return %c0_i32, %c0_i32_0 : i32, i32
  }
  func.func @transform_5(%arg0: i32) -> (i32, i32) {
    %c0_i32 = arith.constant 0 : i32
    %c0_i32_0 = arith.constant 0 : i32
    %c0_i32_1 = arith.constant 0 : i32
    return %c0_i32, %c0_i32_0 : i32, i32
  }
}

</mosaic_0001>

<llo_original>
// kernel: tpu_custom_call.1
$region0: #{tpu_custom_call.1}
  #allocation0 [shape = 'u32[]', space=smem, size = 0x4, offset = 0x4, fixed_abs, tag = 'smem constant byte address 0x4 - core index']
  #allocation1 [shape = 'u32[144,128]{1,0:T(1,128)}', space=vmem, size = 0x12000, scoped, tag = 'internal scratch']
  %s0 = inlined_call_operand.hbm [shape: f32[16,32], index: 0, kind: input, shape index: {}]
  %s1 = inlined_call_operand.hbm [shape: f32[16,16], index: 1, kind: input, shape index: {}]
  %s2 = inlined_call_operand.hbm [shape: f32[16,16], index: 2, kind: input, shape index: {}]
  %s3 = inlined_call_operand.hbm [shape: f32[240,128], index: 3, kind: input, shape index: {}]
  %s4 = inlined_call_operand.hbm [shape: f32[16,128], index: 4, kind: input, shape index: {}]
  %s5 = inlined_call_operand.hbm [shape: f32[16,48], index: 5, kind: output, shape index: {}]
  %s6 = sld [smem:[#allocation0]]
  $region50: #{tpu_custom_call.1} parent=0
    _
  %s8 = ssub.s32 1, %s6
  %s9 = scalar_select 0, %s8, %s6
  $region1: #{tpu_custom_call.1} parent=0
    #allocation2 [shape = 'u8[8192]{0}', space=vmem, size = 0x2000, scoped, tag = 'input window, operand 0, single buffered']
    #allocation3 [shape = 's32[1]{0}', space=sflag, size = 0x4, scoped, tag = 'scoped memory for tpu_custom_call.1']
    #allocation4 [shape = 's32[1]{0}', space=sflag, size = 0x4, scoped, tag = 'scoped memory for tpu_custom_call.1']
    #allocation5 [shape = 'u8[8192]{0}', space=vmem, size = 0x2000, scoped, tag = 'input window, operand 1, single buffered']
    #allocation6 [shape = 's32[1]{0}', space=sflag, size = 0x4, scoped, tag = 'scoped memory for tpu_custom_call.1']
    #allocation7 [shape = 'u8[8192]{0}', space=vmem, size = 0x2000, scoped, tag = 'input window, operand 2, single buffered']
    #allocation8 [shape = 'u8[122880]{0}', space=vmem, size = 0x1e000, scoped, tag = 'input window, operand 3, single buffered']
    #allocation9 [shape = 's32[1]{0}', space=sflag, size = 0x4, scoped, tag = 'scoped memory for tpu_custom_call.1']
    #allocation10 [shape = 'u8[8192]{0}', space=vmem, size = 0x2000, scoped, tag = 'input window, operand 4, single buffered']
    #allocation11 [shape = 'u8[8192]{0}', space=vmem, size = 0x2000, scoped, tag = 'output window, operand 0, single buffered']
    %10 = vsyncpa [#allocation3], 0
    %11 = vsyncpa [#allocation6], 0
    %12 = vsyncpa [#allocation9], 0
    %13 = vsyncpa [#allocation4], 0
    // Predicated region
    $region2: #{tpu_custom_call.1} parent=1 // pred_check
      _
    $region3: #{tpu_custom_call.1} parent=1 // pred_check_branch
      %15 = sbr.rel (0) target = $region5
    $region4: #{tpu_custom_call.1} parent=1 // pred_region
      %s17 = ssub.s32 256, 256
      %18 = vsyncadd [#allocation3], %s17
      %s19 = sshll.u32 [#allocation2], 4
      %s20 = int_to_ptr.vmem [resolvable:$true] %s19
      %25 = dma.hbm_to_vmem [thread:$0]  %s0, 256, %s20, [#allocation3], 128, 128, 8
    $region5: #{tpu_custom_call.1} parent=1 // pred_fallthru
      _
    // Predicated region
    $region6: #{tpu_custom_call.1} parent=1 // pred_check
      _
    $region7: #{tpu_custom_call.1} parent=1 // pred_check_branch
      %27 = sbr.rel (0) target = $region9
    $region8: #{tpu_custom_call.1} parent=1 // pred_region
      %s29 = ssub.s32 256, 256
      %30 = vsyncadd [#allocation6], %s29
      %s31 = sshll.u32 [#allocation5], 4
      %s32 = int_to_ptr.vmem [resolvable:$true] %s31
      %37 = dma.hbm_to_vmem [thread:$0]  %s1, 256, %s32, [#allocation6], 128, 128, 8
    $region9: #{tpu_custom_call.1} parent=1 // pred_fallthru
      _
    // Predicated region
    $region10: #{tpu_custom_call.1} parent=1 // pred_check
      _
    $region11: #{tpu_custom_call.1} parent=1 // pred_check_branch
      %39 = sbr.rel (0) target = $region13
    $region12: #{tpu_custom_call.1} parent=1 // pred_region
      %s41 = ssub.s32 256, 256
      %42 = vsyncadd [#allocation6], %s41
      %s43 = sshll.u32 [#allocation7], 4
      %s44 = int_to_ptr.vmem [resolvable:$true] %s43
      %49 = dma.hbm_to_vmem [thread:$0]  %s2, 256, %s44, [#allocation6], 128, 128, 8
    $region13: #{tpu_custom_call.1} parent=1 // pred_fallthru
      _
    // Predicated region
    $region14: #{tpu_custom_call.1} parent=1 // pred_check
      _
    $region15: #{tpu_custom_call.1} parent=1 // pred_check_branch
      %51 = sbr.rel (0) target = $region17
    $region16: #{tpu_custom_call.1} parent=1 // pred_region
      %s53 = ssub.s32 3840, 3840
      %54 = vsyncadd [#allocation9], %s53
      %s55 = sshll.u32 [#allocation8], 4
      %s56 = int_to_ptr.vmem [resolvable:$true] %s55
      %61 = dma.hbm_to_vmem [thread:$0]  %s3, 3840, %s56, [#allocation9], 128, 128, 8
    $region17: #{tpu_custom_call.1} parent=1 // pred_fallthru
      _
    // Predicated region
    $region18: #{tpu_custom_call.1} parent=1 // pred_check
      _
    $region19: #{tpu_custom_call.1} parent=1 // pred_check_branch
      %63 = sbr.rel (0) target = $region21
    $region20: #{tpu_custom_call.1} parent=1 // pred_region
      %s65 = ssub.s32 256, 256
      %66 = vsyncadd [#allocation9], %s65
      %s67 = sshll.u32 [#allocation10], 4
      %s68 = int_to_ptr.vmem [resolvable:$true] %s67
      %73 = dma.hbm_to_vmem [thread:$0]  %s4, 256, %s68, [#allocation9], 128, 128, 8
    $region21: #{tpu_custom_call.1} parent=1 // pred_fallthru
      _
    // Predicated region
    $region22: #{tpu_custom_call.1} parent=1 // pred_check
      _
    $region23: #{tpu_custom_call.1} parent=1 // pred_check_branch
      %75 = sbr.rel (0) target = $region25
    $region24: #{tpu_custom_call.1} parent=1 // pred_region
      %76 = dma.done [#allocation3], 256
    $region25: #{tpu_custom_call.1} parent=1 // pred_fallthru
      _
    // Predicated region
    $region26: #{tpu_custom_call.1} parent=1 // pred_check
      _
    $region27: #{tpu_custom_call.1} parent=1 // pred_check_branch
      %78 = sbr.rel (0) target = $region29
    $region28: #{tpu_custom_call.1} parent=1 // pred_region
      %79 = dma.done [#allocation6], 256
    $region29: #{tpu_custom_call.1} parent=1 // pred_fallthru
      _
    // Predicated region
    $region30: #{tpu_custom_call.1} parent=1 // pred_check
      _
    $region31: #{tpu_custom_call.1} parent=1 // pred_check_branch
      %81 = sbr.rel (0) target = $region33
    $region32: #{tpu_custom_call.1} parent=1 // pred_region
      %82 = dma.done [#allocation6], 256
    $region33: #{tpu_custom_call.1} parent=1 // pred_fallthru
      _
    // Predicated region
    $region34: #{tpu_custom_call.1} parent=1 // pred_check
      _
    $region35: #{tpu_custom_call.1} parent=1 // pred_check_branch
      %84 = sbr.rel (0) target = $region37
    $region36: #{tpu_custom_call.1} parent=1 // pred_region
      %85 = dma.done [#allocation9], 3840
    $region37: #{tpu_custom_call.1} parent=1 // pred_fallthru
      _
    // Predicated region
    $region38: #{tpu_custom_call.1} parent=1 // pred_check
      _
    $region39: #{tpu_custom_call.1} parent=1 // pred_check_branch
      %87 = sbr.rel (0) target = $region41
    $region40: #{tpu_custom_call.1} parent=1 // pred_region
      %88 = dma.done [#allocation9], 256
    $region41: #{tpu_custom_call.1} parent=1 // pred_fallthru
      _
    %v89 = vld [vmem:[#allocation2] sm:$0xff]
    %v90 = vld [vmem:[#allocation2 + $0x8] sm:$0xff]
    %v91 = vld [vmem:[#allocation5] sm:$0xff]
    %v92 = vld [vmem:[#allocation5 + $0x8] sm:$0xff]
    %v93 = vld [vmem:[#allocation7] sm:$0xff]
    %v94 = vld [vmem:[#allocation7 + $0x8] sm:$0xff]
    %v95 = vld [vmem:[#allocation8] sm:$0xff]
    %v96 = vld [vmem:[#allocation8 + $0x8] sm:$0xff]
    %v97 = vld [vmem:[#allocation8 + $0x10] sm:$0xff]
    %v98 = vld [vmem:[#allocation8 + $0x18] sm:$0xff]
    %v99 = vld [vmem:[#allocation10] sm:$0x1]
    %v100 = vlaneseq
    %v101 = vshrl.u32 %v100, 7
    %v102 = vsub.s32 0, %v101
    %v103 = vrot.slane %v99, %v102
    %vm104 = vcmask 261120
    %v106 = vsel %vm104, %v89, 0
    %v109 = vsel %vm104, %v90, 0
    %111 = vmatprep.subr.mxu0 0.0
    %112 = vmatpush1.msra.mxu0 0.0
    %113 = vmatprep.subr.mxu0 0.0
    %114 = vmatpush1.msra.mxu0 0.0
    %115 = vmatprep.subr.mxu0 0.0
    %116 = vmatpush1.msra.mxu0 0.0
    %117 = vmatprep.subr.mxu0 0.0
    %118 = vmatpush1.msra.mxu0 0.0
    %119 = vmatprep.subr.mxu0 0.0
    %120 = vmatpush1.msra.mxu0 0.0
    %121 = vmatprep.subr.mxu0 0.0
    %122 = vmatpush1.msra.mxu0 0.0
    %123 = vmatprep.subr.mxu0 0.0
    %124 = vmatpush1.msra.mxu0 0.0
    %125 = vmatprep.subr.mxu0 0.0
    %126 = vmatpush1.msra.mxu0 0.0
    %127 = vmatprep.subr.mxu0 0.0
    %128 = vmatpush1.msra.mxu0 0.0
    %129 = vmatprep.subr.mxu0 0.0
    %130 = vmatpush1.msra.mxu0 0.0
    %131 = vmatprep.subr.mxu0 0.0
    %132 = vmatpush1.msra.mxu0 0.0
    %133 = vmatprep.subr.mxu0 0.0
    %134 = vmatpush1.msra.mxu0 0.0
    %135 = vmatprep.subr.mxu0 0.0
    %136 = vmatpush1.msra.mxu0 %v98
    %137 = vmatprep.subr.mxu0 0.0
    %138 = vmatpush1.msra.mxu0 %v97
    %139 = vmatprep.subr.mxu0 0.0
    %140 = vmatpush1.msra.mxu0 %v96
    %141 = vmatprep.subr.mxu0 0.0
    %142 = vmatpush1.msra.mxu0 %v95
    %143 = vmatprep.subr.mxu0 0.0
    %144 = vmatpush2.msra.mxu0 0.0
    %145 = vmatprep.subr.mxu0 0.0
    %146 = vmatpush2.msra.mxu0 0.0
    %147 = vmatprep.subr.mxu0 0.0
    %148 = vmatpush2.msra.mxu0 0.0
    %149 = vmatprep.subr.mxu0 0.0
    %150 = vmatpush2.msra.mxu0 0.0
    %151 = vmatprep.subr.mxu0 0.0
    %152 = vmatpush2.msra.mxu0 0.0
    %153 = vmatprep.subr.mxu0 0.0
    %154 = vmatpush2.msra.mxu0 0.0
    %155 = vmatprep.subr.mxu0 0.0
    %156 = vmatpush2.msra.mxu0 0.0
    %157 = vmatprep.subr.mxu0 0.0
    %158 = vmatpush2.msra.mxu0 0.0
    %159 = vmatprep.subr.mxu0 0.0
    %160 = vmatpush2.msra.mxu0 0.0
    %161 = vmatprep.subr.mxu0 0.0
    %162 = vmatpush2.msra.mxu0 0.0
    %163 = vmatprep.subr.mxu0 0.0
    %164 = vmatpush2.msra.mxu0 0.0
    %165 = vmatprep.subr.mxu0 0.0
    %166 = vmatpush2.msra.mxu0 0.0
    %167 = vmatprep.subr.mxu0 0.0
    %168 = vmatpush2.msra.mxu0 0.0
    %169 = vmatprep.subr.mxu0 0.0
    %170 = vmatpush2.msra.mxu0 0.0
    %171 = vmatprep.subr.mxu0 0.0
    %172 = vmatpush2.msra.mxu0 0.0
    %173 = vmatprep.subr.mxu0 0.0
    %174 = vmatpush2.msra.mxu0 0.0
    %175 = vmatprep.mubr.f32.mxu0 0.0
    %176 = vmatmul.mubr.f32.gmra.mxu0 %v106
    %v177 = vpop.f32.mrf.mxu0
    %v178 = vadd.f32 %v103, %v177
    %v179 = vpop.f32.mrf.mxu0
    %180 = vmatprep.mubr.f32.mxu0 0.0
    %181 = vmatmul.mubr.f32.gmra.mxu0 %v109
    %v182 = vpop.f32.mrf.mxu0
    %v183 = vadd.f32 %v103, %v182
    %v184 = vpop.f32.mrf.mxu0
    %185 = vdwg.mxu0
    %v186 = vld [vmem:[#allocation8 + $0x20] sm:$0xff]
    %v187 = vld [vmem:[#allocation8 + $0x28] sm:$0xff]
    %v188 = vld [vmem:[#allocation10 + $0x1] sm:$0x1]
    %v189 = vlaneseq
    %v190 = vshrl.u32 %v189, 7
    %v191 = vsub.s32 0, %v190
    %v192 = vrot.slane %v188, %v191
    %vm193 = vcmask 130048
    %v195 = vsel %vm193, %v91, 0
    %v198 = vsel %vm193, %v92, 0
    %200 = vmatprep.subr.mxu0 0.0
    %201 = vmatpush1.msra.mxu0 0.0
    %202 = vmatprep.subr.mxu0 0.0
    %203 = vmatpush1.msra.mxu0 0.0
    %204 = vmatprep.subr.mxu0 0.0
    %205 = vmatpush1.msra.mxu0 0.0
    %206 = vmatprep.subr.mxu0 0.0
    %207 = vmatpush1.msra.mxu0 0.0
    %208 = vmatprep.subr.mxu0 0.0
    %209 = vmatpush1.msra.mxu0 0.0
    %210 = vmatprep.subr.mxu0 0.0
    %211 = vmatpush1.msra.mxu0 0.0
    %212 = vmatprep.subr.mxu0 0.0
    %213 = vmatpush1.msra.mxu0 0.0
    %214 = vmatprep.subr.mxu0 0.0
    %215 = vmatpush1.msra.mxu0 0.0
    %216 = vmatprep.subr.mxu0 0.0
    %217 = vmatpush1.msra.mxu0 0.0
    %218 = vmatprep.subr.mxu0 0.0
    %219 = vmatpush1.msra.mxu0 0.0
    %220 = vmatprep.subr.mxu0 0.0
    %221 = vmatpush1.msra.mxu0 0.0
    %222 = vmatprep.subr.mxu0 0.0
    %223 = vmatpush1.msra.mxu0 0.0
    %224 = vmatprep.subr.mxu0 0.0
    %225 = vmatpush1.msra.mxu0 0.0
    %226 = vmatprep.subr.mxu0 0.0
    %227 = vmatpush1.msra.mxu0 0.0
    %228 = vmatprep.subr.mxu0 0.0
    %229 = vmatpush1.msra.mxu0 %v187
    %230 = vmatprep.subr.mxu0 0.0
    %231 = vmatpush1.msra.mxu0 %v186
    %232 = vmatprep.subr.mxu0 0.0
    %233 = vmatpush2.msra.mxu0 0.0
    %234 = vmatprep.subr.mxu0 0.0
    %235 = vmatpush2.msra.mxu0 0.0
    %236 = vmatprep.subr.mxu0 0.0
    %237 = vmatpush2.msra.mxu0 0.0
    %238 = vmatprep.subr.mxu0 0.0
    %239 = vmatpush2.msra.mxu0 0.0
    %240 = vmatprep.subr.mxu0 0.0
    %241 = vmatpush2.msra.mxu0 0.0
    %242 = vmatprep.subr.mxu0 0.0
    %243 = vmatpush2.msra.mxu0 0.0
    %244 = vmatprep.subr.mxu0 0.0
    %245 = vmatpush2.msra.mxu0 0.0
    %246 = vmatprep.subr.mxu0 0.0
    %247 = vmatpush2.msra.mxu0 0.0
    %248 = vmatprep.subr.mxu0 0.0
    %249 = vmatpush2.msra.mxu0 0.0
    %250 = vmatprep.subr.mxu0 0.0
    %251 = vmatpush2.msra.mxu0 0.0
    %252 = vmatprep.subr.mxu0 0.0
    %253 = vmatpush2.msra.mxu0 0.0
    %254 = vmatprep.subr.mxu0 0.0
    %255 = vmatpush2.msra.mxu0 0.0
    %256 = vmatprep.subr.mxu0 0.0
    %257 = vmatpush2.msra.mxu0 0.0
    %258 = vmatprep.subr.mxu0 0.0
    %259 = vmatpush2.msra.mxu0 0.0
    %260 = vmatprep.subr.mxu0 0.0
    %261 = vmatpush2.msra.mxu0 0.0
    %262 = vmatprep.subr.mxu0 0.0
    %263 = vmatpush2.msra.mxu0 0.0
    %264 = vmatprep.mubr.f32.mxu0 0.0
    %265 = vmatmul.mubr.f32.gmra.mxu0 %v195
    %v266 = vpop.f32.mrf.mxu0
    %v267 = vadd.f32 %v192, %v266
    %v268 = vpop.f32.mrf.mxu0
    %269 = vmatprep.mubr.f32.mxu0 0.0
    %270 = vmatmul.mubr.f32.gmra.mxu0 %v198
    %v271 = vpop.f32.mrf.mxu0
    %v272 = vadd.f32 %v192, %v271
    %v273 = vpop.f32.mrf.mxu0
    %274 = vdwg.mxu0
    %v275 = vld [vmem:[#allocation8 + $0x30] sm:$0xff]
    %v276 = vld [vmem:[#allocation8 + $0x38] sm:$0xff]
    %v277 = vld [vmem:[#allocation8 + $0x40] sm:$0xff]
    %v278 = vld [vmem:[#allocation8 + $0x48] sm:$0xff]
    %v279 = vld [vmem:[#allocation8 + $0x50] sm:$0xff]
    %v280 = vld [vmem:[#allocation8 + $0x58] sm:$0xff]
    %283 = vrot.lane.b32.xlu0 %v178, 96
    %v284 = vpop.permute.xlu0 %283
    %285 = vrot.lane.b32.xlu0 %v183, 96
    %v286 = vpop.permute.xlu0 %285
    %vm287 = vcmask 64512
    %v288 = vsel %vm287, %v178, 0
    %v290 = vsel %vm287, %v183, 0
    %v292 = vsel %vm287, %v284, 0
    %v294 = vsel %vm287, %v286, 0
    %296 = vmatprep.subr.mxu0 0.0
    %297 = vmatpush1.xpose.msra.mxu0 0.0
    %298 = vmatprep.subr.mxu0 0.0
    %299 = vmatpush1.xpose.msra.mxu0 0.0
    %300 = vmatprep.subr.mxu0 0.0
    %301 = vmatpush1.xpose.msra.mxu0 0.0
    %302 = vmatprep.subr.mxu0 0.0
    %303 = vmatpush1.xpose.msra.mxu0 0.0
    %304 = vmatprep.subr.mxu0 0.0
    %305 = vmatpush1.xpose.msra.mxu0 0.0
    %306 = vmatprep.subr.mxu0 0.0
    %307 = vmatpush1.xpose.msra.mxu0 0.0
    %308 = vmatprep.subr.mxu0 0.0
    %309 = vmatpush1.xpose.msra.mxu0 0.0
    %310 = vmatprep.subr.mxu0 0.0
    %311 = vmatpush1.xpose.msra.mxu0 0.0
    %312 = vmatprep.subr.mxu0 0.0
    %313 = vmatpush1.xpose.msra.mxu0 0.0
    %314 = vmatprep.subr.mxu0 0.0
    %315 = vmatpush1.xpose.msra.mxu0 0.0
    %316 = vmatprep.subr.mxu0 0.0
    %317 = vmatpush1.xpose.msra.mxu0 0.0
    %318 = vmatprep.subr.mxu0 0.0
    %319 = vmatpush1.xpose.msra.mxu0 0.0
    %320 = vmatprep.subr.mxu0 0.0
    %321 = vmatpush1.xpose.msra.mxu0 0.0
    %322 = vmatprep.subr.mxu0 0.0
    %323 = vmatpush1.xpose.msra.mxu0 0.0
    %324 = vmatprep.subr.mxu0 0.0
    %325 = vmatpush1.xpose.msra.mxu0 %v294
    %326 = vmatprep.subr.mxu0 0.0
    %327 = vmatpush1.xpose.msra.mxu0 %v292
    %328 = vmatprep.subr.mxu0 0.0
    %329 = vmatpush2.xpose.msra.mxu0 0.0
    %330 = vmatprep.subr.mxu0 0.0
    %331 = vmatpush2.xpose.msra.mxu0 0.0
    %332 = vmatprep.subr.mxu0 0.0
    %333 = vmatpush2.xpose.msra.mxu0 0.0
    %334 = vmatprep.subr.mxu0 0.0
    %335 = vmatpush2.xpose.msra.mxu0 0.0
    %336 = vmatprep.subr.mxu0 0.0
    %337 = vmatpush2.xpose.msra.mxu0 0.0
    %338 = vmatprep.subr.mxu0 0.0
    %339 = vmatpush2.xpose.msra.mxu0 0.0
    %340 = vmatprep.subr.mxu0 0.0
    %341 = vmatpush2.xpose.msra.mxu0 0.0
    %342 = vmatprep.subr.mxu0 0.0
    %343 = vmatpush2.xpose.msra.mxu0 0.0
    %344 = vmatprep.subr.mxu0 0.0
    %345 = vmatpush2.xpose.msra.mxu0 0.0
    %346 = vmatprep.subr.mxu0 0.0
    %347 = vmatpush2.xpose.msra.mxu0 0.0
    %348 = vmatprep.subr.mxu0 0.0
    %349 = vmatpush2.xpose.msra.mxu0 0.0
    %350 = vmatprep.subr.mxu0 0.0
    %351 = vmatpush2.xpose.msra.mxu0 0.0
    %352 = vmatprep.subr.mxu0 0.0
    %353 = vmatpush2.xpose.msra.mxu0 0.0
    %354 = vmatprep.subr.mxu0 0.0
    %355 = vmatpush2.xpose.msra.mxu0 0.0
    %356 = vmatprep.subr.mxu0 0.0
    %357 = vmatpush2.xpose.msra.mxu0 0.0
    %358 = vmatprep.subr.mxu0 0.0
    %359 = vmatpush2.xpose.msra.mxu0 0.0
    %360 = vmatprep.mubr.f32.mxu0 0.0
    %361 = vmatmul.mubr.f32.gmra.mxu0 %v288
    %v362 = vpop.f32.mrf.mxu0
    %v363 = vadd.f32 0.0, %v362
    %v364 = vpop.f32.mrf.mxu0
    %365 = vmatprep.mubr.f32.mxu0 0.0
    %366 = vmatmul.mubr.f32.gmra.mxu0 %v290
    %v367 = vpop.f32.mrf.mxu0
    %v368 = vadd.f32 0.0, %v367
    %v369 = vpop.f32.mrf.mxu0
    %370 = vdwg.mxu0
    %v371 = vmul.f32 %v363, 0.35355338
    %v372 = vmul.f32 %v368, 0.35355338
    %375 = vrot.lane.b32.xlu0 %v267, 112
    %v376 = vpop.permute.xlu0 %375
    %377 = vrot.lane.b32.xlu0 %v272, 112
    %v378 = vpop.permute.xlu0 %377
    %vm379 = vcmask 31744
    %v380 = vsel %vm379, %v267, 0
    %v382 = vsel %vm379, %v272, 0
    %v384 = vsel %vm379, %v376, 0
    %v386 = vsel %vm379, %v378, 0
    %388 = vmatprep.subr.mxu0 0.0
    %389 = vmatpush1.xpose.msra.mxu0 0.0
    %390 = vmatprep.subr.mxu0 0.0
    %391 = vmatpush1.xpose.msra.mxu0 0.0
    %392 = vmatprep.subr.mxu0 0.0
    %393 = vmatpush1.xpose.msra.mxu0 0.0
    %394 = vmatprep.subr.mxu0 0.0
    %395 = vmatpush1.xpose.msra.mxu0 0.0
    %396 = vmatprep.subr.mxu0 0.0
    %397 = vmatpush1.xpose.msra.mxu0 0.0
    %398 = vmatprep.subr.mxu0 0.0
    %399 = vmatpush1.xpose.msra.mxu0 0.0
    %400 = vmatprep.subr.mxu0 0.0
    %401 = vmatpush1.xpose.msra.mxu0 0.0
    %402 = vmatprep.subr.mxu0 0.0
    %403 = vmatpush1.xpose.msra.mxu0 0.0
    %404 = vmatprep.subr.mxu0 0.0
    %405 = vmatpush1.xpose.msra.mxu0 0.0
    %406 = vmatprep.subr.mxu0 0.0
    %407 = vmatpush1.xpose.msra.mxu0 0.0
    %408 = vmatprep.subr.mxu0 0.0
    %409 = vmatpush1.xpose.msra.mxu0 0.0
    %410 = vmatprep.subr.mxu0 0.0
    %411 = vmatpush1.xpose.msra.mxu0 0.0
    %412 = vmatprep.subr.mxu0 0.0
    %413 = vmatpush1.xpose.msra.mxu0 0.0
    %414 = vmatprep.subr.mxu0 0.0
    %415 = vmatpush1.xpose.msra.mxu0 0.0
    %416 = vmatprep.subr.mxu0 0.0
    %417 = vmatpush1.xpose.msra.mxu0 %v386
    %418 = vmatprep.subr.mxu0 0.0
    %419 = vmatpush1.xpose.msra.mxu0 %v384
    %420 = vmatprep.subr.mxu0 0.0
    %421 = vmatpush2.xpose.msra.mxu0 0.0
    %422 = vmatprep.subr.mxu0 0.0
    %423 = vmatpush2.xpose.msra.mxu0 0.0
    %424 = vmatprep.subr.mxu0 0.0
    %425 = vmatpush2.xpose.msra.mxu0 0.0
    %426 = vmatprep.subr.mxu0 0.0
    %427 = vmatpush2.xpose.msra.mxu0 0.0
    %428 = vmatprep.subr.mxu0 0.0
    %429 = vmatpush2.xpose.msra.mxu0 0.0
    %430 = vmatprep.subr.mxu0 0.0
    %431 = vmatpush2.xpose.msra.mxu0 0.0
    %432 = vmatprep.subr.mxu0 0.0
    %433 = vmatpush2.xpose.msra.mxu0 0.0
    %434 = vmatprep.subr.mxu0 0.0
    %435 = vmatpush2.xpose.msra.mxu0 0.0
    %436 = vmatprep.subr.mxu0 0.0
    %437 = vmatpush2.xpose.msra.mxu0 0.0
    %438 = vmatprep.subr.mxu0 0.0
    %439 = vmatpush2.xpose.msra.mxu0 0.0
    %440 = vmatprep.subr.mxu0 0.0
    %441 = vmatpush2.xpose.msra.mxu0 0.0
    %442 = vmatprep.subr.mxu0 0.0
    %443 = vmatpush2.xpose.msra.mxu0 0.0
    %444 = vmatprep.subr.mxu0 0.0
    %445 = vmatpush2.xpose.msra.mxu0 0.0
    %446 = vmatprep.subr.mxu0 0.0
    %447 = vmatpush2.xpose.msra.mxu0 0.0
    %448 = vmatprep.subr.mxu0 0.0
    %449 = vmatpush2.xpose.msra.mxu0 0.0
    %450 = vmatprep.subr.mxu0 0.0
    %451 = vmatpush2.xpose.msra.mxu0 0.0
    %452 = vmatprep.mubr.f32.mxu0 0.0
    %453 = vmatmul.mubr.f32.gmra.mxu0 %v380
    %v454 = vpop.f32.mrf.mxu0
    %v455 = vadd.f32 0.0, %v454
    %v456 = vpop.f32.mrf.mxu0
    %457 = vmatprep.mubr.f32.mxu0 0.0
    %458 = vmatmul.mubr.f32.gmra.mxu0 %v382
    %v459 = vpop.f32.mrf.mxu0
    %v460 = vadd.f32 0.0, %v459
    %v461 = vpop.f32.mrf.mxu0
    %462 = vdwg.mxu0
    %v463 = vmul.f32 %v455, 0.5
    %v464 = vmul.f32 %v460, 0.5
    %v465 = vadd.f32 %v371, %v463
    %v466 = vadd.f32 %v372, %v464
    %v467 = vadd.f32 %v465, %v93
    %v468 = vadd.f32 %v466, %v94
    %v469 = vsel %vm193, %v467, -inf
    %470 = vmax.xlane.f32.xlu0 %v469
    %v471 = vpop.xlane.xlu0 %470
    %v472 = vsel %vm193, %v468, -inf
    %473 = vmax.xlane.f32.xlu0 %v472
    %v474 = vpop.xlane.xlu0 %473
    %v475 = vsub.f32 %v467, %v471
    %v476 = vsub.f32 %v468, %v474
    %v477 = vmul.f32 %v475, 1.442695
    %v478 = vpow.pop %v477
    %v479 = vmul.f32 %v476, 1.442695
    %v480 = vpow.pop %v479
    %v481 = vsel %vm193, %v478, 0.0
    %482 = vadd.xlane.f32.xlu0 %v481
    %v483 = vpop.xlane.xlu0 %482
    %v484 = vsel %vm193, %v480, 0.0
    %485 = vadd.xlane.f32.xlu0 %v484
    %v486 = vpop.xlane.xlu0 %485
    %v487 = vrcp.pop %v483
    %v488 = vrcp.pop %v486
    %v489 = vmul.f32 %v478, %v487
    %v490 = vmul.f32 %v480, %v488
    %491 = vrot.lane.b32.xlu0 %v178, 64
    %v492 = vpop.permute.xlu0 %491
    %493 = vrot.lane.b32.xlu0 %v183, 64
    %v494 = vpop.permute.xlu0 %493
    %v498 = vsel %vm193, %v489, 0
    %v501 = vsel %vm193, %v490, 0
    %503 = vmatprep.subr.mxu0 0.0
    %504 = vmatpush1.msra.mxu0 0.0
    %505 = vmatprep.subr.mxu0 0.0
    %506 = vmatpush1.msra.mxu0 0.0
    %507 = vmatprep.subr.mxu0 0.0
    %508 = vmatpush1.msra.mxu0 0.0
    %509 = vmatprep.subr.mxu0 0.0
    %510 = vmatpush1.msra.mxu0 0.0
    %511 = vmatprep.subr.mxu0 0.0
    %512 = vmatpush1.msra.mxu0 0.0
    %513 = vmatprep.subr.mxu0 0.0
    %514 = vmatpush1.msra.mxu0 0.0
    %515 = vmatprep.subr.mxu0 0.0
    %516 = vmatpush1.msra.mxu0 0.0
    %517 = vmatprep.subr.mxu0 0.0
    %518 = vmatpush1.msra.mxu0 0.0
    %519 = vmatprep.subr.mxu0 0.0
    %520 = vmatpush1.msra.mxu0 0.0
    %521 = vmatprep.subr.mxu0 0.0
    %522 = vmatpush1.msra.mxu0 0.0
    %523 = vmatprep.subr.mxu0 0.0
    %524 = vmatpush1.msra.mxu0 0.0
    %525 = vmatprep.subr.mxu0 0.0
    %526 = vmatpush1.msra.mxu0 0.0
    %527 = vmatprep.subr.mxu0 0.0
    %528 = vmatpush1.msra.mxu0 0.0
    %529 = vmatprep.subr.mxu0 0.0
    %530 = vmatpush1.msra.mxu0 0.0
    %531 = vmatprep.subr.mxu0 0.0
    %532 = vmatpush1.msra.mxu0 %v494
    %533 = vmatprep.subr.mxu0 0.0
    %534 = vmatpush1.msra.mxu0 %v492
    %535 = vmatprep.subr.mxu0 0.0
    %536 = vmatpush2.msra.mxu0 0.0
    %537 = vmatprep.subr.mxu0 0.0
    %538 = vmatpush2.msra.mxu0 0.0
    %539 = vmatprep.subr.mxu0 0.0
    %540 = vmatpush2.msra.mxu0 0.0
    %541 = vmatprep.subr.mxu0 0.0
    %542 = vmatpush2.msra.mxu0 0.0
    %543 = vmatprep.subr.mxu0 0.0
    %544 = vmatpush2.msra.mxu0 0.0
    %545 = vmatprep.subr.mxu0 0.0
    %546 = vmatpush2.msra.mxu0 0.0
    %547 = vmatprep.subr.mxu0 0.0
    %548 = vmatpush2.msra.mxu0 0.0
    %549 = vmatprep.subr.mxu0 0.0
    %550 = vmatpush2.msra.mxu0 0.0
    %551 = vmatprep.subr.mxu0 0.0
    %552 = vmatpush2.msra.mxu0 0.0
    %553 = vmatprep.subr.mxu0 0.0
    %554 = vmatpush2.msra.mxu0 0.0
    %555 = vmatprep.subr.mxu0 0.0
    %556 = vmatpush2.msra.mxu0 0.0
    %557 = vmatprep.subr.mxu0 0.0
    %558 = vmatpush2.msra.mxu0 0.0
    %559 = vmatprep.subr.mxu0 0.0
    %560 = vmatpush2.msra.mxu0 0.0
    %561 = vmatprep.subr.mxu0 0.0
    %562 = vmatpush2.msra.mxu0 0.0
    %563 = vmatprep.subr.mxu0 0.0
    %564 = vmatpush2.msra.mxu0 0.0
    %565 = vmatprep.subr.mxu0 0.0
    %566 = vmatpush2.msra.mxu0 0.0
    %567 = vmatprep.mubr.f32.mxu0 0.0
    %568 = vmatmul.mubr.f32.gmra.mxu0 %v498
    %v569 = vpop.f32.mrf.mxu0
    %v570 = vadd.f32 0.0, %v569
    %v571 = vpop.f32.mrf.mxu0
    %572 = vmatprep.mubr.f32.mxu0 0.0
    %573 = vmatmul.mubr.f32.gmra.mxu0 %v501
    %v574 = vpop.f32.mrf.mxu0
    %v575 = vadd.f32 0.0, %v574
    %v576 = vpop.f32.mrf.mxu0
    %577 = vdwg.mxu0
    %578 = vrot.lane.b32.xlu0 %v267, 96
    %v579 = vpop.permute.xlu0 %578
    %580 = vrot.lane.b32.xlu0 %v272, 96
    %v581 = vpop.permute.xlu0 %580
    %584 = vmatprep.subr.mxu0 0.0
    %585 = vmatpush1.msra.mxu0 0.0
    %586 = vmatprep.subr.mxu0 0.0
    %587 = vmatpush1.msra.mxu0 0.0
    %588 = vmatprep.subr.mxu0 0.0
    %589 = vmatpush1.msra.mxu0 0.0
    %590 = vmatprep.subr.mxu0 0.0
    %591 = vmatpush1.msra.mxu0 0.0
    %592 = vmatprep.subr.mxu0 0.0
    %593 = vmatpush1.msra.mxu0 0.0
    %594 = vmatprep.subr.mxu0 0.0
    %595 = vmatpush1.msra.mxu0 0.0
    %596 = vmatprep.subr.mxu0 0.0
    %597 = vmatpush1.msra.mxu0 0.0
    %598 = vmatprep.subr.mxu0 0.0
    %599 = vmatpush1.msra.mxu0 0.0
    %600 = vmatprep.subr.mxu0 0.0
    %601 = vmatpush1.msra.mxu0 0.0
    %602 = vmatprep.subr.mxu0 0.0
    %603 = vmatpush1.msra.mxu0 0.0
    %604 = vmatprep.subr.mxu0 0.0
    %605 = vmatpush1.msra.mxu0 0.0
    %606 = vmatprep.subr.mxu0 0.0
    %607 = vmatpush1.msra.mxu0 0.0
    %608 = vmatprep.subr.mxu0 0.0
    %609 = vmatpush1.msra.mxu0 0.0
    %610 = vmatprep.subr.mxu0 0.0
    %611 = vmatpush1.msra.mxu0 0.0
    %612 = vmatprep.subr.mxu0 0.0
    %613 = vmatpush1.msra.mxu0 %v581
    %614 = vmatprep.subr.mxu0 0.0
    %615 = vmatpush1.msra.mxu0 %v579
    %616 = vmatprep.subr.mxu0 0.0
    %617 = vmatpush2.msra.mxu0 0.0
    %618 = vmatprep.subr.mxu0 0.0
    %619 = vmatpush2.msra.mxu0 0.0
    %620 = vmatprep.subr.mxu0 0.0
    %621 = vmatpush2.msra.mxu0 0.0
    %622 = vmatprep.subr.mxu0 0.0
    %623 = vmatpush2.msra.mxu0 0.0
    %624 = vmatprep.subr.mxu0 0.0
    %625 = vmatpush2.msra.mxu0 0.0
    %626 = vmatprep.subr.mxu0 0.0
    %627 = vmatpush2.msra.mxu0 0.0
    %628 = vmatprep.subr.mxu0 0.0
    %629 = vmatpush2.msra.mxu0 0.0
    %630 = vmatprep.subr.mxu0 0.0
    %631 = vmatpush2.msra.mxu0 0.0
    %632 = vmatprep.subr.mxu0 0.0
    %633 = vmatpush2.msra.mxu0 0.0
    %634 = vmatprep.subr.mxu0 0.0
    %635 = vmatpush2.msra.mxu0 0.0
    %636 = vmatprep.subr.mxu0 0.0
    %637 = vmatpush2.msra.mxu0 0.0
    %638 = vmatprep.subr.mxu0 0.0
    %639 = vmatpush2.msra.mxu0 0.0
    %640 = vmatprep.subr.mxu0 0.0
    %641 = vmatpush2.msra.mxu0 0.0
    %642 = vmatprep.subr.mxu0 0.0
    %643 = vmatpush2.msra.mxu0 0.0
    %644 = vmatprep.subr.mxu0 0.0
    %645 = vmatpush2.msra.mxu0 0.0
    %646 = vmatprep.subr.mxu0 0.0
    %647 = vmatpush2.msra.mxu0 0.0
    %648 = vmatprep.mubr.f32.mxu0 0.0
    %649 = vmatmul.mubr.f32.gmra.mxu0 %v498
    %v650 = vpop.f32.mrf.mxu0
    %v651 = vadd.f32 0.0, %v650
    %v652 = vpop.f32.mrf.mxu0
    %653 = vmatprep.mubr.f32.mxu0 0.0
    %654 = vmatmul.mubr.f32.gmra.mxu0 %v501
    %v655 = vpop.f32.mrf.mxu0
    %v656 = vadd.f32 0.0, %v655
    %v657 = vpop.f32.mrf.mxu0
    %658 = vdwg.mxu0
    %659 = vrot.lane.b32.xlu0 %v178, 120
    %v660 = vpop.permute.xlu0 %659
    %661 = vrot.lane.b32.xlu0 %v183, 120
    %v662 = vpop.permute.xlu0 %661
    %663 = vrot.lane.b32.xlu0 %v178, 88
    %v664 = vpop.permute.xlu0 %663
    %665 = vrot.lane.b32.xlu0 %v183, 88
    %v666 = vpop.permute.xlu0 %665
    %v667 = vsel %vm287, %v660, 0
    %v669 = vsel %vm287, %v662, 0
    %v671 = vsel %vm287, %v664, 0
    %v673 = vsel %vm287, %v666, 0
    %675 = vmatprep.subr.mxu0 0.0
    %676 = vmatpush1.xpose.msra.mxu0 0.0
    %677 = vmatprep.subr.mxu0 0.0
    %678 = vmatpush1.xpose.msra.mxu0 0.0
    %679 = vmatprep.subr.mxu0 0.0
    %680 = vmatpush1.xpose.msra.mxu0 0.0
    %681 = vmatprep.subr.mxu0 0.0
    %682 = vmatpush1.xpose.msra.mxu0 0.0
    %683 = vmatprep.subr.mxu0 0.0
    %684 = vmatpush1.xpose.msra.mxu0 0.0
    %685 = vmatprep.subr.mxu0 0.0
    %686 = vmatpush1.xpose.msra.mxu0 0.0
    %687 = vmatprep.subr.mxu0 0.0
    %688 = vmatpush1.xpose.msra.mxu0 0.0
    %689 = vmatprep.subr.mxu0 0.0
    %690 = vmatpush1.xpose.msra.mxu0 0.0
    %691 = vmatprep.subr.mxu0 0.0
    %692 = vmatpush1.xpose.msra.mxu0 0.0
    %693 = vmatprep.subr.mxu0 0.0
    %694 = vmatpush1.xpose.msra.mxu0 0.0
    %695 = vmatprep.subr.mxu0 0.0
    %696 = vmatpush1.xpose.msra.mxu0 0.0
    %697 = vmatprep.subr.mxu0 0.0
    %698 = vmatpush1.xpose.msra.mxu0 0.0
    %699 = vmatprep.subr.mxu0 0.0
    %700 = vmatpush1.xpose.msra.mxu0 0.0
    %701 = vmatprep.subr.mxu0 0.0
    %702 = vmatpush1.xpose.msra.mxu0 0.0
    %703 = vmatprep.subr.mxu0 0.0
    %704 = vmatpush1.xpose.msra.mxu0 %v673
    %705 = vmatprep.subr.mxu0 0.0
    %706 = vmatpush1.xpose.msra.mxu0 %v671
    %707 = vmatprep.subr.mxu0 0.0
    %708 = vmatpush2.xpose.msra.mxu0 0.0
    %709 = vmatprep.subr.mxu0 0.0
    %710 = vmatpush2.xpose.msra.mxu0 0.0
    %711 = vmatprep.subr.mxu0 0.0
    %712 = vmatpush2.xpose.msra.mxu0 0.0
    %713 = vmatprep.subr.mxu0 0.0
    %714 = vmatpush2.xpose.msra.mxu0 0.0
    %715 = vmatprep.subr.mxu0 0.0
    %716 = vmatpush2.xpose.msra.mxu0 0.0
    %717 = vmatprep.subr.mxu0 0.0
    %718 = vmatpush2.xpose.msra.mxu0 0.0
    %719 = vmatprep.subr.mxu0 0.0
    %720 = vmatpush2.xpose.msra.mxu0 0.0
    %721 = vmatprep.subr.mxu0 0.0
    %722 = vmatpush2.xpose.msra.mxu0 0.0
    %723 = vmatprep.subr.mxu0 0.0
    %724 = vmatpush2.xpose.msra.mxu0 0.0
    %725 = vmatprep.subr.mxu0 0.0
    %726 = vmatpush2.xpose.msra.mxu0 0.0
    %727 = vmatprep.subr.mxu0 0.0
    %728 = vmatpush2.xpose.msra.mxu0 0.0
    %729 = vmatprep.subr.mxu0 0.0
    %730 = vmatpush2.xpose.msra.mxu0 0.0
    %731 = vmatprep.subr.mxu0 0.0
    %732 = vmatpush2.xpose.msra.mxu0 0.0
    %733 = vmatprep.subr.mxu0 0.0
    %734 = vmatpush2.xpose.msra.mxu0 0.0
    %735 = vmatprep.subr.mxu0 0.0
    %736 = vmatpush2.xpose.msra.mxu0 0.0
    %737 = vmatprep.subr.mxu0 0.0
    %738 = vmatpush2.xpose.msra.mxu0 0.0
    %739 = vmatprep.mubr.f32.mxu0 0.0
    %740 = vmatmul.mubr.f32.gmra.mxu0 %v667
    %v741 = vpop.f32.mrf.mxu0
    %v742 = vadd.f32 0.0, %v741
    %v743 = vpop.f32.mrf.mxu0
    %744 = vmatprep.mubr.f32.mxu0 0.0
    %745 = vmatmul.mubr.f32.gmra.mxu0 %v669
    %v746 = vpop.f32.mrf.mxu0
    %v747 = vadd.f32 0.0, %v746
    %v748 = vpop.f32.mrf.mxu0
    %749 = vdwg.mxu0
    %v750 = vmul.f32 %v742, 0.35355338
    %v751 = vmul.f32 %v747, 0.35355338
    %752 = vrot.lane.b32.xlu0 %v267, 124
    %v753 = vpop.permute.xlu0 %752
    %754 = vrot.lane.b32.xlu0 %v272, 124
    %v755 = vpop.permute.xlu0 %754
    %756 = vrot.lane.b32.xlu0 %v267, 108
    %v757 = vpop.permute.xlu0 %756
    %758 = vrot.lane.b32.xlu0 %v272, 108
    %v759 = vpop.permute.xlu0 %758
    %v760 = vsel %vm379, %v753, 0
    %v762 = vsel %vm379, %v755, 0
    %v764 = vsel %vm379, %v757, 0
    %v766 = vsel %vm379, %v759, 0
    %768 = vmatprep.subr.mxu0 0.0
    %769 = vmatpush1.xpose.msra.mxu0 0.0
    %770 = vmatprep.subr.mxu0 0.0
    %771 = vmatpush1.xpose.msra.mxu0 0.0
    %772 = vmatprep.subr.mxu0 0.0
    %773 = vmatpush1.xpose.msra.mxu0 0.0
    %774 = vmatprep.subr.mxu0 0.0
    %775 = vmatpush1.xpose.msra.mxu0 0.0
    %776 = vmatprep.subr.mxu0 0.0
    %777 = vmatpush1.xpose.msra.mxu0 0.0
    %778 = vmatprep.subr.mxu0 0.0
    %779 = vmatpush1.xpose.msra.mxu0 0.0
    %780 = vmatprep.subr.mxu0 0.0
    %781 = vmatpush1.xpose.msra.mxu0 0.0
    %782 = vmatprep.subr.mxu0 0.0
    %783 = vmatpush1.xpose.msra.mxu0 0.0
    %784 = vmatprep.subr.mxu0 0.0
    %785 = vmatpush1.xpose.msra.mxu0 0.0
    %786 = vmatprep.subr.mxu0 0.0
    %787 = vmatpush1.xpose.msra.mxu0 0.0
    %788 = vmatprep.subr.mxu0 0.0
    %789 = vmatpush1.xpose.msra.mxu0 0.0
    %790 = vmatprep.subr.mxu0 0.0
    %791 = vmatpush1.xpose.msra.mxu0 0.0
    %792 = vmatprep.subr.mxu0 0.0
    %793 = vmatpush1.xpose.msra.mxu0 0.0
    %794 = vmatprep.subr.mxu0 0.0
    %795 = vmatpush1.xpose.msra.mxu0 0.0
    %796 = vmatprep.subr.mxu0 0.0
    %797 = vmatpush1.xpose.msra.mxu0 %v766
    %798 = vmatprep.subr.mxu0 0.0
    %799 = vmatpush1.xpose.msra.mxu0 %v764
    %800 = vmatprep.subr.mxu0 0.0
    %801 = vmatpush2.xpose.msra.mxu0 0.0
    %802 = vmatprep.subr.mxu0 0.0
    %803 = vmatpush2.xpose.msra.mxu0 0.0
    %804 = vmatprep.subr.mxu0 0.0
    %805 = vmatpush2.xpose.msra.mxu0 0.0
    %806 = vmatprep.subr.mxu0 0.0
    %807 = vmatpush2.xpose.msra.mxu0 0.0
    %808 = vmatprep.subr.mxu0 0.0
    %809 = vmatpush2.xpose.msra.mxu0 0.0
    %810 = vmatprep.subr.mxu0 0.0
    %811 = vmatpush2.xpose.msra.mxu0 0.0
    %812 = vmatprep.subr.mxu0 0.0
    %813 = vmatpush2.xpose.msra.mxu0 0.0
    %814 = vmatprep.subr.mxu0 0.0
    %815 = vmatpush2.xpose.msra.mxu0 0.0
    %816 = vmatprep.subr.mxu0 0.0
    %817 = vmatpush2.xpose.msra.mxu0 0.0
    %818 = vmatprep.subr.mxu0 0.0
    %819 = vmatpush2.xpose.msra.mxu0 0.0
    %820 = vmatprep.subr.mxu0 0.0
    %821 = vmatpush2.xpose.msra.mxu0 0.0
    %822 = vmatprep.subr.mxu0 0.0
    %823 = vmatpush2.xpose.msra.mxu0 0.0
    %824 = vmatprep.subr.mxu0 0.0
    %825 = vmatpush2.xpose.msra.mxu0 0.0
    %826 = vmatprep.subr.mxu0 0.0
    %827 = vmatpush2.xpose.msra.mxu0 0.0
    %828 = vmatprep.subr.mxu0 0.0
    %829 = vmatpush2.xpose.msra.mxu0 0.0
    %830 = vmatprep.subr.mxu0 0.0
    %831 = vmatpush2.xpose.msra.mxu0 0.0
    %832 = vmatprep.mubr.f32.mxu0 0.0
    %833 = vmatmul.mubr.f32.gmra.mxu0 %v760
    %v834 = vpop.f32.mrf.mxu0
    %v835 = vadd.f32 0.0, %v834
    %v836 = vpop.f32.mrf.mxu0
    %837 = vmatprep.mubr.f32.mxu0 0.0
    %838 = vmatmul.mubr.f32.gmra.mxu0 %v762
    %v839 = vpop.f32.mrf.mxu0
    %v840 = vadd.f32 0.0, %v839
    %v841 = vpop.f32.mrf.mxu0
    %842 = vdwg.mxu0
    %v843 = vmul.f32 %v835, 0.5
    %v844 = vmul.f32 %v840, 0.5
    %v845 = vadd.f32 %v750, %v843
    %v846 = vadd.f32 %v751, %v844
    %v847 = vadd.f32 %v845, %v93
    %v848 = vadd.f32 %v846, %v94
    %v849 = vsel %vm193, %v847, -inf
    %850 = vmax.xlane.f32.xlu0 %v849
    %v851 = vpop.xlane.xlu0 %850
    %v852 = vsel %vm193, %v848, -inf
    %853 = vmax.xlane.f32.xlu0 %v852
    %v854 = vpop.xlane.xlu0 %853
    %v855 = vsub.f32 %v847, %v851
    %v856 = vsub.f32 %v848, %v854
    %v857 = vmul.f32 %v855, 1.442695
    %v858 = vpow.pop %v857
    %v859 = vmul.f32 %v856, 1.442695
    %v860 = vpow.pop %v859
    %v861 = vsel %vm193, %v858, 0.0
    %862 = vadd.xlane.f32.xlu0 %v861
    %v863 = vpop.xlane.xlu0 %862
    %v864 = vsel %vm193, %v860, 0.0
    %865 = vadd.xlane.f32.xlu0 %v864
    %v866 = vpop.xlane.xlu0 %865
    %v867 = vrcp.pop %v863
    %v868 = vrcp.pop %v866
    %v869 = vmul.f32 %v858, %v867
    %v870 = vmul.f32 %v860, %v868
    %871 = vrot.lane.b32.xlu0 %v178, 56
    %v872 = vpop.permute.xlu0 %871
    %873 = vrot.lane.b32.xlu0 %v183, 56
    %v874 = vpop.permute.xlu0 %873
    %v878 = vsel %vm193, %v869, 0
    %v881 = vsel %vm193, %v870, 0
    %883 = vmatprep.subr.mxu0 0.0
    %884 = vmatpush1.msra.mxu0 0.0
    %885 = vmatprep.subr.mxu0 0.0
    %886 = vmatpush1.msra.mxu0 0.0
    %887 = vmatprep.subr.mxu0 0.0
    %888 = vmatpush1.msra.mxu0 0.0
    %889 = vmatprep.subr.mxu0 0.0
    %890 = vmatpush1.msra.mxu0 0.0
    %891 = vmatprep.subr.mxu0 0.0
    %892 = vmatpush1.msra.mxu0 0.0
    %893 = vmatprep.subr.mxu0 0.0
    %894 = vmatpush1.msra.mxu0 0.0
    %895 = vmatprep.subr.mxu0 0.0
    %896 = vmatpush1.msra.mxu0 0.0
    %897 = vmatprep.subr.mxu0 0.0
    %898 = vmatpush1.msra.mxu0 0.0
    %899 = vmatprep.subr.mxu0 0.0
    %900 = vmatpush1.msra.mxu0 0.0
    %901 = vmatprep.subr.mxu0 0.0
    %902 = vmatpush1.msra.mxu0 0.0
    %903 = vmatprep.subr.mxu0 0.0
    %904 = vmatpush1.msra.mxu0 0.0
    %905 = vmatprep.subr.mxu0 0.0
    %906 = vmatpush1.msra.mxu0 0.0
    %907 = vmatprep.subr.mxu0 0.0
    %908 = vmatpush1.msra.mxu0 0.0
    %909 = vmatprep.subr.mxu0 0.0
    %910 = vmatpush1.msra.mxu0 0.0
    %911 = vmatprep.subr.mxu0 0.0
    %912 = vmatpush1.msra.mxu0 %v874
    %913 = vmatprep.subr.mxu0 0.0
    %914 = vmatpush1.msra.mxu0 %v872
    %915 = vmatprep.subr.mxu0 0.0
    %916 = vmatpush2.msra.mxu0 0.0
    %917 = vmatprep.subr.mxu0 0.0
    %918 = vmatpush2.msra.mxu0 0.0
    %919 = vmatprep.subr.mxu0 0.0
    %920 = vmatpush2.msra.mxu0 0.0
    %921 = vmatprep.subr.mxu0 0.0
    %922 = vmatpush2.msra.mxu0 0.0
    %923 = vmatprep.subr.mxu0 0.0
    %924 = vmatpush2.msra.mxu0 0.0
    %925 = vmatprep.subr.mxu0 0.0
    %926 = vmatpush2.msra.mxu0 0.0
    %927 = vmatprep.subr.mxu0 0.0
    %928 = vmatpush2.msra.mxu0 0.0
    %929 = vmatprep.subr.mxu0 0.0
    %930 = vmatpush2.msra.mxu0 0.0
    %931 = vmatprep.subr.mxu0 0.0
    %932 = vmatpush2.msra.mxu0 0.0
    %933 = vmatprep.subr.mxu0 0.0
    %934 = vmatpush2.msra.mxu0 0.0
    %935 = vmatprep.subr.mxu0 0.0
    %936 = vmatpush2.msra.mxu0 0.0
    %937 = vmatprep.subr.mxu0 0.0
    %938 = vmatpush2.msra.mxu0 0.0
    %939 = vmatprep.subr.mxu0 0.0
    %940 = vmatpush2.msra.mxu0 0.0
    %941 = vmatprep.subr.mxu0 0.0
    %942 = vmatpush2.msra.mxu0 0.0
    %943 = vmatprep.subr.mxu0 0.0
    %944 = vmatpush2.msra.mxu0 0.0
    %945 = vmatprep.subr.mxu0 0.0
    %946 = vmatpush2.msra.mxu0 0.0
    %947 = vmatprep.mubr.f32.mxu0 0.0
    %948 = vmatmul.mubr.f32.gmra.mxu0 %v878
    %v949 = vpop.f32.mrf.mxu0
    %v950 = vadd.f32 0.0, %v949
    %v951 = vpop.f32.mrf.mxu0
    %952 = vmatprep.mubr.f32.mxu0 0.0
    %953 = vmatmul.mubr.f32.gmra.mxu0 %v881
    %v954 = vpop.f32.mrf.mxu0
    %v955 = vadd.f32 0.0, %v954
    %v956 = vpop.f32.mrf.mxu0
    %957 = vdwg.mxu0
    %958 = vrot.lane.b32.xlu0 %v267, 92
    %v959 = vpop.permute.xlu0 %958
    %960 = vrot.lane.b32.xlu0 %v272, 92
    %v961 = vpop.permute.xlu0 %960
    %964 = vmatprep.subr.mxu0 0.0
    %965 = vmatpush1.msra.mxu0 0.0
    %966 = vmatprep.subr.mxu0 0.0
    %967 = vmatpush1.msra.mxu0 0.0
    %968 = vmatprep.subr.mxu0 0.0
    %969 = vmatpush1.msra.mxu0 0.0
    %970 = vmatprep.subr.mxu0 0.0
    %971 = vmatpush1.msra.mxu0 0.0
    %972 = vmatprep.subr.mxu0 0.0
    %973 = vmatpush1.msra.mxu0 0.0
    %974 = vmatprep.subr.mxu0 0.0
    %975 = vmatpush1.msra.mxu0 0.0
    %976 = vmatprep.subr.mxu0 0.0
    %977 = vmatpush1.msra.mxu0 0.0
    %978 = vmatprep.subr.mxu0 0.0
    %979 = vmatpush1.msra.mxu0 0.0
    %980 = vmatprep.subr.mxu0 0.0
    %981 = vmatpush1.msra.mxu0 0.0
    %982 = vmatprep.subr.mxu0 0.0
    %983 = vmatpush1.msra.mxu0 0.0
    %984 = vmatprep.subr.mxu0 0.0
    %985 = vmatpush1.msra.mxu0 0.0
    %986 = vmatprep.subr.mxu0 0.0
    %987 = vmatpush1.msra.mxu0 0.0
    %988 = vmatprep.subr.mxu0 0.0
    %989 = vmatpush1.msra.mxu0 0.0
    %990 = vmatprep.subr.mxu0 0.0
    %991 = vmatpush1.msra.mxu0 0.0
    %992 = vmatprep.subr.mxu0 0.0
    %993 = vmatpush1.msra.mxu0 %v961
    %994 = vmatprep.subr.mxu0 0.0
    %995 = vmatpush1.msra.mxu0 %v959
    %996 = vmatprep.subr.mxu0 0.0
    %997 = vmatpush2.msra.mxu0 0.0
    %998 = vmatprep.subr.mxu0 0.0
    %999 = vmatpush2.msra.mxu0 0.0
    %1000 = vmatprep.subr.mxu0 0.0
    %1001 = vmatpush2.msra.mxu0 0.0
    %1002 = vmatprep.subr.mxu0 0.0
    %1003 = vmatpush2.msra.mxu0 0.0
    %1004 = vmatprep.subr.mxu0 0.0
    %1005 = vmatpush2.msra.mxu0 0.0
    %1006 = vmatprep.subr.mxu0 0.0
    %1007 = vmatpush2.msra.mxu0 0.0
    %1008 = vmatprep.subr.mxu0 0.0
    %1009 = vmatpush2.msra.mxu0 0.0
    %1010 = vmatprep.subr.mxu0 0.0
    %1011 = vmatpush2.msra.mxu0 0.0
    %1012 = vmatprep.subr.mxu0 0.0
    %1013 = vmatpush2.msra.mxu0 0.0
    %1014 = vmatprep.subr.mxu0 0.0
    %1015 = vmatpush2.msra.mxu0 0.0
    %1016 = vmatprep.subr.mxu0 0.0
    %1017 = vmatpush2.msra.mxu0 0.0
    %1018 = vmatprep.subr.mxu0 0.0
    %1019 = vmatpush2.msra.mxu0 0.0
    %1020 = vmatprep.subr.mxu0 0.0
    %1021 = vmatpush2.msra.mxu0 0.0
    %1022 = vmatprep.subr.mxu0 0.0
    %1023 = vmatpush2.msra.mxu0 0.0
    %1024 = vmatprep.subr.mxu0 0.0
    %1025 = vmatpush2.msra.mxu0 0.0
    %1026 = vmatprep.subr.mxu0 0.0
    %1027 = vmatpush2.msra.mxu0 0.0
    %1028 = vmatprep.mubr.f32.mxu0 0.0
    %1029 = vmatmul.mubr.f32.gmra.mxu0 %v878
    %v1030 = vpop.f32.mrf.mxu0
    %v1031 = vadd.f32 0.0, %v1030
    %v1032 = vpop.f32.mrf.mxu0
    %1033 = vmatprep.mubr.f32.mxu0 0.0
    %1034 = vmatmul.mubr.f32.gmra.mxu0 %v881
    %v1035 = vpop.f32.mrf.mxu0
    %v1036 = vadd.f32 0.0, %v1035
    %v1037 = vpop.f32.mrf.mxu0
    %1038 = vdwg.mxu0
    %v1040 = vsel %vm287, %v950, 0
    %v1043 = vsel %vm287, %v955, 0
    %1045 = vmatprep.subr.mxu0 0.0
    %1046 = vmatpush1.msra.mxu0 0.0
    %1047 = vmatprep.subr.mxu0 0.0
    %1048 = vmatpush1.msra.mxu0 0.0
    %1049 = vmatprep.subr.mxu0 0.0
    %1050 = vmatpush1.msra.mxu0 0.0
    %1051 = vmatprep.subr.mxu0 0.0
    %1052 = vmatpush1.msra.mxu0 0.0
    %1053 = vmatprep.subr.mxu0 0.0
    %1054 = vmatpush1.msra.mxu0 0.0
    %1055 = vmatprep.subr.mxu0 0.0
    %1056 = vmatpush1.msra.mxu0 0.0
    %1057 = vmatprep.subr.mxu0 0.0
    %1058 = vmatpush1.msra.mxu0 0.0
    %1059 = vmatprep.subr.mxu0 0.0
    %1060 = vmatpush1.msra.mxu0 0.0
    %1061 = vmatprep.subr.mxu0 0.0
    %1062 = vmatpush1.msra.mxu0 0.0
    %1063 = vmatprep.subr.mxu0 0.0
    %1064 = vmatpush1.msra.mxu0 0.0
    %1065 = vmatprep.subr.mxu0 0.0
    %1066 = vmatpush1.msra.mxu0 0.0
    %1067 = vmatprep.subr.mxu0 0.0
    %1068 = vmatpush1.msra.mxu0 0.0
    %1069 = vmatprep.subr.mxu0 0.0
    %1070 = vmatpush1.msra.mxu0 0.0
    %1071 = vmatprep.subr.mxu0 0.0
    %1072 = vmatpush1.msra.mxu0 0.0
    %1073 = vmatprep.subr.mxu0 0.0
    %1074 = vmatpush1.msra.mxu0 0.0
    %1075 = vmatprep.subr.mxu0 0.0
    %1076 = vmatpush1.msra.mxu0 %v276
    %1077 = vmatprep.subr.mxu0 0.0
    %1078 = vmatpush2.msra.mxu0 0.0
    %1079 = vmatprep.subr.mxu0 0.0
    %1080 = vmatpush2.msra.mxu0 0.0
    %1081 = vmatprep.subr.mxu0 0.0
    %1082 = vmatpush2.msra.mxu0 0.0
    %1083 = vmatprep.subr.mxu0 0.0
    %1084 = vmatpush2.msra.mxu0 0.0
    %1085 = vmatprep.subr.mxu0 0.0
    %1086 = vmatpush2.msra.mxu0 0.0
    %1087 = vmatprep.subr.mxu0 0.0
    %1088 = vmatpush2.msra.mxu0 0.0
    %1089 = vmatprep.subr.mxu0 0.0
    %1090 = vmatpush2.msra.mxu0 0.0
    %1091 = vmatprep.subr.mxu0 0.0
    %1092 = vmatpush2.msra.mxu0 0.0
    %1093 = vmatprep.subr.mxu0 0.0
    %1094 = vmatpush2.msra.mxu0 0.0
    %1095 = vmatprep.subr.mxu0 0.0
    %1096 = vmatpush2.msra.mxu0 0.0
    %1097 = vmatprep.subr.mxu0 0.0
    %1098 = vmatpush2.msra.mxu0 0.0
    %1099 = vmatprep.subr.mxu0 0.0
    %1100 = vmatpush2.msra.mxu0 0.0
    %1101 = vmatprep.subr.mxu0 0.0
    %1102 = vmatpush2.msra.mxu0 0.0
    %1103 = vmatprep.subr.mxu0 0.0
    %1104 = vmatpush2.msra.mxu0 0.0
    %1105 = vmatprep.subr.mxu0 0.0
    %1106 = vmatpush2.msra.mxu0 0.0
    %1107 = vmatprep.subr.mxu0 0.0
    %1108 = vmatpush2.msra.mxu0 0.0
    %1109 = vmatprep.mubr.f32.mxu0 0.0
    %1110 = vmatmul.mubr.f32.gmra.mxu0 %v1040
    %v1111 = vpop.f32.mrf.mxu0
    %v1112 = vadd.f32 0.0, %v1111
    %v1113 = vpop.f32.mrf.mxu0
    %1114 = vmatprep.mubr.f32.mxu0 0.0
    %1115 = vmatmul.mubr.f32.gmra.mxu0 %v1043
    %v1116 = vpop.f32.mrf.mxu0
    %v1117 = vadd.f32 0.0, %v1116
    %v1118 = vpop.f32.mrf.mxu0
    %1119 = vdwg.mxu0
    %v1121 = vsel %vm287, %v570, 0
    %v1124 = vsel %vm287, %v575, 0
    %1126 = vmatprep.subr.mxu0 0.0
    %1127 = vmatpush1.msra.mxu0 0.0
    %1128 = vmatprep.subr.mxu0 0.0
    %1129 = vmatpush1.msra.mxu0 0.0
    %1130 = vmatprep.subr.mxu0 0.0
    %1131 = vmatpush1.msra.mxu0 0.0
    %1132 = vmatprep.subr.mxu0 0.0
    %1133 = vmatpush1.msra.mxu0 0.0
    %1134 = vmatprep.subr.mxu0 0.0
    %1135 = vmatpush1.msra.mxu0 0.0
    %1136 = vmatprep.subr.mxu0 0.0
    %1137 = vmatpush1.msra.mxu0 0.0
    %1138 = vmatprep.subr.mxu0 0.0
    %1139 = vmatpush1.msra.mxu0 0.0
    %1140 = vmatprep.subr.mxu0 0.0
    %1141 = vmatpush1.msra.mxu0 0.0
    %1142 = vmatprep.subr.mxu0 0.0
    %1143 = vmatpush1.msra.mxu0 0.0
    %1144 = vmatprep.subr.mxu0 0.0
    %1145 = vmatpush1.msra.mxu0 0.0
    %1146 = vmatprep.subr.mxu0 0.0
    %1147 = vmatpush1.msra.mxu0 0.0
    %1148 = vmatprep.subr.mxu0 0.0
    %1149 = vmatpush1.msra.mxu0 0.0
    %1150 = vmatprep.subr.mxu0 0.0
    %1151 = vmatpush1.msra.mxu0 0.0
    %1152 = vmatprep.subr.mxu0 0.0
    %1153 = vmatpush1.msra.mxu0 0.0
    %1154 = vmatprep.subr.mxu0 0.0
    %1155 = vmatpush1.msra.mxu0 0.0
    %1156 = vmatprep.subr.mxu0 0.0
    %1157 = vmatpush1.msra.mxu0 %v275
    %1158 = vmatprep.subr.mxu0 0.0
    %1159 = vmatpush2.msra.mxu0 0.0
    %1160 = vmatprep.subr.mxu0 0.0
    %1161 = vmatpush2.msra.mxu0 0.0
    %1162 = vmatprep.subr.mxu0 0.0
    %1163 = vmatpush2.msra.mxu0 0.0
    %1164 = vmatprep.subr.mxu0 0.0
    %1165 = vmatpush2.msra.mxu0 0.0
    %1166 = vmatprep.subr.mxu0 0.0
    %1167 = vmatpush2.msra.mxu0 0.0
    %1168 = vmatprep.subr.mxu0 0.0
    %1169 = vmatpush2.msra.mxu0 0.0
    %1170 = vmatprep.subr.mxu0 0.0
    %1171 = vmatpush2.msra.mxu0 0.0
    %1172 = vmatprep.subr.mxu0 0.0
    %1173 = vmatpush2.msra.mxu0 0.0
    %1174 = vmatprep.subr.mxu0 0.0
    %1175 = vmatpush2.msra.mxu0 0.0
    %1176 = vmatprep.subr.mxu0 0.0
    %1177 = vmatpush2.msra.mxu0 0.0
    %1178 = vmatprep.subr.mxu0 0.0
    %1179 = vmatpush2.msra.mxu0 0.0
    %1180 = vmatprep.subr.mxu0 0.0
    %1181 = vmatpush2.msra.mxu0 0.0
    %1182 = vmatprep.subr.mxu0 0.0
    %1183 = vmatpush2.msra.mxu0 0.0
    %1184 = vmatprep.subr.mxu0 0.0
    %1185 = vmatpush2.msra.mxu0 0.0
    %1186 = vmatprep.subr.mxu0 0.0
    %1187 = vmatpush2.msra.mxu0 0.0
    %1188 = vmatprep.subr.mxu0 0.0
    %1189 = vmatpush2.msra.mxu0 0.0
    %1190 = vmatprep.mubr.f32.mxu0 0.0
    %1191 = vmatmul.mubr.f32.gmra.mxu0 %v1121
    %v1192 = vpop.f32.mrf.mxu0
    %v1193 = vadd.f32 %v1112, %v1192
    %v1194 = vpop.f32.mrf.mxu0
    %1195 = vmatprep.mubr.f32.mxu0 0.0
    %1196 = vmatmul.mubr.f32.gmra.mxu0 %v1124
    %v1197 = vpop.f32.mrf.mxu0
    %v1198 = vadd.f32 %v1117, %v1197
    %v1199 = vpop.f32.mrf.mxu0
    %1200 = vdwg.mxu0
    %v1202 = vrot.slane %v279, 4
    %v1204 = vsel %vm379, %v1031, 0
    %v1207 = vsel %vm379, %v1036, 0
    %vm1209 = vcmask 1043456
    %v1210 = vsel %vm1209, %v1202, 0
    %1212 = vmatprep.subr.mxu0 0.0
    %1213 = vmatpush1.msra.mxu0 0.0
    %1214 = vmatprep.subr.mxu0 0.0
    %1215 = vmatpush1.msra.mxu0 0.0
    %1216 = vmatprep.subr.mxu0 0.0
    %1217 = vmatpush1.msra.mxu0 0.0
    %1218 = vmatprep.subr.mxu0 0.0
    %1219 = vmatpush1.msra.mxu0 0.0
    %1220 = vmatprep.subr.mxu0 0.0
    %1221 = vmatpush1.msra.mxu0 0.0
    %1222 = vmatprep.subr.mxu0 0.0
    %1223 = vmatpush1.msra.mxu0 0.0
    %1224 = vmatprep.subr.mxu0 0.0
    %1225 = vmatpush1.msra.mxu0 0.0
    %1226 = vmatprep.subr.mxu0 0.0
    %1227 = vmatpush1.msra.mxu0 0.0
    %1228 = vmatprep.subr.mxu0 0.0
    %1229 = vmatpush1.msra.mxu0 0.0
    %1230 = vmatprep.subr.mxu0 0.0
    %1231 = vmatpush1.msra.mxu0 0.0
    %1232 = vmatprep.subr.mxu0 0.0
    %1233 = vmatpush1.msra.mxu0 0.0
    %1234 = vmatprep.subr.mxu0 0.0
    %1235 = vmatpush1.msra.mxu0 0.0
    %1236 = vmatprep.subr.mxu0 0.0
    %1237 = vmatpush1.msra.mxu0 0.0
    %1238 = vmatprep.subr.mxu0 0.0
    %1239 = vmatpush1.msra.mxu0 0.0
    %1240 = vmatprep.subr.mxu0 0.0
    %1241 = vmatpush1.msra.mxu0 0.0
    %1242 = vmatprep.subr.mxu0 0.0
    %1243 = vmatpush1.msra.mxu0 %v1210
    %1244 = vmatprep.subr.mxu0 0.0
    %1245 = vmatpush2.msra.mxu0 0.0
    %1246 = vmatprep.subr.mxu0 0.0
    %1247 = vmatpush2.msra.mxu0 0.0
    %1248 = vmatprep.subr.mxu0 0.0
    %1249 = vmatpush2.msra.mxu0 0.0
    %1250 = vmatprep.subr.mxu0 0.0
    %1251 = vmatpush2.msra.mxu0 0.0
    %1252 = vmatprep.subr.mxu0 0.0
    %1253 = vmatpush2.msra.mxu0 0.0
    %1254 = vmatprep.subr.mxu0 0.0
    %1255 = vmatpush2.msra.mxu0 0.0
    %1256 = vmatprep.subr.mxu0 0.0
    %1257 = vmatpush2.msra.mxu0 0.0
    %1258 = vmatprep.subr.mxu0 0.0
    %1259 = vmatpush2.msra.mxu0 0.0
    %1260 = vmatprep.subr.mxu0 0.0
    %1261 = vmatpush2.msra.mxu0 0.0
    %1262 = vmatprep.subr.mxu0 0.0
    %1263 = vmatpush2.msra.mxu0 0.0
    %1264 = vmatprep.subr.mxu0 0.0
    %1265 = vmatpush2.msra.mxu0 0.0
    %1266 = vmatprep.subr.mxu0 0.0
    %1267 = vmatpush2.msra.mxu0 0.0
    %1268 = vmatprep.subr.mxu0 0.0
    %1269 = vmatpush2.msra.mxu0 0.0
    %1270 = vmatprep.subr.mxu0 0.0
    %1271 = vmatpush2.msra.mxu0 0.0
    %1272 = vmatprep.subr.mxu0 0.0
    %1273 = vmatpush2.msra.mxu0 0.0
    %1274 = vmatprep.subr.mxu0 0.0
    %1275 = vmatpush2.msra.mxu0 0.0
    %1276 = vmatprep.mubr.f32.mxu0 0.0
    %1277 = vmatmul.mubr.f32.gmra.mxu0 %v1204
    %v1278 = vpop.f32.mrf.mxu0
    %v1279 = vadd.f32 0.0, %v1278
    %v1280 = vpop.f32.mrf.mxu0
    %1281 = vmatprep.mubr.f32.mxu0 0.0
    %1282 = vmatmul.mubr.f32.gmra.mxu0 %v1207
    %v1283 = vpop.f32.mrf.mxu0
    %v1284 = vadd.f32 0.0, %v1283
    %v1285 = vpop.f32.mrf.mxu0
    %1286 = vdwg.mxu0
    %v1288 = vsel %vm379, %v651, 0
    %v1291 = vsel %vm379, %v656, 0
    %v1293 = vsel %vm1209, %v279, 0
    %1295 = vmatprep.subr.mxu0 0.0
    %1296 = vmatpush1.msra.mxu0 0.0
    %1297 = vmatprep.subr.mxu0 0.0
    %1298 = vmatpush1.msra.mxu0 0.0
    %1299 = vmatprep.subr.mxu0 0.0
    %1300 = vmatpush1.msra.mxu0 0.0
    %1301 = vmatprep.subr.mxu0 0.0
    %1302 = vmatpush1.msra.mxu0 0.0
    %1303 = vmatprep.subr.mxu0 0.0
    %1304 = vmatpush1.msra.mxu0 0.0
    %1305 = vmatprep.subr.mxu0 0.0
    %1306 = vmatpush1.msra.mxu0 0.0
    %1307 = vmatprep.subr.mxu0 0.0
    %1308 = vmatpush1.msra.mxu0 0.0
    %1309 = vmatprep.subr.mxu0 0.0
    %1310 = vmatpush1.msra.mxu0 0.0
    %1311 = vmatprep.subr.mxu0 0.0
    %1312 = vmatpush1.msra.mxu0 0.0
    %1313 = vmatprep.subr.mxu0 0.0
    %1314 = vmatpush1.msra.mxu0 0.0
    %1315 = vmatprep.subr.mxu0 0.0
    %1316 = vmatpush1.msra.mxu0 0.0
    %1317 = vmatprep.subr.mxu0 0.0
    %1318 = vmatpush1.msra.mxu0 0.0
    %1319 = vmatprep.subr.mxu0 0.0
    %1320 = vmatpush1.msra.mxu0 0.0
    %1321 = vmatprep.subr.mxu0 0.0
    %1322 = vmatpush1.msra.mxu0 0.0
    %1323 = vmatprep.subr.mxu0 0.0
    %1324 = vmatpush1.msra.mxu0 0.0
    %1325 = vmatprep.subr.mxu0 0.0
    %1326 = vmatpush1.msra.mxu0 %v1293
    %1327 = vmatprep.subr.mxu0 0.0
    %1328 = vmatpush2.msra.mxu0 0.0
    %1329 = vmatprep.subr.mxu0 0.0
    %1330 = vmatpush2.msra.mxu0 0.0
    %1331 = vmatprep.subr.mxu0 0.0
    %1332 = vmatpush2.msra.mxu0 0.0
    %1333 = vmatprep.subr.mxu0 0.0
    %1334 = vmatpush2.msra.mxu0 0.0
    %1335 = vmatprep.subr.mxu0 0.0
    %1336 = vmatpush2.msra.mxu0 0.0
    %1337 = vmatprep.subr.mxu0 0.0
    %1338 = vmatpush2.msra.mxu0 0.0
    %1339 = vmatprep.subr.mxu0 0.0
    %1340 = vmatpush2.msra.mxu0 0.0
    %1341 = vmatprep.subr.mxu0 0.0
    %1342 = vmatpush2.msra.mxu0 0.0
    %1343 = vmatprep.subr.mxu0 0.0
    %1344 = vmatpush2.msra.mxu0 0.0
    %1345 = vmatprep.subr.mxu0 0.0
    %1346 = vmatpush2.msra.mxu0 0.0
    %1347 = vmatprep.subr.mxu0 0.0
    %1348 = vmatpush2.msra.mxu0 0.0
    %1349 = vmatprep.subr.mxu0 0.0
    %1350 = vmatpush2.msra.mxu0 0.0
    %1351 = vmatprep.subr.mxu0 0.0
    %1352 = vmatpush2.msra.mxu0 0.0
    %1353 = vmatprep.subr.mxu0 0.0
    %1354 = vmatpush2.msra.mxu0 0.0
    %1355 = vmatprep.subr.mxu0 0.0
    %1356 = vmatpush2.msra.mxu0 0.0
    %1357 = vmatprep.subr.mxu0 0.0
    %1358 = vmatpush2.msra.mxu0 0.0
    %1359 = vmatprep.mubr.f32.mxu0 0.0
    %1360 = vmatmul.mubr.f32.gmra.mxu0 %v1288
    %v1361 = vpop.f32.mrf.mxu0
    %v1362 = vadd.f32 %v1279, %v1361
    %v1363 = vpop.f32.mrf.mxu0
    %1364 = vmatprep.mubr.f32.mxu0 0.0
    %1365 = vmatmul.mubr.f32.gmra.mxu0 %v1291
    %v1366 = vpop.f32.mrf.mxu0
    %v1367 = vadd.f32 %v1284, %v1366
    %v1368 = vpop.f32.mrf.mxu0
    %1369 = vdwg.mxu0
    %1370 = vrot.lane.b32.xlu0 %v178, 112
    %v1371 = vpop.permute.xlu0 %1370
    %1372 = vrot.lane.b32.xlu0 %v183, 112
    %v1373 = vpop.permute.xlu0 %1372
    %1374 = vrot.lane.b32.xlu0 %v178, 80
    %v1375 = vpop.permute.xlu0 %1374
    %1376 = vrot.lane.b32.xlu0 %v183, 80
    %v1377 = vpop.permute.xlu0 %1376
    %v1378 = vsel %vm287, %v1371, 0
    %v1380 = vsel %vm287, %v1373, 0
    %v1382 = vsel %vm287, %v1375, 0
    %v1384 = vsel %vm287, %v1377, 0
    %1386 = vmatprep.subr.mxu0 0.0
    %1387 = vmatpush1.xpose.msra.mxu0 0.0
    %1388 = vmatprep.subr.mxu0 0.0
    %1389 = vmatpush1.xpose.msra.mxu0 0.0
    %1390 = vmatprep.subr.mxu0 0.0
    %1391 = vmatpush1.xpose.msra.mxu0 0.0
    %1392 = vmatprep.subr.mxu0 0.0
    %1393 = vmatpush1.xpose.msra.mxu0 0.0
    %1394 = vmatprep.subr.mxu0 0.0
    %1395 = vmatpush1.xpose.msra.mxu0 0.0
    %1396 = vmatprep.subr.mxu0 0.0
    %1397 = vmatpush1.xpose.msra.mxu0 0.0
    %1398 = vmatprep.subr.mxu0 0.0
    %1399 = vmatpush1.xpose.msra.mxu0 0.0
    %1400 = vmatprep.subr.mxu0 0.0
    %1401 = vmatpush1.xpose.msra.mxu0 0.0
    %1402 = vmatprep.subr.mxu0 0.0
    %1403 = vmatpush1.xpose.msra.mxu0 0.0
    %1404 = vmatprep.subr.mxu0 0.0
    %1405 = vmatpush1.xpose.msra.mxu0 0.0
    %1406 = vmatprep.subr.mxu0 0.0
    %1407 = vmatpush1.xpose.msra.mxu0 0.0
    %1408 = vmatprep.subr.mxu0 0.0
    %1409 = vmatpush1.xpose.msra.mxu0 0.0
    %1410 = vmatprep.subr.mxu0 0.0
    %1411 = vmatpush1.xpose.msra.mxu0 0.0
    %1412 = vmatprep.subr.mxu0 0.0
    %1413 = vmatpush1.xpose.msra.mxu0 0.0
    %1414 = vmatprep.subr.mxu0 0.0
    %1415 = vmatpush1.xpose.msra.mxu0 %v1384
    %1416 = vmatprep.subr.mxu0 0.0
    %1417 = vmatpush1.xpose.msra.mxu0 %v1382
    %1418 = vmatprep.subr.mxu0 0.0
    %1419 = vmatpush2.xpose.msra.mxu0 0.0
    %1420 = vmatprep.subr.mxu0 0.0
    %1421 = vmatpush2.xpose.msra.mxu0 0.0
    %1422 = vmatprep.subr.mxu0 0.0
    %1423 = vmatpush2.xpose.msra.mxu0 0.0
    %1424 = vmatprep.subr.mxu0 0.0
    %1425 = vmatpush2.xpose.msra.mxu0 0.0
    %1426 = vmatprep.subr.mxu0 0.0
    %1427 = vmatpush2.xpose.msra.mxu0 0.0
    %1428 = vmatprep.subr.mxu0 0.0
    %1429 = vmatpush2.xpose.msra.mxu0 0.0
    %1430 = vmatprep.subr.mxu0 0.0
    %1431 = vmatpush2.xpose.msra.mxu0 0.0
    %1432 = vmatprep.subr.mxu0 0.0
    %1433 = vmatpush2.xpose.msra.mxu0 0.0
    %1434 = vmatprep.subr.mxu0 0.0
    %1435 = vmatpush2.xpose.msra.mxu0 0.0
    %1436 = vmatprep.subr.mxu0 0.0
    %1437 = vmatpush2.xpose.msra.mxu0 0.0
    %1438 = vmatprep.subr.mxu0 0.0
    %1439 = vmatpush2.xpose.msra.mxu0 0.0
    %1440 = vmatprep.subr.mxu0 0.0
    %1441 = vmatpush2.xpose.msra.mxu0 0.0
    %1442 = vmatprep.subr.mxu0 0.0
    %1443 = vmatpush2.xpose.msra.mxu0 0.0
    %1444 = vmatprep.subr.mxu0 0.0
    %1445 = vmatpush2.xpose.msra.mxu0 0.0
    %1446 = vmatprep.subr.mxu0 0.0
    %1447 = vmatpush2.xpose.msra.mxu0 0.0
    %1448 = vmatprep.subr.mxu0 0.0
    %1449 = vmatpush2.xpose.msra.mxu0 0.0
    %1450 = vmatprep.mubr.f32.mxu0 0.0
    %1451 = vmatmul.mubr.f32.gmra.mxu0 %v1378
    %v1452 = vpop.f32.mrf.mxu0
    %v1453 = vadd.f32 0.0, %v1452
    %v1454 = vpop.f32.mrf.mxu0
    %1455 = vmatprep.mubr.f32.mxu0 0.0
    %1456 = vmatmul.mubr.f32.gmra.mxu0 %v1380
    %v1457 = vpop.f32.mrf.mxu0
    %v1458 = vadd.f32 0.0, %v1457
    %v1459 = vpop.f32.mrf.mxu0
    %1460 = vdwg.mxu0
    %v1461 = vmul.f32 %v1453, 0.35355338
    %v1462 = vmul.f32 %v1458, 0.35355338
    %1463 = vrot.lane.b32.xlu0 %v267, 120
    %v1464 = vpop.permute.xlu0 %1463
    %1465 = vrot.lane.b32.xlu0 %v272, 120
    %v1466 = vpop.permute.xlu0 %1465
    %1467 = vrot.lane.b32.xlu0 %v267, 104
    %v1468 = vpop.permute.xlu0 %1467
    %1469 = vrot.lane.b32.xlu0 %v272, 104
    %v1470 = vpop.permute.xlu0 %1469
    %v1471 = vsel %vm379, %v1464, 0
    %v1473 = vsel %vm379, %v1466, 0
    %v1475 = vsel %vm379, %v1468, 0
    %v1477 = vsel %vm379, %v1470, 0
    %1479 = vmatprep.subr.mxu0 0.0
    %1480 = vmatpush1.xpose.msra.mxu0 0.0
    %1481 = vmatprep.subr.mxu0 0.0
    %1482 = vmatpush1.xpose.msra.mxu0 0.0
    %1483 = vmatprep.subr.mxu0 0.0
    %1484 = vmatpush1.xpose.msra.mxu0 0.0
    %1485 = vmatprep.subr.mxu0 0.0
    %1486 = vmatpush1.xpose.msra.mxu0 0.0
    %1487 = vmatprep.subr.mxu0 0.0
    %1488 = vmatpush1.xpose.msra.mxu0 0.0
    %1489 = vmatprep.subr.mxu0 0.0
    %1490 = vmatpush1.xpose.msra.mxu0 0.0
    %1491 = vmatprep.subr.mxu0 0.0
    %1492 = vmatpush1.xpose.msra.mxu0 0.0
    %1493 = vmatprep.subr.mxu0 0.0
    %1494 = vmatpush1.xpose.msra.mxu0 0.0
    %1495 = vmatprep.subr.mxu0 0.0
    %1496 = vmatpush1.xpose.msra.mxu0 0.0
    %1497 = vmatprep.subr.mxu0 0.0
    %1498 = vmatpush1.xpose.msra.mxu0 0.0
    %1499 = vmatprep.subr.mxu0 0.0
    %1500 = vmatpush1.xpose.msra.mxu0 0.0
    %1501 = vmatprep.subr.mxu0 0.0
    %1502 = vmatpush1.xpose.msra.mxu0 0.0
    %1503 = vmatprep.subr.mxu0 0.0
    %1504 = vmatpush1.xpose.msra.mxu0 0.0
    %1505 = vmatprep.subr.mxu0 0.0
    %1506 = vmatpush1.xpose.msra.mxu0 0.0
    %1507 = vmatprep.subr.mxu0 0.0
    %1508 = vmatpush1.xpose.msra.mxu0 %v1477
    %1509 = vmatprep.subr.mxu0 0.0
    %1510 = vmatpush1.xpose.msra.mxu0 %v1475
    %1511 = vmatprep.subr.mxu0 0.0
    %1512 = vmatpush2.xpose.msra.mxu0 0.0
    %1513 = vmatprep.subr.mxu0 0.0
    %1514 = vmatpush2.xpose.msra.mxu0 0.0
    %1515 = vmatprep.subr.mxu0 0.0
    %1516 = vmatpush2.xpose.msra.mxu0 0.0
    %1517 = vmatprep.subr.mxu0 0.0
    %1518 = vmatpush2.xpose.msra.mxu0 0.0
    %1519 = vmatprep.subr.mxu0 0.0
    %1520 = vmatpush2.xpose.msra.mxu0 0.0
    %1521 = vmatprep.subr.mxu0 0.0
    %1522 = vmatpush2.xpose.msra.mxu0 0.0
    %1523 = vmatprep.subr.mxu0 0.0
    %1524 = vmatpush2.xpose.msra.mxu0 0.0
    %1525 = vmatprep.subr.mxu0 0.0
    %1526 = vmatpush2.xpose.msra.mxu0 0.0
    %1527 = vmatprep.subr.mxu0 0.0
    %1528 = vmatpush2.xpose.msra.mxu0 0.0
    %1529 = vmatprep.subr.mxu0 0.0
    %1530 = vmatpush2.xpose.msra.mxu0 0.0
    %1531 = vmatprep.subr.mxu0 0.0
    %1532 = vmatpush2.xpose.msra.mxu0 0.0
    %1533 = vmatprep.subr.mxu0 0.0
    %1534 = vmatpush2.xpose.msra.mxu0 0.0
    %1535 = vmatprep.subr.mxu0 0.0
    %1536 = vmatpush2.xpose.msra.mxu0 0.0
    %1537 = vmatprep.subr.mxu0 0.0
    %1538 = vmatpush2.xpose.msra.mxu0 0.0
    %1539 = vmatprep.subr.mxu0 0.0
    %1540 = vmatpush2.xpose.msra.mxu0 0.0
    %1541 = vmatprep.subr.mxu0 0.0
    %1542 = vmatpush2.xpose.msra.mxu0 0.0
    %1543 = vmatprep.mubr.f32.mxu0 0.0
    %1544 = vmatmul.mubr.f32.gmra.mxu0 %v1471
    %v1545 = vpop.f32.mrf.mxu0
    %v1546 = vadd.f32 0.0, %v1545
    %v1547 = vpop.f32.mrf.mxu0
    %1548 = vmatprep.mubr.f32.mxu0 0.0
    %1549 = vmatmul.mubr.f32.gmra.mxu0 %v1473
    %v1550 = vpop.f32.mrf.mxu0
    %v1551 = vadd.f32 0.0, %v1550
    %v1552 = vpop.f32.mrf.mxu0
    %1553 = vdwg.mxu0
    %v1554 = vmul.f32 %v1546, 0.5
    %v1555 = vmul.f32 %v1551, 0.5
    %v1556 = vadd.f32 %v1461, %v1554
    %v1557 = vadd.f32 %v1462, %v1555
    %v1558 = vadd.f32 %v1556, %v93
    %v1559 = vadd.f32 %v1557, %v94
    %v1560 = vsel %vm193, %v1558, -inf
    %1561 = vmax.xlane.f32.xlu0 %v1560
    %v1562 = vpop.xlane.xlu0 %1561
    %v1563 = vsel %vm193, %v1559, -inf
    %1564 = vmax.xlane.f32.xlu0 %v1563
    %v1565 = vpop.xlane.xlu0 %1564
    %v1566 = vsub.f32 %v1558, %v1562
    %v1567 = vsub.f32 %v1559, %v1565
    %v1568 = vmul.f32 %v1566, 1.442695
    %v1569 = vpow.pop %v1568
    %v1570 = vmul.f32 %v1567, 1.442695
    %v1571 = vpow.pop %v1570
    %v1572 = vsel %vm193, %v1569, 0.0
    %1573 = vadd.xlane.f32.xlu0 %v1572
    %v1574 = vpop.xlane.xlu0 %1573
    %v1575 = vsel %vm193, %v1571, 0.0
    %1576 = vadd.xlane.f32.xlu0 %v1575
    %v1577 = vpop.xlane.xlu0 %1576
    %v1578 = vrcp.pop %v1574
    %v1579 = vrcp.pop %v1577
    %v1580 = vmul.f32 %v1569, %v1578
    %v1581 = vmul.f32 %v1571, %v1579
    %1582 = vrot.lane.b32.xlu0 %v178, 48
    %v1583 = vpop.permute.xlu0 %1582
    %1584 = vrot.lane.b32.xlu0 %v183, 48
    %v1585 = vpop.permute.xlu0 %1584
    %v1589 = vsel %vm193, %v1580, 0
    %v1592 = vsel %vm193, %v1581, 0
    %1594 = vmatprep.subr.mxu0 0.0
    %1595 = vmatpush1.msra.mxu0 0.0
    %1596 = vmatprep.subr.mxu0 0.0
    %1597 = vmatpush1.msra.mxu0 0.0
    %1598 = vmatprep.subr.mxu0 0.0
    %1599 = vmatpush1.msra.mxu0 0.0
    %1600 = vmatprep.subr.mxu0 0.0
    %1601 = vmatpush1.msra.mxu0 0.0
    %1602 = vmatprep.subr.mxu0 0.0
    %1603 = vmatpush1.msra.mxu0 0.0
    %1604 = vmatprep.subr.mxu0 0.0
    %1605 = vmatpush1.msra.mxu0 0.0
    %1606 = vmatprep.subr.mxu0 0.0
    %1607 = vmatpush1.msra.mxu0 0.0
    %1608 = vmatprep.subr.mxu0 0.0
    %1609 = vmatpush1.msra.mxu0 0.0
    %1610 = vmatprep.subr.mxu0 0.0
    %1611 = vmatpush1.msra.mxu0 0.0
    %1612 = vmatprep.subr.mxu0 0.0
    %1613 = vmatpush1.msra.mxu0 0.0
    %1614 = vmatprep.subr.mxu0 0.0
    %1615 = vmatpush1.msra.mxu0 0.0
    %1616 = vmatprep.subr.mxu0 0.0
    %1617 = vmatpush1.msra.mxu0 0.0
    %1618 = vmatprep.subr.mxu0 0.0
    %1619 = vmatpush1.msra.mxu0 0.0
    %1620 = vmatprep.subr.mxu0 0.0
    %1621 = vmatpush1.msra.mxu0 0.0
    %1622 = vmatprep.subr.mxu0 0.0
    %1623 = vmatpush1.msra.mxu0 %v1585
    %1624 = vmatprep.subr.mxu0 0.0
    %1625 = vmatpush1.msra.mxu0 %v1583
    %1626 = vmatprep.subr.mxu0 0.0
    %1627 = vmatpush2.msra.mxu0 0.0
    %1628 = vmatprep.subr.mxu0 0.0
    %1629 = vmatpush2.msra.mxu0 0.0
    %1630 = vmatprep.subr.mxu0 0.0
    %1631 = vmatpush2.msra.mxu0 0.0
    %1632 = vmatprep.subr.mxu0 0.0
    %1633 = vmatpush2.msra.mxu0 0.0
    %1634 = vmatprep.subr.mxu0 0.0
    %1635 = vmatpush2.msra.mxu0 0.0
    %1636 = vmatprep.subr.mxu0 0.0
    %1637 = vmatpush2.msra.mxu0 0.0
    %1638 = vmatprep.subr.mxu0 0.0
    %1639 = vmatpush2.msra.mxu0 0.0
    %1640 = vmatprep.subr.mxu0 0.0
    %1641 = vmatpush2.msra.mxu0 0.0
    %1642 = vmatprep.subr.mxu0 0.0
    %1643 = vmatpush2.msra.mxu0 0.0
    %1644 = vmatprep.subr.mxu0 0.0
    %1645 = vmatpush2.msra.mxu0 0.0
    %1646 = vmatprep.subr.mxu0 0.0
    %1647 = vmatpush2.msra.mxu0 0.0
    %1648 = vmatprep.subr.mxu0 0.0
    %1649 = vmatpush2.msra.mxu0 0.0
    %1650 = vmatprep.subr.mxu0 0.0
    %1651 = vmatpush2.msra.mxu0 0.0
    %1652 = vmatprep.subr.mxu0 0.0
    %1653 = vmatpush2.msra.mxu0 0.0
    %1654 = vmatprep.subr.mxu0 0.0
    %1655 = vmatpush2.msra.mxu0 0.0
    %1656 = vmatprep.subr.mxu0 0.0
    %1657 = vmatpush2.msra.mxu0 0.0
    %1658 = vmatprep.mubr.f32.mxu0 0.0
    %1659 = vmatmul.mubr.f32.gmra.mxu0 %v1589
    %v1660 = vpop.f32.mrf.mxu0
    %v1661 = vadd.f32 0.0, %v1660
    %v1662 = vpop.f32.mrf.mxu0
    %1663 = vmatprep.mubr.f32.mxu0 0.0
    %1664 = vmatmul.mubr.f32.gmra.mxu0 %v1592
    %v1665 = vpop.f32.mrf.mxu0
    %v1666 = vadd.f32 0.0, %v1665
    %v1667 = vpop.f32.mrf.mxu0
    %1668 = vdwg.mxu0
    %1669 = vrot.lane.b32.xlu0 %v267, 88
    %v1670 = vpop.permute.xlu0 %1669
    %1671 = vrot.lane.b32.xlu0 %v272, 88
    %v1672 = vpop.permute.xlu0 %1671
    %1675 = vmatprep.subr.mxu0 0.0
    %1676 = vmatpush1.msra.mxu0 0.0
    %1677 = vmatprep.subr.mxu0 0.0
    %1678 = vmatpush1.msra.mxu0 0.0
    %1679 = vmatprep.subr.mxu0 0.0
    %1680 = vmatpush1.msra.mxu0 0.0
    %1681 = vmatprep.subr.mxu0 0.0
    %1682 = vmatpush1.msra.mxu0 0.0
    %1683 = vmatprep.subr.mxu0 0.0
    %1684 = vmatpush1.msra.mxu0 0.0
    %1685 = vmatprep.subr.mxu0 0.0
    %1686 = vmatpush1.msra.mxu0 0.0
    %1687 = vmatprep.subr.mxu0 0.0
    %1688 = vmatpush1.msra.mxu0 0.0
    %1689 = vmatprep.subr.mxu0 0.0
    %1690 = vmatpush1.msra.mxu0 0.0
    %1691 = vmatprep.subr.mxu0 0.0
    %1692 = vmatpush1.msra.mxu0 0.0
    %1693 = vmatprep.subr.mxu0 0.0
    %1694 = vmatpush1.msra.mxu0 0.0
    %1695 = vmatprep.subr.mxu0 0.0
    %1696 = vmatpush1.msra.mxu0 0.0
    %1697 = vmatprep.subr.mxu0 0.0
    %1698 = vmatpush1.msra.mxu0 0.0
    %1699 = vmatprep.subr.mxu0 0.0
    %1700 = vmatpush1.msra.mxu0 0.0
    %1701 = vmatprep.subr.mxu0 0.0
    %1702 = vmatpush1.msra.mxu0 0.0
    %1703 = vmatprep.subr.mxu0 0.0
    %1704 = vmatpush1.msra.mxu0 %v1672
    %1705 = vmatprep.subr.mxu0 0.0
    %1706 = vmatpush1.msra.mxu0 %v1670
    %1707 = vmatprep.subr.mxu0 0.0
    %1708 = vmatpush2.msra.mxu0 0.0
    %1709 = vmatprep.subr.mxu0 0.0
    %1710 = vmatpush2.msra.mxu0 0.0
    %1711 = vmatprep.subr.mxu0 0.0
    %1712 = vmatpush2.msra.mxu0 0.0
    %1713 = vmatprep.subr.mxu0 0.0
    %1714 = vmatpush2.msra.mxu0 0.0
    %1715 = vmatprep.subr.mxu0 0.0
    %1716 = vmatpush2.msra.mxu0 0.0
    %1717 = vmatprep.subr.mxu0 0.0
    %1718 = vmatpush2.msra.mxu0 0.0
    %1719 = vmatprep.subr.mxu0 0.0
    %1720 = vmatpush2.msra.mxu0 0.0
    %1721 = vmatprep.subr.mxu0 0.0
    %1722 = vmatpush2.msra.mxu0 0.0
    %1723 = vmatprep.subr.mxu0 0.0
    %1724 = vmatpush2.msra.mxu0 0.0
    %1725 = vmatprep.subr.mxu0 0.0
    %1726 = vmatpush2.msra.mxu0 0.0
    %1727 = vmatprep.subr.mxu0 0.0
    %1728 = vmatpush2.msra.mxu0 0.0
    %1729 = vmatprep.subr.mxu0 0.0
    %1730 = vmatpush2.msra.mxu0 0.0
    %1731 = vmatprep.subr.mxu0 0.0
    %1732 = vmatpush2.msra.mxu0 0.0
    %1733 = vmatprep.subr.mxu0 0.0
    %1734 = vmatpush2.msra.mxu0 0.0
    %1735 = vmatprep.subr.mxu0 0.0
    %1736 = vmatpush2.msra.mxu0 0.0
    %1737 = vmatprep.subr.mxu0 0.0
    %1738 = vmatpush2.msra.mxu0 0.0
    %1739 = vmatprep.mubr.f32.mxu0 0.0
    %1740 = vmatmul.mubr.f32.gmra.mxu0 %v1589
    %v1741 = vpop.f32.mrf.mxu0
    %v1742 = vadd.f32 0.0, %v1741
    %v1743 = vpop.f32.mrf.mxu0
    %1744 = vmatprep.mubr.f32.mxu0 0.0
    %1745 = vmatmul.mubr.f32.gmra.mxu0 %v1592
    %v1746 = vpop.f32.mrf.mxu0
    %v1747 = vadd.f32 0.0, %v1746
    %v1748 = vpop.f32.mrf.mxu0
    %1749 = vdwg.mxu0
    %v1751 = vsel %vm287, %v1661, 0
    %v1754 = vsel %vm287, %v1666, 0
    %1756 = vmatprep.subr.mxu0 0.0
    %1757 = vmatpush1.msra.mxu0 0.0
    %1758 = vmatprep.subr.mxu0 0.0
    %1759 = vmatpush1.msra.mxu0 0.0
    %1760 = vmatprep.subr.mxu0 0.0
    %1761 = vmatpush1.msra.mxu0 0.0
    %1762 = vmatprep.subr.mxu0 0.0
    %1763 = vmatpush1.msra.mxu0 0.0
    %1764 = vmatprep.subr.mxu0 0.0
    %1765 = vmatpush1.msra.mxu0 0.0
    %1766 = vmatprep.subr.mxu0 0.0
    %1767 = vmatpush1.msra.mxu0 0.0
    %1768 = vmatprep.subr.mxu0 0.0
    %1769 = vmatpush1.msra.mxu0 0.0
    %1770 = vmatprep.subr.mxu0 0.0
    %1771 = vmatpush1.msra.mxu0 0.0
    %1772 = vmatprep.subr.mxu0 0.0
    %1773 = vmatpush1.msra.mxu0 0.0
    %1774 = vmatprep.subr.mxu0 0.0
    %1775 = vmatpush1.msra.mxu0 0.0
    %1776 = vmatprep.subr.mxu0 0.0
    %1777 = vmatpush1.msra.mxu0 0.0
    %1778 = vmatprep.subr.mxu0 0.0
    %1779 = vmatpush1.msra.mxu0 0.0
    %1780 = vmatprep.subr.mxu0 0.0
    %1781 = vmatpush1.msra.mxu0 0.0
    %1782 = vmatprep.subr.mxu0 0.0
    %1783 = vmatpush1.msra.mxu0 0.0
    %1784 = vmatprep.subr.mxu0 0.0
    %1785 = vmatpush1.msra.mxu0 0.0
    %1786 = vmatprep.subr.mxu0 0.0
    %1787 = vmatpush1.msra.mxu0 %v277
    %1788 = vmatprep.subr.mxu0 0.0
    %1789 = vmatpush2.msra.mxu0 0.0
    %1790 = vmatprep.subr.mxu0 0.0
    %1791 = vmatpush2.msra.mxu0 0.0
    %1792 = vmatprep.subr.mxu0 0.0
    %1793 = vmatpush2.msra.mxu0 0.0
    %1794 = vmatprep.subr.mxu0 0.0
    %1795 = vmatpush2.msra.mxu0 0.0
    %1796 = vmatprep.subr.mxu0 0.0
    %1797 = vmatpush2.msra.mxu0 0.0
    %1798 = vmatprep.subr.mxu0 0.0
    %1799 = vmatpush2.msra.mxu0 0.0
    %1800 = vmatprep.subr.mxu0 0.0
    %1801 = vmatpush2.msra.mxu0 0.0
    %1802 = vmatprep.subr.mxu0 0.0
    %1803 = vmatpush2.msra.mxu0 0.0
    %1804 = vmatprep.subr.mxu0 0.0
    %1805 = vmatpush2.msra.mxu0 0.0
    %1806 = vmatprep.subr.mxu0 0.0
    %1807 = vmatpush2.msra.mxu0 0.0
    %1808 = vmatprep.subr.mxu0 0.0
    %1809 = vmatpush2.msra.mxu0 0.0
    %1810 = vmatprep.subr.mxu0 0.0
    %1811 = vmatpush2.msra.mxu0 0.0
    %1812 = vmatprep.subr.mxu0 0.0
    %1813 = vmatpush2.msra.mxu0 0.0
    %1814 = vmatprep.subr.mxu0 0.0
    %1815 = vmatpush2.msra.mxu0 0.0
    %1816 = vmatprep.subr.mxu0 0.0
    %1817 = vmatpush2.msra.mxu0 0.0
    %1818 = vmatprep.subr.mxu0 0.0
    %1819 = vmatpush2.msra.mxu0 0.0
    %1820 = vmatprep.mubr.f32.mxu0 0.0
    %1821 = vmatmul.mubr.f32.gmra.mxu0 %v1751
    %v1822 = vpop.f32.mrf.mxu0
    %v1823 = vadd.f32 0.0, %v1822
    %v1824 = vpop.f32.mrf.mxu0
    %1825 = vmatprep.mubr.f32.mxu0 0.0
    %1826 = vmatmul.mubr.f32.gmra.mxu0 %v1754
    %v1827 = vpop.f32.mrf.mxu0
    %v1828 = vadd.f32 0.0, %v1827
    %v1829 = vpop.f32.mrf.mxu0
    %1830 = vdwg.mxu0
    %v1831 = vadd.f32 %v1193, %v1823
    %v1832 = vadd.f32 %v1198, %v1828
    %v1834 = vsel %vm379, %v1742, 0
    %v1837 = vsel %vm379, %v1747, 0
    %v1840 = vsel %vm1209, %v280, 0
    %1842 = vmatprep.subr.mxu0 0.0
    %1843 = vmatpush1.msra.mxu0 0.0
    %1844 = vmatprep.subr.mxu0 0.0
    %1845 = vmatpush1.msra.mxu0 0.0
    %1846 = vmatprep.subr.mxu0 0.0
    %1847 = vmatpush1.msra.mxu0 0.0
    %1848 = vmatprep.subr.mxu0 0.0
    %1849 = vmatpush1.msra.mxu0 0.0
    %1850 = vmatprep.subr.mxu0 0.0
    %1851 = vmatpush1.msra.mxu0 0.0
    %1852 = vmatprep.subr.mxu0 0.0
    %1853 = vmatpush1.msra.mxu0 0.0
    %1854 = vmatprep.subr.mxu0 0.0
    %1855 = vmatpush1.msra.mxu0 0.0
    %1856 = vmatprep.subr.mxu0 0.0
    %1857 = vmatpush1.msra.mxu0 0.0
    %1858 = vmatprep.subr.mxu0 0.0
    %1859 = vmatpush1.msra.mxu0 0.0
    %1860 = vmatprep.subr.mxu0 0.0
    %1861 = vmatpush1.msra.mxu0 0.0
    %1862 = vmatprep.subr.mxu0 0.0
    %1863 = vmatpush1.msra.mxu0 0.0
    %1864 = vmatprep.subr.mxu0 0.0
    %1865 = vmatpush1.msra.mxu0 0.0
    %1866 = vmatprep.subr.mxu0 0.0
    %1867 = vmatpush1.msra.mxu0 0.0
    %1868 = vmatprep.subr.mxu0 0.0
    %1869 = vmatpush1.msra.mxu0 0.0
    %1870 = vmatprep.subr.mxu0 0.0
    %1871 = vmatpush1.msra.mxu0 0.0
    %1872 = vmatprep.subr.mxu0 0.0
    %1873 = vmatpush1.msra.mxu0 %v1840
    %1874 = vmatprep.subr.mxu0 0.0
    %1875 = vmatpush2.msra.mxu0 0.0
    %1876 = vmatprep.subr.mxu0 0.0
    %1877 = vmatpush2.msra.mxu0 0.0
    %1878 = vmatprep.subr.mxu0 0.0
    %1879 = vmatpush2.msra.mxu0 0.0
    %1880 = vmatprep.subr.mxu0 0.0
    %1881 = vmatpush2.msra.mxu0 0.0
    %1882 = vmatprep.subr.mxu0 0.0
    %1883 = vmatpush2.msra.mxu0 0.0
    %1884 = vmatprep.subr.mxu0 0.0
    %1885 = vmatpush2.msra.mxu0 0.0
    %1886 = vmatprep.subr.mxu0 0.0
    %1887 = vmatpush2.msra.mxu0 0.0
    %1888 = vmatprep.subr.mxu0 0.0
    %1889 = vmatpush2.msra.mxu0 0.0
    %1890 = vmatprep.subr.mxu0 0.0
    %1891 = vmatpush2.msra.mxu0 0.0
    %1892 = vmatprep.subr.mxu0 0.0
    %1893 = vmatpush2.msra.mxu0 0.0
    %1894 = vmatprep.subr.mxu0 0.0
    %1895 = vmatpush2.msra.mxu0 0.0
    %1896 = vmatprep.subr.mxu0 0.0
    %1897 = vmatpush2.msra.mxu0 0.0
    %1898 = vmatprep.subr.mxu0 0.0
    %1899 = vmatpush2.msra.mxu0 0.0
    %1900 = vmatprep.subr.mxu0 0.0
    %1901 = vmatpush2.msra.mxu0 0.0
    %1902 = vmatprep.subr.mxu0 0.0
    %1903 = vmatpush2.msra.mxu0 0.0
    %1904 = vmatprep.subr.mxu0 0.0
    %1905 = vmatpush2.msra.mxu0 0.0
    %1906 = vmatprep.mubr.f32.mxu0 0.0
    %1907 = vmatmul.mubr.f32.gmra.mxu0 %v1834
    %v1908 = vpop.f32.mrf.mxu0
    %v1909 = vadd.f32 0.0, %v1908
    %v1910 = vpop.f32.mrf.mxu0
    %1911 = vmatprep.mubr.f32.mxu0 0.0
    %1912 = vmatmul.mubr.f32.gmra.mxu0 %v1837
    %v1913 = vpop.f32.mrf.mxu0
    %v1914 = vadd.f32 0.0, %v1913
    %v1915 = vpop.f32.mrf.mxu0
    %1916 = vdwg.mxu0
    %v1917 = vadd.f32 %v1362, %v1909
    %v1918 = vadd.f32 %v1367, %v1914
    %1919 = vrot.lane.b32.xlu0 %v178, 104
    %v1920 = vpop.permute.xlu0 %1919
    %1921 = vrot.lane.b32.xlu0 %v183, 104
    %v1922 = vpop.permute.xlu0 %1921
    %1923 = vrot.lane.b32.xlu0 %v178, 72
    %v1924 = vpop.permute.xlu0 %1923
    %1925 = vrot.lane.b32.xlu0 %v183, 72
    %v1926 = vpop.permute.xlu0 %1925
    %v1927 = vsel %vm287, %v1920, 0
    %v1929 = vsel %vm287, %v1922, 0
    %v1931 = vsel %vm287, %v1924, 0
    %v1933 = vsel %vm287, %v1926, 0
    %1935 = vmatprep.subr.mxu0 0.0
    %1936 = vmatpush1.xpose.msra.mxu0 0.0
    %1937 = vmatprep.subr.mxu0 0.0
    %1938 = vmatpush1.xpose.msra.mxu0 0.0
    %1939 = vmatprep.subr.mxu0 0.0
    %1940 = vmatpush1.xpose.msra.mxu0 0.0
    %1941 = vmatprep.subr.mxu0 0.0
    %1942 = vmatpush1.xpose.msra.mxu0 0.0
    %1943 = vmatprep.subr.mxu0 0.0
    %1944 = vmatpush1.xpose.msra.mxu0 0.0
    %1945 = vmatprep.subr.mxu0 0.0
    %1946 = vmatpush1.xpose.msra.mxu0 0.0
    %1947 = vmatprep.subr.mxu0 0.0
    %1948 = vmatpush1.xpose.msra.mxu0 0.0
    %1949 = vmatprep.subr.mxu0 0.0
    %1950 = vmatpush1.xpose.msra.mxu0 0.0
    %1951 = vmatprep.subr.mxu0 0.0
    %1952 = vmatpush1.xpose.msra.mxu0 0.0
    %1953 = vmatprep.subr.mxu0 0.0
    %1954 = vmatpush1.xpose.msra.mxu0 0.0
    %1955 = vmatprep.subr.mxu0 0.0
    %1956 = vmatpush1.xpose.msra.mxu0 0.0
    %1957 = vmatprep.subr.mxu0 0.0
    %1958 = vmatpush1.xpose.msra.mxu0 0.0
    %1959 = vmatprep.subr.mxu0 0.0
    %1960 = vmatpush1.xpose.msra.mxu0 0.0
    %1961 = vmatprep.subr.mxu0 0.0
    %1962 = vmatpush1.xpose.msra.mxu0 0.0
    %1963 = vmatprep.subr.mxu0 0.0
    %1964 = vmatpush1.xpose.msra.mxu0 %v1933
    %1965 = vmatprep.subr.mxu0 0.0
    %1966 = vmatpush1.xpose.msra.mxu0 %v1931
    %1967 = vmatprep.subr.mxu0 0.0
    %1968 = vmatpush2.xpose.msra.mxu0 0.0
    %1969 = vmatprep.subr.mxu0 0.0
    %1970 = vmatpush2.xpose.msra.mxu0 0.0
    %1971 = vmatprep.subr.mxu0 0.0
    %1972 = vmatpush2.xpose.msra.mxu0 0.0
    %1973 = vmatprep.subr.mxu0 0.0
    %1974 = vmatpush2.xpose.msra.mxu0 0.0
    %1975 = vmatprep.subr.mxu0 0.0
    %1976 = vmatpush2.xpose.msra.mxu0 0.0
    %1977 = vmatprep.subr.mxu0 0.0
    %1978 = vmatpush2.xpose.msra.mxu0 0.0
    %1979 = vmatprep.subr.mxu0 0.0
    %1980 = vmatpush2.xpose.msra.mxu0 0.0
    %1981 = vmatprep.subr.mxu0 0.0
    %1982 = vmatpush2.xpose.msra.mxu0 0.0
    %1983 = vmatprep.subr.mxu0 0.0
    %1984 = vmatpush2.xpose.msra.mxu0 0.0
    %1985 = vmatprep.subr.mxu0 0.0
    %1986 = vmatpush2.xpose.msra.mxu0 0.0
    %1987 = vmatprep.subr.mxu0 0.0
    %1988 = vmatpush2.xpose.msra.mxu0 0.0
    %1989 = vmatprep.subr.mxu0 0.0
    %1990 = vmatpush2.xpose.msra.mxu0 0.0
    %1991 = vmatprep.subr.mxu0 0.0
    %1992 = vmatpush2.xpose.msra.mxu0 0.0
    %1993 = vmatprep.subr.mxu0 0.0
    %1994 = vmatpush2.xpose.msra.mxu0 0.0
    %1995 = vmatprep.subr.mxu0 0.0
    %1996 = vmatpush2.xpose.msra.mxu0 0.0
    %1997 = vmatprep.subr.mxu0 0.0
    %1998 = vmatpush2.xpose.msra.mxu0 0.0
    %1999 = vmatprep.mubr.f32.mxu0 0.0
    %2000 = vmatmul.mubr.f32.gmra.mxu0 %v1927
    %v2001 = vpop.f32.mrf.mxu0
    %v2002 = vadd.f32 0.0, %v2001
    %v2003 = vpop.f32.mrf.mxu0
    %2004 = vmatprep.mubr.f32.mxu0 0.0
    %2005 = vmatmul.mubr.f32.gmra.mxu0 %v1929
    %v2006 = vpop.f32.mrf.mxu0
    %v2007 = vadd.f32 0.0, %v2006
    %v2008 = vpop.f32.mrf.mxu0
    %2009 = vdwg.mxu0
    %v2010 = vmul.f32 %v2002, 0.35355338
    %v2011 = vmul.f32 %v2007, 0.35355338
    %2012 = vrot.lane.b32.xlu0 %v267, 116
    %v2013 = vpop.permute.xlu0 %2012
    %2014 = vrot.lane.b32.xlu0 %v272, 116
    %v2015 = vpop.permute.xlu0 %2014
    %2016 = vrot.lane.b32.xlu0 %v267, 100
    %v2017 = vpop.permute.xlu0 %2016
    %2018 = vrot.lane.b32.xlu0 %v272, 100
    %v2019 = vpop.permute.xlu0 %2018
    %v2020 = vsel %vm379, %v2013, 0
    %v2022 = vsel %vm379, %v2015, 0
    %v2024 = vsel %vm379, %v2017, 0
    %v2026 = vsel %vm379, %v2019, 0
    %2028 = vmatprep.subr.mxu0 0.0
    %2029 = vmatpush1.xpose.msra.mxu0 0.0
    %2030 = vmatprep.subr.mxu0 0.0
    %2031 = vmatpush1.xpose.msra.mxu0 0.0
    %2032 = vmatprep.subr.mxu0 0.0
    %2033 = vmatpush1.xpose.msra.mxu0 0.0
    %2034 = vmatprep.subr.mxu0 0.0
    %2035 = vmatpush1.xpose.msra.mxu0 0.0
    %2036 = vmatprep.subr.mxu0 0.0
    %2037 = vmatpush1.xpose.msra.mxu0 0.0
    %2038 = vmatprep.subr.mxu0 0.0
    %2039 = vmatpush1.xpose.msra.mxu0 0.0
    %2040 = vmatprep.subr.mxu0 0.0
    %2041 = vmatpush1.xpose.msra.mxu0 0.0
    %2042 = vmatprep.subr.mxu0 0.0
    %2043 = vmatpush1.xpose.msra.mxu0 0.0
    %2044 = vmatprep.subr.mxu0 0.0
    %2045 = vmatpush1.xpose.msra.mxu0 0.0
    %2046 = vmatprep.subr.mxu0 0.0
    %2047 = vmatpush1.xpose.msra.mxu0 0.0
    %2048 = vmatprep.subr.mxu0 0.0
    %2049 = vmatpush1.xpose.msra.mxu0 0.0
    %2050 = vmatprep.subr.mxu0 0.0
    %2051 = vmatpush1.xpose.msra.mxu0 0.0
    %2052 = vmatprep.subr.mxu0 0.0
    %2053 = vmatpush1.xpose.msra.mxu0 0.0
    %2054 = vmatprep.subr.mxu0 0.0
    %2055 = vmatpush1.xpose.msra.mxu0 0.0
    %2056 = vmatprep.subr.mxu0 0.0
    %2057 = vmatpush1.xpose.msra.mxu0 %v2026
    %2058 = vmatprep.subr.mxu0 0.0
    %2059 = vmatpush1.xpose.msra.mxu0 %v2024
    %2060 = vmatprep.subr.mxu0 0.0
    %2061 = vmatpush2.xpose.msra.mxu0 0.0
    %2062 = vmatprep.subr.mxu0 0.0
    %2063 = vmatpush2.xpose.msra.mxu0 0.0
    %2064 = vmatprep.subr.mxu0 0.0
    %2065 = vmatpush2.xpose.msra.mxu0 0.0
    %2066 = vmatprep.subr.mxu0 0.0
    %2067 = vmatpush2.xpose.msra.mxu0 0.0
    %2068 = vmatprep.subr.mxu0 0.0
    %2069 = vmatpush2.xpose.msra.mxu0 0.0
    %2070 = vmatprep.subr.mxu0 0.0
    %2071 = vmatpush2.xpose.msra.mxu0 0.0
    %2072 = vmatprep.subr.mxu0 0.0
    %2073 = vmatpush2.xpose.msra.mxu0 0.0
    %2074 = vmatprep.subr.mxu0 0.0
    %2075 = vmatpush2.xpose.msra.mxu0 0.0
    %2076 = vmatprep.subr.mxu0 0.0
    %2077 = vmatpush2.xpose.msra.mxu0 0.0
    %2078 = vmatprep.subr.mxu0 0.0
    %2079 = vmatpush2.xpose.msra.mxu0 0.0
    %2080 = vmatprep.subr.mxu0 0.0
    %2081 = vmatpush2.xpose.msra.mxu0 0.0
    %2082 = vmatprep.subr.mxu0 0.0
    %2083 = vmatpush2.xpose.msra.mxu0 0.0
    %2084 = vmatprep.subr.mxu0 0.0
    %2085 = vmatpush2.xpose.msra.mxu0 0.0
    %2086 = vmatprep.subr.mxu0 0.0
    %2087 = vmatpush2.xpose.msra.mxu0 0.0
    %2088 = vmatprep.subr.mxu0 0.0
    %2089 = vmatpush2.xpose.msra.mxu0 0.0
    %2090 = vmatprep.subr.mxu0 0.0
    %2091 = vmatpush2.xpose.msra.mxu0 0.0
    %2092 = vmatprep.mubr.f32.mxu0 0.0
    %2093 = vmatmul.mubr.f32.gmra.mxu0 %v2020
    %v2094 = vpop.f32.mrf.mxu0
    %v2095 = vadd.f32 0.0, %v2094
    %v2096 = vpop.f32.mrf.mxu0
    %2097 = vmatprep.mubr.f32.mxu0 0.0
    %2098 = vmatmul.mubr.f32.gmra.mxu0 %v2022
    %v2099 = vpop.f32.mrf.mxu0
    %v2100 = vadd.f32 0.0, %v2099
    %v2101 = vpop.f32.mrf.mxu0
    %2102 = vdwg.mxu0
    %v2103 = vmul.f32 %v2095, 0.5
    %v2104 = vmul.f32 %v2100, 0.5
    %v2105 = vadd.f32 %v2010, %v2103
    %v2106 = vadd.f32 %v2011, %v2104
    %v2107 = vadd.f32 %v2105, %v93
    %v2108 = vadd.f32 %v2106, %v94
    %v2109 = vsel %vm193, %v2107, -inf
    %2110 = vmax.xlane.f32.xlu0 %v2109
    %v2111 = vpop.xlane.xlu0 %2110
    %v2112 = vsel %vm193, %v2108, -inf
    %2113 = vmax.xlane.f32.xlu0 %v2112
    %v2114 = vpop.xlane.xlu0 %2113
    %v2115 = vsub.f32 %v2107, %v2111
    %v2116 = vsub.f32 %v2108, %v2114
    %v2117 = vmul.f32 %v2115, 1.442695
    %v2118 = vpow.pop %v2117
    %v2119 = vmul.f32 %v2116, 1.442695
    %v2120 = vpow.pop %v2119
    %v2121 = vsel %vm193, %v2118, 0.0
    %2122 = vadd.xlane.f32.xlu0 %v2121
    %v2123 = vpop.xlane.xlu0 %2122
    %v2124 = vsel %vm193, %v2120, 0.0
    %2125 = vadd.xlane.f32.xlu0 %v2124
    %v2126 = vpop.xlane.xlu0 %2125
    %v2127 = vrcp.pop %v2123
    %v2128 = vrcp.pop %v2126
    %v2129 = vmul.f32 %v2118, %v2127
    %v2130 = vmul.f32 %v2120, %v2128
    %2131 = vrot.lane.b32.xlu0 %v178, 40
    %v2132 = vpop.permute.xlu0 %2131
    %2133 = vrot.lane.b32.xlu0 %v183, 40
    %v2134 = vpop.permute.xlu0 %2133
    %v2138 = vsel %vm193, %v2129, 0
    %v2141 = vsel %vm193, %v2130, 0
    %2143 = vmatprep.subr.mxu0 0.0
    %2144 = vmatpush1.msra.mxu0 0.0
    %2145 = vmatprep.subr.mxu0 0.0
    %2146 = vmatpush1.msra.mxu0 0.0
    %2147 = vmatprep.subr.mxu0 0.0
    %2148 = vmatpush1.msra.mxu0 0.0
    %2149 = vmatprep.subr.mxu0 0.0
    %2150 = vmatpush1.msra.mxu0 0.0
    %2151 = vmatprep.subr.mxu0 0.0
    %2152 = vmatpush1.msra.mxu0 0.0
    %2153 = vmatprep.subr.mxu0 0.0
    %2154 = vmatpush1.msra.mxu0 0.0
    %2155 = vmatprep.subr.mxu0 0.0
    %2156 = vmatpush1.msra.mxu0 0.0
    %2157 = vmatprep.subr.mxu0 0.0
    %2158 = vmatpush1.msra.mxu0 0.0
    %2159 = vmatprep.subr.mxu0 0.0
    %2160 = vmatpush1.msra.mxu0 0.0
    %2161 = vmatprep.subr.mxu0 0.0
    %2162 = vmatpush1.msra.mxu0 0.0
    %2163 = vmatprep.subr.mxu0 0.0
    %2164 = vmatpush1.msra.mxu0 0.0
    %2165 = vmatprep.subr.mxu0 0.0
    %2166 = vmatpush1.msra.mxu0 0.0
    %2167 = vmatprep.subr.mxu0 0.0
    %2168 = vmatpush1.msra.mxu0 0.0
    %2169 = vmatprep.subr.mxu0 0.0
    %2170 = vmatpush1.msra.mxu0 0.0
    %2171 = vmatprep.subr.mxu0 0.0
    %2172 = vmatpush1.msra.mxu0 %v2134
    %2173 = vmatprep.subr.mxu0 0.0
    %2174 = vmatpush1.msra.mxu0 %v2132
    %2175 = vmatprep.subr.mxu0 0.0
    %2176 = vmatpush2.msra.mxu0 0.0
    %2177 = vmatprep.subr.mxu0 0.0
    %2178 = vmatpush2.msra.mxu0 0.0
    %2179 = vmatprep.subr.mxu0 0.0
    %2180 = vmatpush2.msra.mxu0 0.0
    %2181 = vmatprep.subr.mxu0 0.0
    %2182 = vmatpush2.msra.mxu0 0.0
    %2183 = vmatprep.subr.mxu0 0.0
    %2184 = vmatpush2.msra.mxu0 0.0
    %2185 = vmatprep.subr.mxu0 0.0
    %2186 = vmatpush2.msra.mxu0 0.0
    %2187 = vmatprep.subr.mxu0 0.0
    %2188 = vmatpush2.msra.mxu0 0.0
    %2189 = vmatprep.subr.mxu0 0.0
    %2190 = vmatpush2.msra.mxu0 0.0
    %2191 = vmatprep.subr.mxu0 0.0
    %2192 = vmatpush2.msra.mxu0 0.0
    %2193 = vmatprep.subr.mxu0 0.0
    %2194 = vmatpush2.msra.mxu0 0.0
    %2195 = vmatprep.subr.mxu0 0.0
    %2196 = vmatpush2.msra.mxu0 0.0
    %2197 = vmatprep.subr.mxu0 0.0
    %2198 = vmatpush2.msra.mxu0 0.0
    %2199 = vmatprep.subr.mxu0 0.0
    %2200 = vmatpush2.msra.mxu0 0.0
    %2201 = vmatprep.subr.mxu0 0.0
    %2202 = vmatpush2.msra.mxu0 0.0
    %2203 = vmatprep.subr.mxu0 0.0
    %2204 = vmatpush2.msra.mxu0 0.0
    %2205 = vmatprep.subr.mxu0 0.0
    %2206 = vmatpush2.msra.mxu0 0.0
    %2207 = vmatprep.mubr.f32.mxu0 0.0
    %2208 = vmatmul.mubr.f32.gmra.mxu0 %v2138
    %v2209 = vpop.f32.mrf.mxu0
    %v2210 = vadd.f32 0.0, %v2209
    %v2211 = vpop.f32.mrf.mxu0
    %2212 = vmatprep.mubr.f32.mxu0 0.0
    %2213 = vmatmul.mubr.f32.gmra.mxu0 %v2141
    %v2214 = vpop.f32.mrf.mxu0
    %v2215 = vadd.f32 0.0, %v2214
    %v2216 = vpop.f32.mrf.mxu0
    %2217 = vdwg.mxu0
    %2218 = vrot.lane.b32.xlu0 %v267, 84
    %v2219 = vpop.permute.xlu0 %2218
    %2220 = vrot.lane.b32.xlu0 %v272, 84
    %v2221 = vpop.permute.xlu0 %2220
    %2224 = vmatprep.subr.mxu0 0.0
    %2225 = vmatpush1.msra.mxu0 0.0
    %2226 = vmatprep.subr.mxu0 0.0
    %2227 = vmatpush1.msra.mxu0 0.0
    %2228 = vmatprep.subr.mxu0 0.0
    %2229 = vmatpush1.msra.mxu0 0.0
    %2230 = vmatprep.subr.mxu0 0.0
    %2231 = vmatpush1.msra.mxu0 0.0
    %2232 = vmatprep.subr.mxu0 0.0
    %2233 = vmatpush1.msra.mxu0 0.0
    %2234 = vmatprep.subr.mxu0 0.0
    %2235 = vmatpush1.msra.mxu0 0.0
    %2236 = vmatprep.subr.mxu0 0.0
    %2237 = vmatpush1.msra.mxu0 0.0
    %2238 = vmatprep.subr.mxu0 0.0
    %2239 = vmatpush1.msra.mxu0 0.0
    %2240 = vmatprep.subr.mxu0 0.0
    %2241 = vmatpush1.msra.mxu0 0.0
    %2242 = vmatprep.subr.mxu0 0.0
    %2243 = vmatpush1.msra.mxu0 0.0
    %2244 = vmatprep.subr.mxu0 0.0
    %2245 = vmatpush1.msra.mxu0 0.0
    %2246 = vmatprep.subr.mxu0 0.0
    %2247 = vmatpush1.msra.mxu0 0.0
    %2248 = vmatprep.subr.mxu0 0.0
    %2249 = vmatpush1.msra.mxu0 0.0
    %2250 = vmatprep.subr.mxu0 0.0
    %2251 = vmatpush1.msra.mxu0 0.0
    %2252 = vmatprep.subr.mxu0 0.0
    %2253 = vmatpush1.msra.mxu0 %v2221
    %2254 = vmatprep.subr.mxu0 0.0
    %2255 = vmatpush1.msra.mxu0 %v2219
    %2256 = vmatprep.subr.mxu0 0.0
    %2257 = vmatpush2.msra.mxu0 0.0
    %2258 = vmatprep.subr.mxu0 0.0
    %2259 = vmatpush2.msra.mxu0 0.0
    %2260 = vmatprep.subr.mxu0 0.0
    %2261 = vmatpush2.msra.mxu0 0.0
    %2262 = vmatprep.subr.mxu0 0.0
    %2263 = vmatpush2.msra.mxu0 0.0
    %2264 = vmatprep.subr.mxu0 0.0
    %2265 = vmatpush2.msra.mxu0 0.0
    %2266 = vmatprep.subr.mxu0 0.0
    %2267 = vmatpush2.msra.mxu0 0.0
    %2268 = vmatprep.subr.mxu0 0.0
    %2269 = vmatpush2.msra.mxu0 0.0
    %2270 = vmatprep.subr.mxu0 0.0
    %2271 = vmatpush2.msra.mxu0 0.0
    %2272 = vmatprep.subr.mxu0 0.0
    %2273 = vmatpush2.msra.mxu0 0.0
    %2274 = vmatprep.subr.mxu0 0.0
    %2275 = vmatpush2.msra.mxu0 0.0
    %2276 = vmatprep.subr.mxu0 0.0
    %2277 = vmatpush2.msra.mxu0 0.0
    %2278 = vmatprep.subr.mxu0 0.0
    %2279 = vmatpush2.msra.mxu0 0.0
    %2280 = vmatprep.subr.mxu0 0.0
    %2281 = vmatpush2.msra.mxu0 0.0
    %2282 = vmatprep.subr.mxu0 0.0
    %2283 = vmatpush2.msra.mxu0 0.0
    %2284 = vmatprep.subr.mxu0 0.0
    %2285 = vmatpush2.msra.mxu0 0.0
    %2286 = vmatprep.subr.mxu0 0.0
    %2287 = vmatpush2.msra.mxu0 0.0
    %2288 = vmatprep.mubr.f32.mxu0 0.0
    %2289 = vmatmul.mubr.f32.gmra.mxu0 %v2138
    %v2290 = vpop.f32.mrf.mxu0
    %v2291 = vadd.f32 0.0, %v2290
    %v2292 = vpop.f32.mrf.mxu0
    %2293 = vmatprep.mubr.f32.mxu0 0.0
    %2294 = vmatmul.mubr.f32.gmra.mxu0 %v2141
    %v2295 = vpop.f32.mrf.mxu0
    %v2296 = vadd.f32 0.0, %v2295
    %v2297 = vpop.f32.mrf.mxu0
    %2298 = vdwg.mxu0
    %v2300 = vsel %vm287, %v2210, 0
    %v2303 = vsel %vm287, %v2215, 0
    %2305 = vmatprep.subr.mxu0 0.0
    %2306 = vmatpush1.msra.mxu0 0.0
    %2307 = vmatprep.subr.mxu0 0.0
    %2308 = vmatpush1.msra.mxu0 0.0
    %2309 = vmatprep.subr.mxu0 0.0
    %2310 = vmatpush1.msra.mxu0 0.0
    %2311 = vmatprep.subr.mxu0 0.0
    %2312 = vmatpush1.msra.mxu0 0.0
    %2313 = vmatprep.subr.mxu0 0.0
    %2314 = vmatpush1.msra.mxu0 0.0
    %2315 = vmatprep.subr.mxu0 0.0
    %2316 = vmatpush1.msra.mxu0 0.0
    %2317 = vmatprep.subr.mxu0 0.0
    %2318 = vmatpush1.msra.mxu0 0.0
    %2319 = vmatprep.subr.mxu0 0.0
    %2320 = vmatpush1.msra.mxu0 0.0
    %2321 = vmatprep.subr.mxu0 0.0
    %2322 = vmatpush1.msra.mxu0 0.0
    %2323 = vmatprep.subr.mxu0 0.0
    %2324 = vmatpush1.msra.mxu0 0.0
    %2325 = vmatprep.subr.mxu0 0.0
    %2326 = vmatpush1.msra.mxu0 0.0
    %2327 = vmatprep.subr.mxu0 0.0
    %2328 = vmatpush1.msra.mxu0 0.0
    %2329 = vmatprep.subr.mxu0 0.0
    %2330 = vmatpush1.msra.mxu0 0.0
    %2331 = vmatprep.subr.mxu0 0.0
    %2332 = vmatpush1.msra.mxu0 0.0
    %2333 = vmatprep.subr.mxu0 0.0
    %2334 = vmatpush1.msra.mxu0 0.0
    %2335 = vmatprep.subr.mxu0 0.0
    %2336 = vmatpush1.msra.mxu0 %v278
    %2337 = vmatprep.subr.mxu0 0.0
    %2338 = vmatpush2.msra.mxu0 0.0
    %2339 = vmatprep.subr.mxu0 0.0
    %2340 = vmatpush2.msra.mxu0 0.0
    %2341 = vmatprep.subr.mxu0 0.0
    %2342 = vmatpush2.msra.mxu0 0.0
    %2343 = vmatprep.subr.mxu0 0.0
    %2344 = vmatpush2.msra.mxu0 0.0
    %2345 = vmatprep.subr.mxu0 0.0
    %2346 = vmatpush2.msra.mxu0 0.0
    %2347 = vmatprep.subr.mxu0 0.0
    %2348 = vmatpush2.msra.mxu0 0.0
    %2349 = vmatprep.subr.mxu0 0.0
    %2350 = vmatpush2.msra.mxu0 0.0
    %2351 = vmatprep.subr.mxu0 0.0
    %2352 = vmatpush2.msra.mxu0 0.0
    %2353 = vmatprep.subr.mxu0 0.0
    %2354 = vmatpush2.msra.mxu0 0.0
    %2355 = vmatprep.subr.mxu0 0.0
    %2356 = vmatpush2.msra.mxu0 0.0
    %2357 = vmatprep.subr.mxu0 0.0
    %2358 = vmatpush2.msra.mxu0 0.0
    %2359 = vmatprep.subr.mxu0 0.0
    %2360 = vmatpush2.msra.mxu0 0.0
    %2361 = vmatprep.subr.mxu0 0.0
    %2362 = vmatpush2.msra.mxu0 0.0
    %2363 = vmatprep.subr.mxu0 0.0
    %2364 = vmatpush2.msra.mxu0 0.0
    %2365 = vmatprep.subr.mxu0 0.0
    %2366 = vmatpush2.msra.mxu0 0.0
    %2367 = vmatprep.subr.mxu0 0.0
    %2368 = vmatpush2.msra.mxu0 0.0
    %2369 = vmatprep.mubr.f32.mxu0 0.0
    %2370 = vmatmul.mubr.f32.gmra.mxu0 %v2300
    %v2371 = vpop.f32.mrf.mxu0
    %v2372 = vadd.f32 0.0, %v2371
    %v2373 = vpop.f32.mrf.mxu0
    %2374 = vmatprep.mubr.f32.mxu0 0.0
    %2375 = vmatmul.mubr.f32.gmra.mxu0 %v2303
    %v2376 = vpop.f32.mrf.mxu0
    %v2377 = vadd.f32 0.0, %v2376
    %v2378 = vpop.f32.mrf.mxu0
    %2379 = vdwg.mxu0
    %v2380 = vadd.f32 %v1831, %v2372
    %v2381 = vadd.f32 %v1832, %v2377
    %v2382 = vrot.slane %v280, 4
    %v2384 = vsel %vm379, %v2291, 0
    %v2387 = vsel %vm379, %v2296, 0
    %v2389 = vsel %vm1209, %v2382, 0
    %2391 = vmatprep.subr.mxu0 0.0
    %2392 = vmatpush1.msra.mxu0 0.0
    %2393 = vmatprep.subr.mxu0 0.0
    %2394 = vmatpush1.msra.mxu0 0.0
    %2395 = vmatprep.subr.mxu0 0.0
    %2396 = vmatpush1.msra.mxu0 0.0
    %2397 = vmatprep.subr.mxu0 0.0
    %2398 = vmatpush1.msra.mxu0 0.0
    %2399 = vmatprep.subr.mxu0 0.0
    %2400 = vmatpush1.msra.mxu0 0.0
    %2401 = vmatprep.subr.mxu0 0.0
    %2402 = vmatpush1.msra.mxu0 0.0
    %2403 = vmatprep.subr.mxu0 0.0
    %2404 = vmatpush1.msra.mxu0 0.0
    %2405 = vmatprep.subr.mxu0 0.0
    %2406 = vmatpush1.msra.mxu0 0.0
    %2407 = vmatprep.subr.mxu0 0.0
    %2408 = vmatpush1.msra.mxu0 0.0
    %2409 = vmatprep.subr.mxu0 0.0
    %2410 = vmatpush1.msra.mxu0 0.0
    %2411 = vmatprep.subr.mxu0 0.0
    %2412 = vmatpush1.msra.mxu0 0.0
    %2413 = vmatprep.subr.mxu0 0.0
    %2414 = vmatpush1.msra.mxu0 0.0
    %2415 = vmatprep.subr.mxu0 0.0
    %2416 = vmatpush1.msra.mxu0 0.0
    %2417 = vmatprep.subr.mxu0 0.0
    %2418 = vmatpush1.msra.mxu0 0.0
    %2419 = vmatprep.subr.mxu0 0.0
    %2420 = vmatpush1.msra.mxu0 0.0
    %2421 = vmatprep.subr.mxu0 0.0
    %2422 = vmatpush1.msra.mxu0 %v2389
    %2423 = vmatprep.subr.mxu0 0.0
    %2424 = vmatpush2.msra.mxu0 0.0
    %2425 = vmatprep.subr.mxu0 0.0
    %2426 = vmatpush2.msra.mxu0 0.0
    %2427 = vmatprep.subr.mxu0 0.0
    %2428 = vmatpush2.msra.mxu0 0.0
    %2429 = vmatprep.subr.mxu0 0.0
    %2430 = vmatpush2.msra.mxu0 0.0
    %2431 = vmatprep.subr.mxu0 0.0
    %2432 = vmatpush2.msra.mxu0 0.0
    %2433 = vmatprep.subr.mxu0 0.0
    %2434 = vmatpush2.msra.mxu0 0.0
    %2435 = vmatprep.subr.mxu0 0.0
    %2436 = vmatpush2.msra.mxu0 0.0
    %2437 = vmatprep.subr.mxu0 0.0
    %2438 = vmatpush2.msra.mxu0 0.0
    %2439 = vmatprep.subr.mxu0 0.0
    %2440 = vmatpush2.msra.mxu0 0.0
    %2441 = vmatprep.subr.mxu0 0.0
    %2442 = vmatpush2.msra.mxu0 0.0
    %2443 = vmatprep.subr.mxu0 0.0
    %2444 = vmatpush2.msra.mxu0 0.0
    %2445 = vmatprep.subr.mxu0 0.0
    %2446 = vmatpush2.msra.mxu0 0.0
    %2447 = vmatprep.subr.mxu0 0.0
    %2448 = vmatpush2.msra.mxu0 0.0
    %2449 = vmatprep.subr.mxu0 0.0
    %2450 = vmatpush2.msra.mxu0 0.0
    %2451 = vmatprep.subr.mxu0 0.0
    %2452 = vmatpush2.msra.mxu0 0.0
    %2453 = vmatprep.subr.mxu0 0.0
    %2454 = vmatpush2.msra.mxu0 0.0
    %2455 = vmatprep.mubr.f32.mxu0 0.0
    %2456 = vmatmul.mubr.f32.gmra.mxu0 %v2384
    %v2457 = vpop.f32.mrf.mxu0
    %v2458 = vadd.f32 0.0, %v2457
    %v2459 = vpop.f32.mrf.mxu0
    %2460 = vmatprep.mubr.f32.mxu0 0.0
    %2461 = vmatmul.mubr.f32.gmra.mxu0 %v2387
    %v2462 = vpop.f32.mrf.mxu0
    %v2463 = vadd.f32 0.0, %v2462
    %v2464 = vpop.f32.mrf.mxu0
    %2465 = vdwg.mxu0
    %v2466 = vadd.f32 %v1917, %v2458
    %v2467 = vadd.f32 %v1918, %v2463
    %v2468 = vld [vmem:[#allocation10 + $0x2] sm:$0x1]
    %v2469 = vlaneseq
    %v2470 = vshrl.u32 %v2469, 7
    %v2471 = vsub.s32 0, %v2470
    %v2472 = vrot.slane %v2468, %v2471
    %v2473 = vadd.f32 %v2380, %v2472
    %v2474 = vadd.f32 %v2381, %v2472
    %v2475 = vadd.f32 %v2473, %v89
    %v2476 = vadd.f32 %v2474, %v90
    %v2477 = vld [vmem:[#allocation10 + $0x3] sm:$0x1]
    %v2478 = vld [vmem:[#allocation10 + $0x4] sm:$0x1]
    %v2479 = vsel %vm104, %v2475, 0.0
    %2480 = vadd.xlane.f32.xlu0 %v2479
    %v2481 = vpop.xlane.xlu0 %2480
    %v2482 = vsel %vm104, %v2476, 0.0
    %2483 = vadd.xlane.f32.xlu0 %v2482
    %v2484 = vpop.xlane.xlu0 %2483
    %v2485 = vrcp.pop 32.0
    %v2486 = vmul.f32 %v2481, %v2485
    %v2487 = vmul.f32 %v2484, %v2485
    %v2488 = vsub.f32 %v2475, %v2486
    %v2489 = vsub.f32 %v2476, %v2487
    %v2490 = vmul.f32 %v2488, %v2488
    %v2491 = vmul.f32 %v2489, %v2489
    %v2492 = vsel %vm104, %v2490, 0.0
    %2493 = vadd.xlane.f32.xlu0 %v2492
    %v2494 = vpop.xlane.xlu0 %2493
    %v2495 = vsel %vm104, %v2491, 0.0
    %2496 = vadd.xlane.f32.xlu0 %v2495
    %v2497 = vpop.xlane.xlu0 %2496
    %v2498 = vmul.f32 %v2494, %v2485
    %v2499 = vmul.f32 %v2497, %v2485
    %v2500 = vadd.f32 %v2498, 1e-12
    %v2501 = vadd.f32 %v2499, 1e-12
    %v2502 = vrsqrt.pop %v2500
    %v2503 = vrsqrt.pop %v2501
    %v2504 = vmul.f32 %v2488, %v2502
    %v2505 = vmul.f32 %v2489, %v2503
    %v2506 = vlaneseq
    %v2507 = vshrl.u32 %v2506, 7
    %v2508 = vsub.s32 0, %v2507
    %v2509 = vrot.slane %v2477, %v2508
    %v2510 = vmul.f32 %v2504, %v2509
    %v2511 = vmul.f32 %v2505, %v2509
    %v2512 = vlaneseq
    %v2513 = vshrl.u32 %v2512, 7
    %v2514 = vsub.s32 0, %v2513
    %v2515 = vrot.slane %v2478, %v2514
    %v2516 = vadd.f32 %v2510, %v2515
    %v2517 = vadd.f32 %v2511, %v2515
    %v2518 = vld [vmem:[#allocation10 + $0x5] sm:$0x1]
    %v2519 = vlaneseq
    %v2520 = vshrl.u32 %v2519, 7
    %v2521 = vsub.s32 0, %v2520
    %v2522 = vrot.slane %v2518, %v2521
    %v2523 = vadd.f32 %v2466, %v2522
    %v2524 = vadd.f32 %v2467, %v2522
    %v2525 = vadd.f32 %v2523, %v91
    %v2526 = vadd.f32 %v2524, %v92
    %v2527 = vld [vmem:[#allocation10 + $0x6] sm:$0x1]
    %v2528 = vld [vmem:[#allocation10 + $0x7] sm:$0x1]
    %v2529 = vsel %vm193, %v2525, 0.0
    %2530 = vadd.xlane.f32.xlu0 %v2529
    %v2531 = vpop.xlane.xlu0 %2530
    %v2532 = vsel %vm193, %v2526, 0.0
    %2533 = vadd.xlane.f32.xlu0 %v2532
    %v2534 = vpop.xlane.xlu0 %2533
    %v2535 = vrcp.pop 16.0
    %v2536 = vmul.f32 %v2531, %v2535
    %v2537 = vmul.f32 %v2534, %v2535
    %v2538 = vsub.f32 %v2525, %v2536
    %v2539 = vsub.f32 %v2526, %v2537
    %v2540 = vmul.f32 %v2538, %v2538
    %v2541 = vmul.f32 %v2539, %v2539
    %v2542 = vsel %vm193, %v2540, 0.0
    %2543 = vadd.xlane.f32.xlu0 %v2542
    %v2544 = vpop.xlane.xlu0 %2543
    %v2545 = vsel %vm193, %v2541, 0.0
    %2546 = vadd.xlane.f32.xlu0 %v2545
    %v2547 = vpop.xlane.xlu0 %2546
    %v2548 = vmul.f32 %v2544, %v2535
    %v2549 = vmul.f32 %v2547, %v2535
    %v2550 = vadd.f32 %v2548, 1e-12
    %v2551 = vadd.f32 %v2549, 1e-12
    %v2552 = vrsqrt.pop %v2550
    %v2553 = vrsqrt.pop %v2551
    %v2554 = vmul.f32 %v2538, %v2552
    %v2555 = vmul.f32 %v2539, %v2553
    %v2556 = vlaneseq
    %v2557 = vshrl.u32 %v2556, 7
    %v2558 = vsub.s32 0, %v2557
    %v2559 = vrot.slane %v2527, %v2558
    %v2560 = vmul.f32 %v2554, %v2559
    %v2561 = vmul.f32 %v2555, %v2559
    %v2562 = vlaneseq
    %v2563 = vshrl.u32 %v2562, 7
    %v2564 = vsub.s32 0, %v2563
    %v2565 = vrot.slane %v2528, %v2564
    %v2566 = vadd.f32 %v2560, %v2565
    %v2567 = vadd.f32 %v2561, %v2565
    %v2568 = vld [vmem:[#allocation8 + $0x60] sm:$0xff]
    %v2569 = vld [vmem:[#allocation8 + $0x68] sm:$0xff]
    %v2570 = vld [vmem:[#allocation8 + $0x70] sm:$0xff]
    %v2571 = vld [vmem:[#allocation8 + $0x78] sm:$0xff]
    %v2572 = vld [vmem:[#allocation10 + $0x8] sm:$0x1]
    %v2573 = vlaneseq
    %v2574 = vshrl.u32 %v2573, 7
    %v2575 = vsub.s32 0, %v2574
    %v2576 = vrot.slane %v2572, %v2575
    %v2578 = vsel %vm104, %v2516, 0
    %v2581 = vsel %vm104, %v2517, 0
    %2583 = vmatprep.subr.mxu0 0.0
    %2584 = vmatpush1.msra.mxu0 0.0
    %2585 = vmatprep.subr.mxu0 0.0
    %2586 = vmatpush1.msra.mxu0 0.0
    %2587 = vmatprep.subr.mxu0 0.0
    %2588 = vmatpush1.msra.mxu0 0.0
    %2589 = vmatprep.subr.mxu0 0.0
    %2590 = vmatpush1.msra.mxu0 0.0
    %2591 = vmatprep.subr.mxu0 0.0
    %2592 = vmatpush1.msra.mxu0 0.0
    %2593 = vmatprep.subr.mxu0 0.0
    %2594 = vmatpush1.msra.mxu0 0.0
    %2595 = vmatprep.subr.mxu0 0.0
    %2596 = vmatpush1.msra.mxu0 0.0
    %2597 = vmatprep.subr.mxu0 0.0
    %2598 = vmatpush1.msra.mxu0 0.0
    %2599 = vmatprep.subr.mxu0 0.0
    %2600 = vmatpush1.msra.mxu0 0.0
    %2601 = vmatprep.subr.mxu0 0.0
    %2602 = vmatpush1.msra.mxu0 0.0
    %2603 = vmatprep.subr.mxu0 0.0
    %2604 = vmatpush1.msra.mxu0 0.0
    %2605 = vmatprep.subr.mxu0 0.0
    %2606 = vmatpush1.msra.mxu0 0.0
    %2607 = vmatprep.subr.mxu0 0.0
    %2608 = vmatpush1.msra.mxu0 %v2571
    %2609 = vmatprep.subr.mxu0 0.0
    %2610 = vmatpush1.msra.mxu0 %v2570
    %2611 = vmatprep.subr.mxu0 0.0
    %2612 = vmatpush1.msra.mxu0 %v2569
    %2613 = vmatprep.subr.mxu0 0.0
    %2614 = vmatpush1.msra.mxu0 %v2568
    %2615 = vmatprep.subr.mxu0 0.0
    %2616 = vmatpush2.msra.mxu0 0.0
    %2617 = vmatprep.subr.mxu0 0.0
    %2618 = vmatpush2.msra.mxu0 0.0
    %2619 = vmatprep.subr.mxu0 0.0
    %2620 = vmatpush2.msra.mxu0 0.0
    %2621 = vmatprep.subr.mxu0 0.0
    %2622 = vmatpush2.msra.mxu0 0.0
    %2623 = vmatprep.subr.mxu0 0.0
    %2624 = vmatpush2.msra.mxu0 0.0
    %2625 = vmatprep.subr.mxu0 0.0
    %2626 = vmatpush2.msra.mxu0 0.0
    %2627 = vmatprep.subr.mxu0 0.0
    %2628 = vmatpush2.msra.mxu0 0.0
    %2629 = vmatprep.subr.mxu0 0.0
    %2630 = vmatpush2.msra.mxu0 0.0
    %2631 = vmatprep.subr.mxu0 0.0
    %2632 = vmatpush2.msra.mxu0 0.0
    %2633 = vmatprep.subr.mxu0 0.0
    %2634 = vmatpush2.msra.mxu0 0.0
    %2635 = vmatprep.subr.mxu0 0.0
    %2636 = vmatpush2.msra.mxu0 0.0
    %2637 = vmatprep.subr.mxu0 0.0
    %2638 = vmatpush2.msra.mxu0 0.0
    %2639 = vmatprep.subr.mxu0 0.0
    %2640 = vmatpush2.msra.mxu0 0.0
    %2641 = vmatprep.subr.mxu0 0.0
    %2642 = vmatpush2.msra.mxu0 0.0
    %2643 = vmatprep.subr.mxu0 0.0
    %2644 = vmatpush2.msra.mxu0 0.0
    %2645 = vmatprep.subr.mxu0 0.0
    %2646 = vmatpush2.msra.mxu0 0.0
    %2647 = vmatprep.mubr.f32.mxu0 0.0
    %2648 = vmatmul.mubr.f32.gmra.mxu0 %v2578
    %v2649 = vpop.f32.mrf.mxu0
    %v2650 = vadd.f32 %v2576, %v2649
    %v2651 = vpop.f32.mrf.mxu0
    %2652 = vmatprep.mubr.f32.mxu0 0.0
    %2653 = vmatmul.mubr.f32.gmra.mxu0 %v2581
    %v2654 = vpop.f32.mrf.mxu0
    %v2655 = vadd.f32 %v2576, %v2654
    %v2656 = vpop.f32.mrf.mxu0
    %2657 = vdwg.mxu0
    %v2658 = vmul.f32 %v2650, 0.5
    %v2659 = vmul.f32 %v2655, 0.5
    %v2660 = vmul.f32 %v2650, 0.70710677
    %v2661 = vmul.f32 %v2655, 0.70710677
    %v2662 = verf.f32.pop %v2660
    %v2663 = verf.f32.pop %v2661
    %v2664 = vadd.f32 %v2662, 1.0
    %v2665 = vadd.f32 %v2663, 1.0
    %v2666 = vmul.f32 %v2658, %v2664
    %v2667 = vmul.f32 %v2659, %v2665
    %v2668 = vld [vmem:[#allocation8 + $0x80] sm:$0xff]
    %v2669 = vld [vmem:[#allocation8 + $0x88] sm:$0xff]
    %v2670 = vld [vmem:[#allocation8 + $0x90] sm:$0xff]
    %v2671 = vld [vmem:[#allocation8 + $0x98] sm:$0xff]
    %v2672 = vld [vmem:[#allocation8 + $0xa0] sm:$0xff]
    %v2673 = vld [vmem:[#allocation8 + $0xa8] sm:$0xff]
    %v2674 = vld [vmem:[#allocation8 + $0xb0] sm:$0xff]
    %v2675 = vld [vmem:[#allocation8 + $0xb8] sm:$0xff]
    %v2676 = vld [vmem:[#allocation10 + $0x9] sm:$0x1]
    %v2677 = vlaneseq
    %v2678 = vshrl.u32 %v2677, 7
    %v2679 = vsub.s32 0, %v2678
    %v2680 = vrot.slane %v2676, %v2679
    %vm2681 = vcmask 523264
    %v2683 = vsel %vm2681, %v2666, 0
    %v2686 = vsel %vm2681, %v2667, 0
    %2688 = vmatprep.subr.mxu0 0.0
    %2689 = vmatpush1.msra.mxu0 0.0
    %2690 = vmatprep.subr.mxu0 0.0
    %2691 = vmatpush1.msra.mxu0 0.0
    %2692 = vmatprep.subr.mxu0 0.0
    %2693 = vmatpush1.msra.mxu0 0.0
    %2694 = vmatprep.subr.mxu0 0.0
    %2695 = vmatpush1.msra.mxu0 0.0
    %2696 = vmatprep.subr.mxu0 0.0
    %2697 = vmatpush1.msra.mxu0 0.0
    %2698 = vmatprep.subr.mxu0 0.0
    %2699 = vmatpush1.msra.mxu0 0.0
    %2700 = vmatprep.subr.mxu0 0.0
    %2701 = vmatpush1.msra.mxu0 0.0
    %2702 = vmatprep.subr.mxu0 0.0
    %2703 = vmatpush1.msra.mxu0 0.0
    %2704 = vmatprep.subr.mxu0 0.0
    %2705 = vmatpush1.msra.mxu0 %v2675
    %2706 = vmatprep.subr.mxu0 0.0
    %2707 = vmatpush1.msra.mxu0 %v2674
    %2708 = vmatprep.subr.mxu0 0.0
    %2709 = vmatpush1.msra.mxu0 %v2673
    %2710 = vmatprep.subr.mxu0 0.0
    %2711 = vmatpush1.msra.mxu0 %v2672
    %2712 = vmatprep.subr.mxu0 0.0
    %2713 = vmatpush1.msra.mxu0 %v2671
    %2714 = vmatprep.subr.mxu0 0.0
    %2715 = vmatpush1.msra.mxu0 %v2670
    %2716 = vmatprep.subr.mxu0 0.0
    %2717 = vmatpush1.msra.mxu0 %v2669
    %2718 = vmatprep.subr.mxu0 0.0
    %2719 = vmatpush1.msra.mxu0 %v2668
    %2720 = vmatprep.subr.mxu0 0.0
    %2721 = vmatpush2.msra.mxu0 0.0
    %2722 = vmatprep.subr.mxu0 0.0
    %2723 = vmatpush2.msra.mxu0 0.0
    %2724 = vmatprep.subr.mxu0 0.0
    %2725 = vmatpush2.msra.mxu0 0.0
    %2726 = vmatprep.subr.mxu0 0.0
    %2727 = vmatpush2.msra.mxu0 0.0
    %2728 = vmatprep.subr.mxu0 0.0
    %2729 = vmatpush2.msra.mxu0 0.0
    %2730 = vmatprep.subr.mxu0 0.0
    %2731 = vmatpush2.msra.mxu0 0.0
    %2732 = vmatprep.subr.mxu0 0.0
    %2733 = vmatpush2.msra.mxu0 0.0
    %2734 = vmatprep.subr.mxu0 0.0
    %2735 = vmatpush2.msra.mxu0 0.0
    %2736 = vmatprep.subr.mxu0 0.0
    %2737 = vmatpush2.msra.mxu0 0.0
    %2738 = vmatprep.subr.mxu0 0.0
    %2739 = vmatpush2.msra.mxu0 0.0
    %2740 = vmatprep.subr.mxu0 0.0
    %2741 = vmatpush2.msra.mxu0 0.0
    %2742 = vmatprep.subr.mxu0 0.0
    %2743 = vmatpush2.msra.mxu0 0.0
    %2744 = vmatprep.subr.mxu0 0.0
    %2745 = vmatpush2.msra.mxu0 0.0
    %2746 = vmatprep.subr.mxu0 0.0
    %2747 = vmatpush2.msra.mxu0 0.0
    %2748 = vmatprep.subr.mxu0 0.0
    %2749 = vmatpush2.msra.mxu0 0.0
    %2750 = vmatprep.subr.mxu0 0.0
    %2751 = vmatpush2.msra.mxu0 0.0
    %2752 = vmatprep.mubr.f32.mxu0 0.0
    %2753 = vmatmul.mubr.f32.gmra.mxu0 %v2683
    %v2754 = vpop.f32.mrf.mxu0
    %v2755 = vadd.f32 %v2680, %v2754
    %v2756 = vpop.f32.mrf.mxu0
    %2757 = vmatprep.mubr.f32.mxu0 0.0
    %2758 = vmatmul.mubr.f32.gmra.mxu0 %v2686
    %v2759 = vpop.f32.mrf.mxu0
    %v2760 = vadd.f32 %v2680, %v2759
    %v2761 = vpop.f32.mrf.mxu0
    %2762 = vdwg.mxu0
    %v2763 = vadd.f32 %v2755, %v2516
    %v2764 = vadd.f32 %v2760, %v2517
    %v2765 = vld [vmem:[#allocation10 + $0xa] sm:$0x1]
    %v2766 = vld [vmem:[#allocation10 + $0xb] sm:$0x1]
    %v2767 = vsel %vm104, %v2763, 0.0
    %2768 = vadd.xlane.f32.xlu0 %v2767
    %v2769 = vpop.xlane.xlu0 %2768
    %v2770 = vsel %vm104, %v2764, 0.0
    %2771 = vadd.xlane.f32.xlu0 %v2770
    %v2772 = vpop.xlane.xlu0 %2771
    %v2773 = vmul.f32 %v2769, %v2485
    %v2774 = vmul.f32 %v2772, %v2485
    %v2775 = vsub.f32 %v2763, %v2773
    %v2776 = vsub.f32 %v2764, %v2774
    %v2777 = vmul.f32 %v2775, %v2775
    %v2778 = vmul.f32 %v2776, %v2776
    %v2779 = vsel %vm104, %v2777, 0.0
    %2780 = vadd.xlane.f32.xlu0 %v2779
    %v2781 = vpop.xlane.xlu0 %2780
    %v2782 = vsel %vm104, %v2778, 0.0
    %2783 = vadd.xlane.f32.xlu0 %v2782
    %v2784 = vpop.xlane.xlu0 %2783
    %v2785 = vmul.f32 %v2781, %v2485
    %v2786 = vmul.f32 %v2784, %v2485
    %v2787 = vadd.f32 %v2785, 1e-12
    %v2788 = vadd.f32 %v2786, 1e-12
    %v2789 = vrsqrt.pop %v2787
    %v2790 = vrsqrt.pop %v2788
    %v2791 = vmul.f32 %v2775, %v2789
    %v2792 = vmul.f32 %v2776, %v2790
    %v2793 = vlaneseq
    %v2794 = vshrl.u32 %v2793, 7
    %v2795 = vsub.s32 0, %v2794
    %v2796 = vrot.slane %v2765, %v2795
    %v2797 = vmul.f32 %v2791, %v2796
    %v2798 = vmul.f32 %v2792, %v2796
    %v2799 = vlaneseq
    %v2800 = vshrl.u32 %v2799, 7
    %v2801 = vsub.s32 0, %v2800
    %v2802 = vrot.slane %v2766, %v2801
    %v2803 = vadd.f32 %v2797, %v2802
    %v2804 = vadd.f32 %v2798, %v2802
    %v2805 = vld [vmem:[#allocation8 + $0xc0] sm:$0xff]
    %v2806 = vld [vmem:[#allocation8 + $0xc8] sm:$0xff]
    %v2807 = vld [vmem:[#allocation10 + $0xc] sm:$0x1]
    %v2808 = vlaneseq
    %v2809 = vshrl.u32 %v2808, 7
    %v2810 = vsub.s32 0, %v2809
    %v2811 = vrot.slane %v2807, %v2810
    %v2813 = vsel %vm193, %v2566, 0
    %v2816 = vsel %vm193, %v2567, 0
    %2818 = vmatprep.subr.mxu0 0.0
    %2819 = vmatpush1.msra.mxu0 0.0
    %2820 = vmatprep.subr.mxu0 0.0
    %2821 = vmatpush1.msra.mxu0 0.0
    %2822 = vmatprep.subr.mxu0 0.0
    %2823 = vmatpush1.msra.mxu0 0.0
    %2824 = vmatprep.subr.mxu0 0.0
    %2825 = vmatpush1.msra.mxu0 0.0
    %2826 = vmatprep.subr.mxu0 0.0
    %2827 = vmatpush1.msra.mxu0 0.0
    %2828 = vmatprep.subr.mxu0 0.0
    %2829 = vmatpush1.msra.mxu0 0.0
    %2830 = vmatprep.subr.mxu0 0.0
    %2831 = vmatpush1.msra.mxu0 0.0
    %2832 = vmatprep.subr.mxu0 0.0
    %2833 = vmatpush1.msra.mxu0 0.0
    %2834 = vmatprep.subr.mxu0 0.0
    %2835 = vmatpush1.msra.mxu0 0.0
    %2836 = vmatprep.subr.mxu0 0.0
    %2837 = vmatpush1.msra.mxu0 0.0
    %2838 = vmatprep.subr.mxu0 0.0
    %2839 = vmatpush1.msra.mxu0 0.0
    %2840 = vmatprep.subr.mxu0 0.0
    %2841 = vmatpush1.msra.mxu0 0.0
    %2842 = vmatprep.subr.mxu0 0.0
    %2843 = vmatpush1.msra.mxu0 0.0
    %2844 = vmatprep.subr.mxu0 0.0
    %2845 = vmatpush1.msra.mxu0 0.0
    %2846 = vmatprep.subr.mxu0 0.0
    %2847 = vmatpush1.msra.mxu0 %v2806
    %2848 = vmatprep.subr.mxu0 0.0
    %2849 = vmatpush1.msra.mxu0 %v2805
    %2850 = vmatprep.subr.mxu0 0.0
    %2851 = vmatpush2.msra.mxu0 0.0
    %2852 = vmatprep.subr.mxu0 0.0
    %2853 = vmatpush2.msra.mxu0 0.0
    %2854 = vmatprep.subr.mxu0 0.0
    %2855 = vmatpush2.msra.mxu0 0.0
    %2856 = vmatprep.subr.mxu0 0.0
    %2857 = vmatpush2.msra.mxu0 0.0
    %2858 = vmatprep.subr.mxu0 0.0
    %2859 = vmatpush2.msra.mxu0 0.0
    %2860 = vmatprep.subr.mxu0 0.0
    %2861 = vmatpush2.msra.mxu0 0.0
    %2862 = vmatprep.subr.mxu0 0.0
    %2863 = vmatpush2.msra.mxu0 0.0
    %2864 = vmatprep.subr.mxu0 0.0
    %2865 = vmatpush2.msra.mxu0 0.0
    %2866 = vmatprep.subr.mxu0 0.0
    %2867 = vmatpush2.msra.mxu0 0.0
    %2868 = vmatprep.subr.mxu0 0.0
    %2869 = vmatpush2.msra.mxu0 0.0
    %2870 = vmatprep.subr.mxu0 0.0
    %2871 = vmatpush2.msra.mxu0 0.0
    %2872 = vmatprep.subr.mxu0 0.0
    %2873 = vmatpush2.msra.mxu0 0.0
    %2874 = vmatprep.subr.mxu0 0.0
    %2875 = vmatpush2.msra.mxu0 0.0
    %2876 = vmatprep.subr.mxu0 0.0
    %2877 = vmatpush2.msra.mxu0 0.0
    %2878 = vmatprep.subr.mxu0 0.0
    %2879 = vmatpush2.msra.mxu0 0.0
    %2880 = vmatprep.subr.mxu0 0.0
    %2881 = vmatpush2.msra.mxu0 0.0
    %2882 = vmatprep.mubr.f32.mxu0 0.0
    %2883 = vmatmul.mubr.f32.gmra.mxu0 %v2813
    %v2884 = vpop.f32.mrf.mxu0
    %v2885 = vadd.f32 %v2811, %v2884
    %v2886 = vpop.f32.mrf.mxu0
    %2887 = vmatprep.mubr.f32.mxu0 0.0
    %2888 = vmatmul.mubr.f32.gmra.mxu0 %v2816
    %v2889 = vpop.f32.mrf.mxu0
    %v2890 = vadd.f32 %v2811, %v2889
    %v2891 = vpop.f32.mrf.mxu0
    %2892 = vdwg.mxu0
    %v2893 = vmul.f32 %v2885, 0.5
    %v2894 = vmul.f32 %v2890, 0.5
    %v2895 = vmul.f32 %v2885, 0.70710677
    %v2896 = vmul.f32 %v2890, 0.70710677
    %v2897 = verf.f32.pop %v2895
    %v2898 = verf.f32.pop %v2896
    %v2899 = vadd.f32 %v2897, 1.0
    %v2900 = vadd.f32 %v2898, 1.0
    %v2901 = vmul.f32 %v2893, %v2899
    %v2902 = vmul.f32 %v2894, %v2900
    %v2903 = vld [vmem:[#allocation8 + $0xd0] sm:$0xff]
    %v2904 = vld [vmem:[#allocation8 + $0xd8] sm:$0xff]
    %v2905 = vld [vmem:[#allocation8 + $0xe0] sm:$0xff]
    %v2906 = vld [vmem:[#allocation8 + $0xe8] sm:$0xff]
    %v2907 = vld [vmem:[#allocation10 + $0xd] sm:$0x1]
    %v2908 = vlaneseq
    %v2909 = vshrl.u32 %v2908, 7
    %v2910 = vsub.s32 0, %v2909
    %v2911 = vrot.slane %v2907, %v2910
    %v2913 = vsel %vm104, %v2901, 0
    %v2916 = vsel %vm104, %v2902, 0
    %2918 = vmatprep.subr.mxu0 0.0
    %2919 = vmatpush1.msra.mxu0 0.0
    %2920 = vmatprep.subr.mxu0 0.0
    %2921 = vmatpush1.msra.mxu0 0.0
    %2922 = vmatprep.subr.mxu0 0.0
    %2923 = vmatpush1.msra.mxu0 0.0
    %2924 = vmatprep.subr.mxu0 0.0
    %2925 = vmatpush1.msra.mxu0 0.0
    %2926 = vmatprep.subr.mxu0 0.0
    %2927 = vmatpush1.msra.mxu0 0.0
    %2928 = vmatprep.subr.mxu0 0.0
    %2929 = vmatpush1.msra.mxu0 0.0
    %2930 = vmatprep.subr.mxu0 0.0
    %2931 = vmatpush1.msra.mxu0 0.0
    %2932 = vmatprep.subr.mxu0 0.0
    %2933 = vmatpush1.msra.mxu0 0.0
    %2934 = vmatprep.subr.mxu0 0.0
    %2935 = vmatpush1.msra.mxu0 0.0
    %2936 = vmatprep.subr.mxu0 0.0
    %2937 = vmatpush1.msra.mxu0 0.0
    %2938 = vmatprep.subr.mxu0 0.0
    %2939 = vmatpush1.msra.mxu0 0.0
    %2940 = vmatprep.subr.mxu0 0.0
    %2941 = vmatpush1.msra.mxu0 0.0
    %2942 = vmatprep.subr.mxu0 0.0
    %2943 = vmatpush1.msra.mxu0 %v2906
    %2944 = vmatprep.subr.mxu0 0.0
    %2945 = vmatpush1.msra.mxu0 %v2905
    %2946 = vmatprep.subr.mxu0 0.0
    %2947 = vmatpush1.msra.mxu0 %v2904
    %2948 = vmatprep.subr.mxu0 0.0
    %2949 = vmatpush1.msra.mxu0 %v2903
    %2950 = vmatprep.subr.mxu0 0.0
    %2951 = vmatpush2.msra.mxu0 0.0
    %2952 = vmatprep.subr.mxu0 0.0
    %2953 = vmatpush2.msra.mxu0 0.0
    %2954 = vmatprep.subr.mxu0 0.0
    %2955 = vmatpush2.msra.mxu0 0.0
    %2956 = vmatprep.subr.mxu0 0.0
    %2957 = vmatpush2.msra.mxu0 0.0
    %2958 = vmatprep.subr.mxu0 0.0
    %2959 = vmatpush2.msra.mxu0 0.0
    %2960 = vmatprep.subr.mxu0 0.0
    %2961 = vmatpush2.msra.mxu0 0.0
    %2962 = vmatprep.subr.mxu0 0.0
    %2963 = vmatpush2.msra.mxu0 0.0
    %2964 = vmatprep.subr.mxu0 0.0
    %2965 = vmatpush2.msra.mxu0 0.0
    %2966 = vmatprep.subr.mxu0 0.0
    %2967 = vmatpush2.msra.mxu0 0.0
    %2968 = vmatprep.subr.mxu0 0.0
    %2969 = vmatpush2.msra.mxu0 0.0
    %2970 = vmatprep.subr.mxu0 0.0
    %2971 = vmatpush2.msra.mxu0 0.0
    %2972 = vmatprep.subr.mxu0 0.0
    %2973 = vmatpush2.msra.mxu0 0.0
    %2974 = vmatprep.subr.mxu0 0.0
    %2975 = vmatpush2.msra.mxu0 0.0
    %2976 = vmatprep.subr.mxu0 0.0
    %2977 = vmatpush2.msra.mxu0 0.0
    %2978 = vmatprep.subr.mxu0 0.0
    %2979 = vmatpush2.msra.mxu0 0.0
    %2980 = vmatprep.subr.mxu0 0.0
    %2981 = vmatpush2.msra.mxu0 0.0
    %2982 = vmatprep.mubr.f32.mxu0 0.0
    %2983 = vmatmul.mubr.f32.gmra.mxu0 %v2913
    %v2984 = vpop.f32.mrf.mxu0
    %v2985 = vadd.f32 %v2911, %v2984
    %v2986 = vpop.f32.mrf.mxu0
    %2987 = vmatprep.mubr.f32.mxu0 0.0
    %2988 = vmatmul.mubr.f32.gmra.mxu0 %v2916
    %v2989 = vpop.f32.mrf.mxu0
    %v2990 = vadd.f32 %v2911, %v2989
    %v2991 = vpop.f32.mrf.mxu0
    %2992 = vdwg.mxu0
    %v2993 = vadd.f32 %v2985, %v2566
    %v2994 = vadd.f32 %v2990, %v2567
    %v2995 = vld [vmem:[#allocation10 + $0xe] sm:$0x1]
    %v2996 = vld [vmem:[#allocation10 + $0xf] sm:$0x1]
    %v2997 = vsel %vm193, %v2993, 0.0
    %2998 = vadd.xlane.f32.xlu0 %v2997
    %v2999 = vpop.xlane.xlu0 %2998
    %v3000 = vsel %vm193, %v2994, 0.0
    %3001 = vadd.xlane.f32.xlu0 %v3000
    %v3002 = vpop.xlane.xlu0 %3001
    %v3003 = vmul.f32 %v2999, %v2535
    %v3004 = vmul.f32 %v3002, %v2535
    %v3005 = vsub.f32 %v2993, %v3003
    %v3006 = vsub.f32 %v2994, %v3004
    %v3007 = vmul.f32 %v3005, %v3005
    %v3008 = vmul.f32 %v3006, %v3006
    %v3009 = vsel %vm193, %v3007, 0.0
    %3010 = vadd.xlane.f32.xlu0 %v3009
    %v3011 = vpop.xlane.xlu0 %3010
    %v3012 = vsel %vm193, %v3008, 0.0
    %3013 = vadd.xlane.f32.xlu0 %v3012
    %v3014 = vpop.xlane.xlu0 %3013
    %v3015 = vmul.f32 %v3011, %v2535
    %v3016 = vmul.f32 %v3014, %v2535
    %v3017 = vadd.f32 %v3015, 1e-12
    %v3018 = vadd.f32 %v3016, 1e-12
    %v3019 = vrsqrt.pop %v3017
    %v3020 = vrsqrt.pop %v3018
    %v3021 = vmul.f32 %v3005, %v3019
    %v3022 = vmul.f32 %v3006, %v3020
    %v3023 = vlaneseq
    %v3024 = vshrl.u32 %v3023, 7
    %v3025 = vsub.s32 0, %v3024
    %v3026 = vrot.slane %v2995, %v3025
    %v3027 = vmul.f32 %v3021, %v3026
    %v3028 = vmul.f32 %v3022, %v3026
    %v3029 = vlaneseq
    %v3030 = vshrl.u32 %v3029, 7
    %v3031 = vsub.s32 0, %v3030
    %v3032 = vrot.slane %v2996, %v3031
    %v3033 = vadd.f32 %v3027, %v3032
    %v3034 = vadd.f32 %v3028, %v3032
    %3035 = vst.msk [vmem:[#allocation11] sm:$0xff] %vm104, %v2803
    %3036 = vst.msk [vmem:[#allocation11 + $0x8] sm:$0xff] %vm104, %v2804
    %3039 = vrot.lane.b32.xlu0 %v3033, 32
    %v3040 = vpop.permute.xlu0 %3039
    %3041 = vrot.lane.b32.xlu0 %v3034, 32
    %v3042 = vpop.permute.xlu0 %3041
    %vm3045 = vcmask 392448
    %3046 = vst.msk [vmem:[#allocation11] sm:$0xff] %vm3045, %v3040
    %3047 = vst.msk [vmem:[#allocation11 + $0x8] sm:$0xff] %vm3045, %v3042
    // Predicated region
    $region42: #{tpu_custom_call.1} parent=1 // pred_check
      _
    $region43: #{tpu_custom_call.1} parent=1 // pred_check_branch
      %3049 = sbr.rel (0) target = $region45
    $region44: #{tpu_custom_call.1} parent=1 // pred_region
      %s3051 = ssub.s32 256, 256
      %3052 = vsyncadd [#allocation4], %s3051
      %s3053 = sshll.u32 [#allocation11], 4
      %s3054 = int_to_ptr.vmem [resolvable:$true] %s3053
      %3059 = dma.vmem_to_hbm [thread:$0]  %s3054, 256, %s5, [#allocation4], 128, 128, 8
    $region45: #{tpu_custom_call.1} parent=1 // pred_fallthru
      _
    // Predicated region
    $region46: #{tpu_custom_call.1} parent=1 // pred_check
      _
    $region47: #{tpu_custom_call.1} parent=1 // pred_check_branch
      %3061 = sbr.rel (0) target = $region49
    $region48: #{tpu_custom_call.1} parent=1 // pred_region
      %3062 = dma.done [#allocation4], 256
    $region49: #{tpu_custom_call.1} parent=1 // pred_fallthru
      _
    %3063 = vsyncpa [#allocation3], 1
    %3064 = vsyncpa [#allocation6], 1
    %3065 = vsyncpa [#allocation9], 1
    %3066 = vsyncpa [#allocation4], 1

</llo_original>
